<compile_context>
chip_gen: v7x
topology: tpu7x:2x2x1
jax: 0.10.0
libtpu: 0.0.40
codegen_flags: <defaults>
</compile_context>

<pallas_src>
import jax
import jax.numpy as jnp
from jax.experimental import pallas as pl
from jax.experimental.pallas import tpu as pltpu

# ---- small, module-consistent sizes ----------------------------------------
N_INPUT = 128        # stands in for n_input=7514 (kept lane-aligned & small)
N_OUTPUT = 4
IN_CHANNEL = 1
C1 = 32              # conv1 out channels
C2 = 64              # conv2 out channels
HIDDEN = 128         # fc1 out features
BATCH = 2

OUT_LANES = 128      # lane-dense fc2 output (last dim 4 would force masked stores)
NEG_SLOPE = 0.01     # F.leaky_relu default

FC1_CHUNK = 16                   # channels contracted per grid step (bf16 tile aligned)
NUM_CHUNKS = C2 // FC1_CHUNK     # 4 grid steps


def _leaky_relu(x):
    return jnp.where(x > 0, x, NEG_SLOPE * x)


def _shift3(x):
    """x: (C, L) f32 -> (x[:, l-1], x, x[:, l+1]) with zero edge padding."""
    c = x.shape[0]
    zero = jnp.zeros((c, 1), jnp.float32)
    xm1 = jnp.concatenate([zero, x[:, :-1]], axis=1)
    xp1 = jnp.concatenate([x[:, 1:], zero], axis=1)
    return xm1, x, xp1


# ---- fused kernel: conv1 -> conv2 (step 0) ; fc1 chunk per step ; fc2 (last)
def cnn_kernel(x_ref, w1_ref, b1_ref, w2_ref, b2_ref,
               fc1w_ref, fc1b_ref, fc2w_ref, fc2b_ref,
               o_ref, h2_s, acc_s):
    k = pl.program_id(0)

    # -------- one-time prologue: conv1 + conv2 for the whole batch ----------
    @pl.when(k == 0)
    def _prologue():
        w1 = w1_ref[...]                                    # (C1, 3)  f32
        b1 = b1_ref[...]                                    # (C1, 1)  f32
        # hoisted tap broadcasts, shared across the (tiny) batch loop
        w1m1 = jnp.broadcast_to(w1[:, 0:1], (C1, N_INPUT))
        w1c0 = jnp.broadcast_to(w1[:, 1:2], (C1, N_INPUT))
        w1p1 = jnp.broadcast_to(w1[:, 2:3], (C1, N_INPUT))

        xv = x_ref[...]                                     # (B, L)   f32
        taps_cols = []
        for b in range(BATCH):                              # B = 2, static
            x_b = xv[b:b + 1, :]                            # (1, L)
            xm1, x0, xp1 = _shift3(x_b)
            # conv1 (Cin == 1): tap-wise products on the VPU
            h1 = _leaky_relu(w1m1 * xm1 + w1c0 * x0 + w1p1 * xp1 + b1)   # (C1, L)
            hm1, h0, hp1 = _shift3(h1)
            taps_cols.append(jnp.concatenate([hm1, h0, hp1], axis=0))    # (3*C1, L)

        # conv2 for BOTH batches in one MXU dot: (C2, 3*C1) @ (3*C1, B*L)
        taps = jnp.concatenate(taps_cols, axis=1).astype(jnp.bfloat16)   # (3*C1, B*L)
        h2 = _leaky_relu(
            jnp.dot(w2_ref[...], taps, preferred_element_type=jnp.float32)
            + b2_ref[...])                                               # (C2, B*L) f32

        # stage h2 in VMEM, channel-chunk-major layout (C2, B, L) bf16
        for b in range(BATCH):
            h2_s[:, b, :] = h2[:, b * N_INPUT:(b + 1) * N_INPUT].astype(jnp.bfloat16)
        acc_s[...] = jnp.zeros_like(acc_s)

    # -------- fc1: one channel chunk of the reduction per grid step ---------
    off = pl.multiple_of(k * FC1_CHUNK, FC1_CHUNK)
    lhs = h2_s[pl.ds(off, FC1_CHUNK)]                       # (G, B, L)  bf16
    part = jnp.einsum("gbl,glh->gbh", lhs, fc1w_ref[...],
                      preferred_element_type=jnp.float32)   # (G, B, H)  f32
    acc_s[...] += part.sum(axis=0)                          # (B, H)

    # -------- epilogue: fc1 bias + activation, then fc2 ---------------------
    @pl.when(k == pl.num_programs(0) - 1)
    def _epilogue():
        a1 = _leaky_relu(acc_s[...] + fc1b_ref[...])        # (B, H) f32
        o_ref[...] = jnp.dot(a1.astype(jnp.bfloat16), fc2w_ref[...],
                             preferred_element_type=jnp.float32) + fc2b_ref[...]


# ---- wrapper ----------------------------------------------------------------
def cnn_forward(x, p):
    assert x.shape == (BATCH, N_INPUT), x.shape
    x2 = x.reshape(BATCH, N_INPUT).astype(jnp.float32)      # in_channel == 1

    grid_spec = pltpu.PrefetchScalarGridSpec(
        num_scalar_prefetch=0,
        grid=(NUM_CHUNKS,),
        in_specs=[
            pl.BlockSpec((BATCH, N_INPUT), lambda k: (0, 0)),                 # x
            pl.BlockSpec((C1, 3 * IN_CHANNEL), lambda k: (0, 0)),             # w1
            pl.BlockSpec((C1, 1), lambda k: (0, 0)),                          # b1
            pl.BlockSpec((C2, 3 * C1), lambda k: (0, 0)),                     # w2 (bf16)
            pl.BlockSpec((C2, 1), lambda k: (0, 0)),                          # b2
            pl.BlockSpec((FC1_CHUNK, N_INPUT, HIDDEN), lambda k: (k, 0, 0)),  # fc1_w (streamed)
            pl.BlockSpec((1, HIDDEN), lambda k: (0, 0)),                      # fc1_b
            pl.BlockSpec((HIDDEN, OUT_LANES), lambda k: (0, 0)),              # fc2_w (padded)
            pl.BlockSpec((1, OUT_LANES), lambda k: (0, 0)),                   # fc2_b (padded)
        ],
        out_specs=pl.BlockSpec((BATCH, OUT_LANES), lambda k: (0, 0)),
        scratch_shapes=[
            pltpu.VMEM((C2, BATCH, N_INPUT), jnp.bfloat16),   # staged conv2 output
            pltpu.VMEM((BATCH, HIDDEN), jnp.float32),         # fc1 accumulator
        ],
    )

    out_pad = pl.pallas_call(
        cnn_kernel,
        out_shape=jax.ShapeDtypeStruct((BATCH, OUT_LANES), jnp.float32),
        grid_spec=grid_spec,
        compiler_params=pltpu.CompilerParams(
            dimension_semantics=("arbitrary",),               # fc1 reduction axis
            vmem_limit_bytes=32 * 1024 * 1024),
    )(x2, p["w1"], p["b1"], p["w2"], p["b2"],
      p["fc1_w"], p["fc1_b"], p["fc2_w"], p["fc2_b"])
    return out_pad[:, :N_OUTPUT]


# ---- pure-JAX reference (same math / precision choices, no Pallas) ----------
def ref_forward(x, p):
    B = x.shape[0]
    xc = x.reshape(B, IN_CHANNEL, N_INPUT).astype(jnp.float32)

    # conv1 (Cin == 1): same elementwise VPU math as the kernel
    xm1 = jnp.pad(xc, ((0, 0), (0, 0), (1, 0)))[:, :, :N_INPUT]
    xp1 = jnp.pad(xc, ((0, 0), (0, 0), (0, 1)))[:, :, 1:]
    w1 = p["w1"]
    h1 = _leaky_relu(w1[None, :, 0:1] * xm1 + w1[None, :, 1:2] * xc
                     + w1[None, :, 2:3] * xp1 + p["b1"][None])        # (B, C1, L)

    # conv2: fused-tap bf16 matmul (same contraction as the kernel)
    h1m1 = jnp.pad(h1, ((0, 0), (0, 0), (1, 0)))[:, :, :N_INPUT]
    h1p1 = jnp.pad(h1, ((0, 0), (0, 0), (0, 1)))[:, :, 1:]
    taps = jnp.concatenate([h1m1, h1, h1p1], axis=1).astype(jnp.bfloat16)  # (B, 3*C1, L)
    h2 = jnp.einsum("ok,bkl->bol", p["w2"], taps,
                    preferred_element_type=jnp.float32) + p["b2"][None]
    h2 = _leaky_relu(h2)                                              # (B, C2, L)

    # fc1: channel-major flatten == torch x.view(B, -1)
    flat = h2.reshape(B, C2 * N_INPUT).astype(jnp.bfloat16)
    w_fc1 = p["fc1_w"].reshape(C2 * N_INPUT, HIDDEN)
    z1 = jnp.dot(flat, w_fc1, preferred_element_type=jnp.float32) + p["fc1_b"]
    a1 = _leaky_relu(z1)

    out_pad = jnp.dot(a1.astype(jnp.bfloat16), p["fc2_w"],
                      preferred_element_type=jnp.float32) + p["fc2_b"]
    return out_pad[:, :N_OUTPUT]


def init_params(key):
    """One-time, kernel-ready parameter layouts (no per-call re-layout)."""
    ks = jax.random.split(key, 8)
    u = lambda k, shape, s: jax.random.uniform(k, shape, jnp.float32, -s, s)
    s1 = (1.0 / (IN_CHANNEL * 3)) ** 0.5
    s2 = (1.0 / (C1 * 3)) ** 0.5
    s3 = (1.0 / (C2 * N_INPUT)) ** 0.5
    s4 = (1.0 / HIDDEN) ** 0.5
    # fc2 padded once to 128 output lanes (dense stores in-kernel; wrapper slices [:, :4])
    fc2_w = jnp.zeros((HIDDEN, OUT_LANES), jnp.float32).at[:, :N_OUTPUT].set(
        u(ks[6], (HIDDEN, N_OUTPUT), s4))
    fc2_b = jnp.zeros((1, OUT_LANES), jnp.float32).at[:, :N_OUTPUT].set(
        u(ks[7], (1, N_OUTPUT), s4))
    return {
        # fused-tap conv weights: column block t (width Cin / C1) = tap at offset t-1
        "w1": u(ks[0], (C1, 3 * IN_CHANNEL), s1),
        "b1": u(ks[1], (C1, 1), s1),
        "w2": u(ks[2], (C2, 3 * C1), s2).astype(jnp.bfloat16),
        "b2": u(ks[3], (C2, 1), s2),
        # fc1 weight stored (C2, L, HIDDEN) bf16: channel-major flatten == torch x.view
        "fc1_w": u(ks[4], (C2, N_INPUT, HIDDEN), s3).astype(jnp.bfloat16),
        "fc1_b": u(ks[5], (1, HIDDEN), s3),
        "fc2_w": fc2_w.astype(jnp.bfloat16),
        "fc2_b": fc2_b,
    }


if __name__ == "__main__":
    key = jax.random.PRNGKey(0)
    k_x, k_p = jax.random.split(key)
    x = jax.random.normal(k_x, (BATCH, N_INPUT), jnp.float32)
    params = init_params(k_p)

    out = jax.jit(cnn_forward)(x, params)
    out = jax.block_until_ready(out)
    assert out.shape == (BATCH, N_OUTPUT), out.shape

    ref = ref_forward(x, params)
    assert jnp.allclose(out, ref, rtol=2e-3, atol=2e-3), (out, ref)

    print("KERNEL_OK")
</pallas_src>

<mosaic_0001>
module attributes {stable_mosaic.version = 11 : i64} {
  func.func @cnn_kernel(%arg0: i32, %arg1: memref<2x128xf32, #tpu.memory_space<vmem>>, %arg2: memref<32x3xf32, #tpu.memory_space<vmem>>, %arg3: memref<32x1xf32, #tpu.memory_space<vmem>>, %arg4: memref<64x96xbf16, #tpu.memory_space<vmem>>, %arg5: memref<64x1xf32, #tpu.memory_space<vmem>>, %arg6: memref<16x128x128xbf16, #tpu.memory_space<vmem>>, %arg7: memref<1x128xf32, #tpu.memory_space<vmem>>, %arg8: memref<128x128xbf16, #tpu.memory_space<vmem>>, %arg9: memref<1x128xf32, #tpu.memory_space<vmem>>, %arg10: memref<2x128xf32, #tpu.memory_space<vmem>>, %arg11: memref<64x2x128xbf16, #tpu.memory_space<vmem>>, %arg12: memref<2x128xf32, #tpu.memory_space<vmem>>) attributes {dimension_semantics = [#tpu.dimension_semantics<arbitrary>], iteration_bounds = array<i64: 4>, scalar_prefetch = 0 : i64, scratch_operands = 2 : i64, tpu.core_type = #tpu.core_type<tc>, window_params = [{pipeline_mode = #tpu.pipeline_mode<synchronous>, transform_indices = @transform_0, window_bounds = array<i64: 2, 128>}, {pipeline_mode = #tpu.pipeline_mode<synchronous>, transform_indices = @transform_1, window_bounds = array<i64: 32, 3>}, {pipeline_mode = #tpu.pipeline_mode<synchronous>, transform_indices = @transform_2, window_bounds = array<i64: 32, 1>}, {pipeline_mode = #tpu.pipeline_mode<synchronous>, transform_indices = @transform_3, window_bounds = array<i64: 64, 96>}, {pipeline_mode = #tpu.pipeline_mode<synchronous>, transform_indices = @transform_4, window_bounds = array<i64: 64, 1>}, {transform_indices = @transform_5, window_bounds = array<i64: 16, 128, 128>}, {pipeline_mode = #tpu.pipeline_mode<synchronous>, transform_indices = @transform_6, window_bounds = array<i64: 1, 128>}, {pipeline_mode = #tpu.pipeline_mode<synchronous>, transform_indices = @transform_7, window_bounds = array<i64: 128, 128>}, {pipeline_mode = #tpu.pipeline_mode<synchronous>, transform_indices = @transform_8, window_bounds = array<i64: 1, 128>}, {pipeline_mode = #tpu.pipeline_mode<synchronous>, transform_indices = @transform_9, window_bounds = array<i64: 2, 128>}]} {
    %c0_i32 = arith.constant 0 : i32
    %0 = arith.cmpi eq, %arg0, %c0_i32 : i32
    %1 = arith.extui %0 : i1 to i32
    %c0_i32_0 = arith.constant 0 : i32
    %2 = arith.cmpi ne, %1, %c0_i32_0 : i32
    scf.if %2 {
      %c0_11 = arith.constant 0 : index
      %c0_12 = arith.constant 0 : index
      %16 = vector.load %arg2[%c0_11, %c0_12] : memref<32x3xf32, #tpu.memory_space<vmem>>, vector<32x3xf32>
      %c0_13 = arith.constant 0 : index
      %c0_14 = arith.constant 0 : index
      %17 = vector.load %arg3[%c0_13, %c0_14] : memref<32x1xf32, #tpu.memory_space<vmem>>, vector<32x1xf32>
      %18 = vector.extract_strided_slice %16 {offsets = [0, 0], sizes = [32, 1], strides = [1, 1]} : vector<32x3xf32> to vector<32x1xf32>
      %19 = vector.shape_cast %18 : vector<32x1xf32> to vector<32x1xf32>
      %20 = vector.broadcast %19 : vector<32x1xf32> to vector<32x128xf32>
      %21 = vector.extract_strided_slice %16 {offsets = [0, 1], sizes = [32, 1], strides = [1, 1]} : vector<32x3xf32> to vector<32x1xf32>
      %22 = vector.shape_cast %21 : vector<32x1xf32> to vector<32x1xf32>
      %23 = vector.broadcast %22 : vector<32x1xf32> to vector<32x128xf32>
      %24 = vector.extract_strided_slice %16 {offsets = [0, 2], sizes = [32, 1], strides = [1, 1]} : vector<32x3xf32> to vector<32x1xf32>
      %25 = vector.shape_cast %24 : vector<32x1xf32> to vector<32x1xf32>
      %26 = vector.broadcast %25 : vector<32x1xf32> to vector<32x128xf32>
      %c0_15 = arith.constant 0 : index
      %c0_16 = arith.constant 0 : index
      %27 = vector.load %arg1[%c0_15, %c0_16] : memref<2x128xf32, #tpu.memory_space<vmem>>, vector<2x128xf32>
      %28 = vector.extract_strided_slice %27 {offsets = [0, 0], sizes = [1, 128], strides = [1, 1]} : vector<2x128xf32> to vector<1x128xf32>
      %cst_17 = arith.constant 0.000000e+00 : f32
      %29 = vector.broadcast %cst_17 : f32 to vector<1x1xf32>
      %30 = vector.extract_strided_slice %28 {offsets = [0, 0], sizes = [1, 127], strides = [1, 1]} : vector<1x128xf32> to vector<1x127xf32>
      %31 = tpu.concatenate %29, %30 in 1 : vector<1x1xf32>, vector<1x127xf32> -> vector<1x128xf32>
      %32 = vector.extract_strided_slice %28 {offsets = [0, 1], sizes = [1, 127], strides = [1, 1]} : vector<1x128xf32> to vector<1x127xf32>
      %33 = tpu.concatenate %32, %29 in 1 : vector<1x127xf32>, vector<1x1xf32> -> vector<1x128xf32>
      %34 = vector.broadcast %31 : vector<1x128xf32> to vector<32x128xf32>
      %35 = arith.mulf %20, %34 : vector<32x128xf32>
      %36 = vector.broadcast %28 : vector<1x128xf32> to vector<32x128xf32>
      %37 = arith.mulf %23, %36 : vector<32x128xf32>
      %38 = arith.addf %35, %37 : vector<32x128xf32>
      %39 = vector.broadcast %33 : vector<1x128xf32> to vector<32x128xf32>
      %40 = arith.mulf %26, %39 : vector<32x128xf32>
      %41 = arith.addf %38, %40 : vector<32x128xf32>
      %42 = vector.broadcast %17 : vector<32x1xf32> to vector<32x128xf32>
      %43 = arith.addf %41, %42 : vector<32x128xf32>
      %cst_18 = arith.constant 0.000000e+00 : f32
      %44 = vector.broadcast %cst_18 : f32 to vector<32x128xf32>
      %45 = arith.cmpf ogt, %43, %44 : vector<32x128xf32>
      %cst_19 = arith.constant 0.00999999977 : f32
      %46 = vector.broadcast %cst_19 : f32 to vector<32x128xf32>
      %47 = arith.mulf %46, %43 : vector<32x128xf32>
      %48 = arith.select %45, %43, %47 : vector<32x128xi1>, vector<32x128xf32>
      %cst_20 = arith.constant 0.000000e+00 : f32
      %49 = vector.broadcast %cst_20 : f32 to vector<32x1xf32>
      %50 = vector.extract_strided_slice %48 {offsets = [0, 0], sizes = [32, 127], strides = [1, 1]} : vector<32x128xf32> to vector<32x127xf32>
      %51 = tpu.concatenate %49, %50 in 1 : vector<32x1xf32>, vector<32x127xf32> -> vector<32x128xf32>
      %52 = vector.extract_strided_slice %48 {offsets = [0, 1], sizes = [32, 127], strides = [1, 1]} : vector<32x128xf32> to vector<32x127xf32>
      %53 = tpu.concatenate %52, %49 in 1 : vector<32x127xf32>, vector<32x1xf32> -> vector<32x128xf32>
      %54 = tpu.concatenate %51, %48, %53 in 0 : vector<32x128xf32>, vector<32x128xf32>, vector<32x128xf32> -> vector<96x128xf32>
      %55 = vector.extract_strided_slice %27 {offsets = [1, 0], sizes = [1, 128], strides = [1, 1]} : vector<2x128xf32> to vector<1x128xf32>
      %cst_21 = arith.constant 0.000000e+00 : f32
      %56 = vector.broadcast %cst_21 : f32 to vector<1x1xf32>
      %57 = vector.extract_strided_slice %55 {offsets = [0, 0], sizes = [1, 127], strides = [1, 1]} : vector<1x128xf32> to vector<1x127xf32>
      %58 = tpu.concatenate %56, %57 in 1 : vector<1x1xf32>, vector<1x127xf32> -> vector<1x128xf32>
      %59 = vector.extract_strided_slice %55 {offsets = [0, 1], sizes = [1, 127], strides = [1, 1]} : vector<1x128xf32> to vector<1x127xf32>
      %60 = tpu.concatenate %59, %56 in 1 : vector<1x127xf32>, vector<1x1xf32> -> vector<1x128xf32>
      %61 = vector.broadcast %58 : vector<1x128xf32> to vector<32x128xf32>
      %62 = arith.mulf %20, %61 : vector<32x128xf32>
      %63 = vector.broadcast %55 : vector<1x128xf32> to vector<32x128xf32>
      %64 = arith.mulf %23, %63 : vector<32x128xf32>
      %65 = arith.addf %62, %64 : vector<32x128xf32>
      %66 = vector.broadcast %60 : vector<1x128xf32> to vector<32x128xf32>
      %67 = arith.mulf %26, %66 : vector<32x128xf32>
      %68 = arith.addf %65, %67 : vector<32x128xf32>
      %69 = vector.broadcast %17 : vector<32x1xf32> to vector<32x128xf32>
      %70 = arith.addf %68, %69 : vector<32x128xf32>
      %cst_22 = arith.constant 0.000000e+00 : f32
      %71 = vector.broadcast %cst_22 : f32 to vector<32x128xf32>
      %72 = arith.cmpf ogt, %70, %71 : vector<32x128xf32>
      %cst_23 = arith.constant 0.00999999977 : f32
      %73 = vector.broadcast %cst_23 : f32 to vector<32x128xf32>
      %74 = arith.mulf %73, %70 : vector<32x128xf32>
      %75 = arith.select %72, %70, %74 : vector<32x128xi1>, vector<32x128xf32>
      %cst_24 = arith.constant 0.000000e+00 : f32
      %76 = vector.broadcast %cst_24 : f32 to vector<32x1xf32>
      %77 = vector.extract_strided_slice %75 {offsets = [0, 0], sizes = [32, 127], strides = [1, 1]} : vector<32x128xf32> to vector<32x127xf32>
      %78 = tpu.concatenate %76, %77 in 1 : vector<32x1xf32>, vector<32x127xf32> -> vector<32x128xf32>
      %79 = vector.extract_strided_slice %75 {offsets = [0, 1], sizes = [32, 127], strides = [1, 1]} : vector<32x128xf32> to vector<32x127xf32>
      %80 = tpu.concatenate %79, %76 in 1 : vector<32x127xf32>, vector<32x1xf32> -> vector<32x128xf32>
      %81 = tpu.concatenate %78, %75, %80 in 0 : vector<32x128xf32>, vector<32x128xf32>, vector<32x128xf32> -> vector<96x128xf32>
      %82 = tpu.concatenate %54, %81 in 1 : vector<96x128xf32>, vector<96x128xf32> -> vector<96x256xf32>
      %83 = arith.truncf %82 : vector<96x256xf32> to vector<96x256xbf16>
      %c0_25 = arith.constant 0 : index
      %c0_26 = arith.constant 0 : index
      %84 = vector.load %arg4[%c0_25, %c0_26] : memref<64x96xbf16, #tpu.memory_space<vmem>>, vector<64x96xbf16>
      %cst_27 = arith.constant dense<0.000000e+00> : vector<64x256xf32>
      %85 = tpu.matmul %84, %83, %cst_27 {dimension_numbers = #tpu.dot_dimension_numbers<[1], [0], [0], [1], [0, 0, 1, 1], [], []>} : vector<64x96xbf16>, vector<96x256xbf16>, vector<64x256xf32> -> vector<64x256xf32>
      %c0_28 = arith.constant 0 : index
      %c0_29 = arith.constant 0 : index
      %86 = vector.load %arg5[%c0_28, %c0_29] : memref<64x1xf32, #tpu.memory_space<vmem>>, vector<64x1xf32>
      %87 = vector.broadcast %86 : vector<64x1xf32> to vector<64x256xf32>
      %88 = arith.addf %85, %87 : vector<64x256xf32>
      %cst_30 = arith.constant 0.000000e+00 : f32
      %89 = vector.broadcast %cst_30 : f32 to vector<64x256xf32>
      %90 = arith.cmpf ogt, %88, %89 : vector<64x256xf32>
      %cst_31 = arith.constant 0.00999999977 : f32
      %91 = vector.broadcast %cst_31 : f32 to vector<64x256xf32>
      %92 = arith.mulf %91, %88 : vector<64x256xf32>
      %93 = arith.select %90, %88, %92 : vector<64x256xi1>, vector<64x256xf32>
      %94 = vector.extract_strided_slice %93 {offsets = [0, 0], sizes = [64, 128], strides = [1, 1]} : vector<64x256xf32> to vector<64x128xf32>
      %95 = arith.truncf %94 : vector<64x128xf32> to vector<64x128xbf16>
      %c0_32 = arith.constant 0 : index
      %c0_33 = arith.constant 0 : index
      %c0_34 = arith.constant 0 : index
      %96 = vector.load %arg11[%c0_32, %c0_33, %c0_34] : memref<64x2x128xbf16, #tpu.memory_space<vmem>>, vector<64x1x128xbf16>
      %97 = vector.shape_cast %96 : vector<64x1x128xbf16> to vector<64x128xbf16>
      %98 = vector.shape_cast %95 : vector<64x128xbf16> to vector<64x1x128xbf16>
      tpu.vector_store %arg11[%c0_32, %c0_33, %c0_34], %98 {strides = array<i32>} : memref<64x2x128xbf16, #tpu.memory_space<vmem>>, vector<64x1x128xbf16>,
      %99 = vector.extract_strided_slice %93 {offsets = [0, 128], sizes = [64, 128], strides = [1, 1]} : vector<64x256xf32> to vector<64x128xf32>
      %100 = arith.truncf %99 : vector<64x128xf32> to vector<64x128xbf16>
      %c0_35 = arith.constant 0 : index
      %c1 = arith.constant 1 : index
      %c0_36 = arith.constant 0 : index
      %101 = vector.load %arg11[%c0_35, %c1, %c0_36] : memref<64x2x128xbf16, #tpu.memory_space<vmem>>, vector<64x1x128xbf16>
      %102 = vector.shape_cast %101 : vector<64x1x128xbf16> to vector<64x128xbf16>
      %103 = vector.shape_cast %100 : vector<64x128xbf16> to vector<64x1x128xbf16>
      tpu.vector_store %arg11[%c0_35, %c1, %c0_36], %103 {strides = array<i32>} : memref<64x2x128xbf16, #tpu.memory_space<vmem>>, vector<64x1x128xbf16>,
      %cst_37 = arith.constant 0.000000e+00 : f32
      %104 = vector.broadcast %cst_37 : f32 to vector<2x128xf32>
      %c0_38 = arith.constant 0 : index
      %c0_39 = arith.constant 0 : index
      %105 = vector.load %arg12[%c0_38, %c0_39] : memref<2x128xf32, #tpu.memory_space<vmem>>, vector<2x128xf32>
      tpu.vector_store %arg12[%c0_38, %c0_39], %104 {strides = array<i32>} : memref<2x128xf32, #tpu.memory_space<vmem>>, vector<2x128xf32>,
    } else {
    }
    %c16_i32 = arith.constant 16 : i32
    %3 = arith.muli %arg0, %c16_i32 : i32
    %4 = tpu.assume_multiple %3, 16 : i32
    %5 = arith.index_cast %4 : i32 to index
    %c0 = arith.constant 0 : index
    %c0_1 = arith.constant 0 : index
    %6 = vector.load %arg11[%5, %c0, %c0_1] : memref<64x2x128xbf16, #tpu.memory_space<vmem>>, vector<16x2x128xbf16>
    %c0_2 = arith.constant 0 : index
    %c0_3 = arith.constant 0 : index
    %c0_4 = arith.constant 0 : index
    %7 = vector.load %arg6[%c0_2, %c0_3, %c0_4] : memref<16x128x128xbf16, #tpu.memory_space<vmem>>, vector<16x128x128xbf16>
    "tpu.trace_start"() <{level = 10 : i32, message = "gbl,glh->gbh"}> : () -> ()
    %cst = arith.constant dense<0.000000e+00> : vector<16x2x128xf32>
    %8 = tpu.matmul %6, %7, %cst {dimension_numbers = #tpu.dot_dimension_numbers<[2], [1], [1], [2], [0, 0, 0, 1, 1, 2], [0], [0]>} : vector<16x2x128xbf16>, vector<16x128x128xbf16>, vector<16x2x128xf32> -> vector<16x2x128xf32>
    "tpu.trace_stop"() : () -> ()
    %c0_5 = arith.constant 0 : index
    %c0_6 = arith.constant 0 : index
    %9 = vector.load %arg12[%c0_5, %c0_6] : memref<2x128xf32, #tpu.memory_space<vmem>>, vector<2x128xf32>
    %cst_7 = arith.constant dense<0.000000e+00> : vector<2x128xf32>
    %10 = vector.multi_reduction <add>, %8, %cst_7 [0] : vector<16x2x128xf32> to vector<2x128xf32>
    %11 = arith.addf %9, %10 : vector<2x128xf32>
    %c0_8 = arith.constant 0 : index
    %c0_9 = arith.constant 0 : index
    %12 = vector.load %arg12[%c0_8, %c0_9] : memref<2x128xf32, #tpu.memory_space<vmem>>, vector<2x128xf32>
    tpu.vector_store %arg12[%c0_8, %c0_9], %11 {strides = array<i32>} : memref<2x128xf32, #tpu.memory_space<vmem>>, vector<2x128xf32>,
    %c3_i32 = arith.constant 3 : i32
    %13 = arith.cmpi eq, %arg0, %c3_i32 : i32
    %14 = arith.extui %13 : i1 to i32
    %c0_i32_10 = arith.constant 0 : i32
    %15 = arith.cmpi ne, %14, %c0_i32_10 : i32
    scf.if %15 {
      %c0_11 = arith.constant 0 : index
      %c0_12 = arith.constant 0 : index
      %16 = vector.load %arg12[%c0_11, %c0_12] : memref<2x128xf32, #tpu.memory_space<vmem>>, vector<2x128xf32>
      %c0_13 = arith.constant 0 : index
      %c0_14 = arith.constant 0 : index
      %17 = vector.load %arg7[%c0_13, %c0_14] : memref<1x128xf32, #tpu.memory_space<vmem>>, vector<1x128xf32>
      %18 = vector.broadcast %17 : vector<1x128xf32> to vector<2x128xf32>
      %19 = arith.addf %16, %18 : vector<2x128xf32>
      %cst_15 = arith.constant 0.000000e+00 : f32
      %20 = vector.broadcast %cst_15 : f32 to vector<2x128xf32>
      %21 = arith.cmpf ogt, %19, %20 : vector<2x128xf32>
      %cst_16 = arith.constant 0.00999999977 : f32
      %22 = vector.broadcast %cst_16 : f32 to vector<2x128xf32>
      %23 = arith.mulf %22, %19 : vector<2x128xf32>
      %24 = arith.select %21, %19, %23 : vector<2x128xi1>, vector<2x128xf32>
      %25 = arith.truncf %24 : vector<2x128xf32> to vector<2x128xbf16>
      %c0_17 = arith.constant 0 : index
      %c0_18 = arith.constant 0 : index
      %26 = vector.load %arg8[%c0_17, %c0_18] : memref<128x128xbf16, #tpu.memory_space<vmem>>, vector<128x128xbf16>
      %cst_19 = arith.constant dense<0.000000e+00> : vector<2x128xf32>
      %27 = tpu.matmul %25, %26, %cst_19 {dimension_numbers = #tpu.dot_dimension_numbers<[1], [0], [0], [1], [0, 0, 1, 1], [], []>} : vector<2x128xbf16>, vector<128x128xbf16>, vector<2x128xf32> -> vector<2x128xf32>
      %c0_20 = arith.constant 0 : index
      %c0_21 = arith.constant 0 : index
      %28 = vector.load %arg9[%c0_20, %c0_21] : memref<1x128xf32, #tpu.memory_space<vmem>>, vector<1x128xf32>
      %29 = vector.broadcast %28 : vector<1x128xf32> to vector<2x128xf32>
      %30 = arith.addf %27, %29 : vector<2x128xf32>
      %c0_22 = arith.constant 0 : index
      %c0_23 = arith.constant 0 : index
      %31 = vector.load %arg10[%c0_22, %c0_23] : memref<2x128xf32, #tpu.memory_space<vmem>>, vector<2x128xf32>
      tpu.vector_store %arg10[%c0_22, %c0_23], %30 {strides = array<i32>} : memref<2x128xf32, #tpu.memory_space<vmem>>, vector<2x128xf32>,
    } else {
    }
    return
  }
  func.func @transform_0(%arg0: i32) -> (i32, i32) {
    %c0_i32 = arith.constant 0 : i32
    %c0_i32_0 = arith.constant 0 : i32
    %c0_i32_1 = arith.constant 0 : i32
    return %c0_i32, %c0_i32_0 : i32, i32
  }
  func.func @transform_1(%arg0: i32) -> (i32, i32) {
    %c0_i32 = arith.constant 0 : i32
    %c0_i32_0 = arith.constant 0 : i32
    %c0_i32_1 = arith.constant 0 : i32
    return %c0_i32, %c0_i32_0 : i32, i32
  }
  func.func @transform_2(%arg0: i32) -> (i32, i32) {
    %c0_i32 = arith.constant 0 : i32
    %c0_i32_0 = arith.constant 0 : i32
    %c0_i32_1 = arith.constant 0 : i32
    return %c0_i32, %c0_i32_0 : i32, i32
  }
  func.func @transform_3(%arg0: i32) -> (i32, i32) {
    %c0_i32 = arith.constant 0 : i32
    %c0_i32_0 = arith.constant 0 : i32
    %c0_i32_1 = arith.constant 0 : i32
    return %c0_i32, %c0_i32_0 : i32, i32
  }
  func.func @transform_4(%arg0: i32) -> (i32, i32) {
    %c0_i32 = arith.constant 0 : i32
    %c0_i32_0 = arith.constant 0 : i32
    %c0_i32_1 = arith.constant 0 : i32
    return %c0_i32, %c0_i32_0 : i32, i32
  }
  func.func @transform_5(%arg0: i32) -> (i32, i32, i32) {
    %c0_i32 = arith.constant 0 : i32
    %c0_i32_0 = arith.constant 0 : i32
    %c0_i32_1 = arith.constant 0 : i32
    return %arg0, %c0_i32, %c0_i32_0 : i32, i32, i32
  }
  func.func @transform_6(%arg0: i32) -> (i32, i32) {
    %c0_i32 = arith.constant 0 : i32
    %c0_i32_0 = arith.constant 0 : i32
    %c0_i32_1 = arith.constant 0 : i32
    return %c0_i32, %c0_i32_0 : i32, i32
  }
  func.func @transform_7(%arg0: i32) -> (i32, i32) {
    %c0_i32 = arith.constant 0 : i32
    %c0_i32_0 = arith.constant 0 : i32
    %c0_i32_1 = arith.constant 0 : i32
    return %c0_i32, %c0_i32_0 : i32, i32
  }
  func.func @transform_8(%arg0: i32) -> (i32, i32) {
    %c0_i32 = arith.constant 0 : i32
    %c0_i32_0 = arith.constant 0 : i32
    %c0_i32_1 = arith.constant 0 : i32
    return %c0_i32, %c0_i32_0 : i32, i32
  }
  func.func @transform_9(%arg0: i32) -> (i32, i32) {
    %c0_i32 = arith.constant 0 : i32
    %c0_i32_0 = arith.constant 0 : i32
    %c0_i32_1 = arith.constant 0 : i32
    return %c0_i32, %c0_i32_0 : i32, i32
  }
}

</mosaic_0001>

<llo_original>
// kernel: cnn_forward.1
$region0: #{cnn_forward.1}
  #allocation0 [shape = 'u32[]', space=smem, size = 0x4, offset = 0x4, fixed_abs, tag = 'smem constant byte address 0x4 - core index']
  #allocation1 [shape = 'u32[144,128]{1,0:T(1,128)}', space=vmem, size = 0x12000, scoped, tag = 'internal scratch']
  #allocation2 [shape = 'bf16[64,2,128]{2,1,0:T(2,128)(2,1)}', space=vmem, size = 0x8000, scoped, tag = 'scratch operand']
  #allocation3 [shape = 'f32[2,128]{1,0:T(2,128)}', space=vmem, size = 0x400, scoped, tag = 'scratch operand']
  %s0 = inlined_call_operand.hbm [shape: f32[2,128], index: 0, kind: input, shape index: {}]
  %s1 = inlined_call_operand.vmem [shape: f32[32,3], index: 1, kind: input, shape index: {}]
  %s2 = inlined_call_operand.vmem [shape: f32[32,1], index: 2, kind: input, shape index: {}]
  %s3 = inlined_call_operand.hbm [shape: bf16[64,96], index: 3, kind: input, shape index: {}]
  %s4 = inlined_call_operand.vmem [shape: f32[64,1], index: 4, kind: input, shape index: {}]
  %s5 = inlined_call_operand.hbm [shape: bf16[64,128,128], index: 5, kind: input, shape index: {}]
  %s6 = inlined_call_operand.hbm [shape: f32[1,128], index: 6, kind: input, shape index: {}]
  %s7 = inlined_call_operand.hbm [shape: bf16[128,128], index: 7, kind: input, shape index: {}]
  %s8 = inlined_call_operand.hbm [shape: f32[1,128], index: 8, kind: input, shape index: {}]
  %s9 = inlined_call_operand.hbm [shape: f32[2,128], index: 9, kind: output, shape index: {}]
  %s10 = sld [smem:[#allocation0]]
  $region101: #{cnn_forward.1} parent=0
    _
  %s12 = ssub.s32 1, %s10
  %s13 = scalar_select 0, %s12, %s10
  $region1: #{cnn_forward.1} parent=0
    #allocation4 [shape = 'u8[1024]{0}', space=vmem, size = 0x400, scoped, tag = 'input window, operand 0, single buffered']
    #allocation5 [shape = 's32[2]{0}', space=sflag, size = 0x8, scoped, tag = 'scoped memory for cnn_forward.1']
    #allocation6 [shape = 's32[2]{0}', space=sflag, size = 0x8, scoped, tag = 'scoped memory for cnn_forward.1']
    #allocation7 [shape = 'u8[16384]{0}', space=vmem, size = 0x4000, scoped, tag = 'input window, operand 3, single buffered']
    #allocation8 [shape = 's32[1]{0}', space=sflag, size = 0x4, scoped, tag = 'scoped memory for cnn_forward.1']
    #allocation9 [shape = 'u8[1048576]{0}', space=vmem, size = 0x100000, scoped, tag = 'input window, operand 5']
    #allocation10 [shape = 'u8[512]{0}', space=vmem, size = 0x400, scoped, tag = 'input window, operand 6, single buffered']
    #allocation11 [shape = 'u8[32768]{0}', space=vmem, size = 0x8000, scoped, tag = 'input window, operand 7, single buffered']
    #allocation12 [shape = 's32[1]{0}', space=sflag, size = 0x4, scoped, tag = 'scoped memory for cnn_forward.1']
    #allocation13 [shape = 'u8[512]{0}', space=vmem, size = 0x400, scoped, tag = 'input window, operand 8, single buffered']
    #allocation14 [shape = 'u8[1024]{0}', space=vmem, size = 0x400, scoped, tag = 'output window, operand 0, single buffered']
    %14 = vsyncpa [#allocation5], 0
    %15 = vsyncpa [#allocation8], 0
    %16 = vsyncpa [#allocation12], 0
    %17 = vsyncpa [#allocation6], 0
    loop: start=0, step=1, limit=6
    $region2: #{cnn_forward.1} parent=1 // loop_pre_header
      _
    $region3: #{cnn_forward.1} parent=1 // loop_header
      %s19 = sphi 0, %s23
      %p20 = scmp.ge.s32.totalorder %s19, 6
      %s27 = sphi 0, %s27
      %s29 = sphi 0, %s27
      %s30 = sphi 0, %s29
      %s44 = sphi 0, %s30
      %s48 = sphi 0, %s48
      %s50 = sphi 0, %s48
      %s51 = sphi 0, %s50
      %s65 = sphi 0, %s51
      %s69 = sphi 0, %s69
      %s71 = sphi 0, %s69
      %s72 = sphi 0, %s71
      %s86 = sphi 0, %s72
      %s90 = sphi 0, %s90
      %s92 = sphi 0, %s90
      %s93 = sphi 0, %s92
      %s107 = sphi 0, %s93
      %s111 = sphi 0, %s111
      %s113 = sphi 0, %s111
      %s114 = sphi 0, %s113
      %s128 = sphi 0, %s114
      %s134 = sphi 0, %s136
      %s137 = sphi 0, %s134
      %s138 = sphi 0, %s137
      %s154 = sphi 0, %s138
      %s158 = sphi 0, %s158
      %s160 = sphi 0, %s158
      %s161 = sphi 0, %s160
      %s175 = sphi 0, %s161
      %s179 = sphi 0, %s179
      %s181 = sphi 0, %s179
      %s182 = sphi 0, %s181
      %s196 = sphi 0, %s182
      %s200 = sphi 0, %s200
      %s202 = sphi 0, %s200
      %s203 = sphi 0, %s202
      %s217 = sphi 0, %s203
      %s221 = sphi 0, %s221
      %s223 = sphi 0, %s221
      %s224 = sphi 0, %s223
      %s238 = sphi 0, %s224
    $region4: #{cnn_forward.1} parent=1 // loop_header_branch
      %22 = sbr.rel (%p20) target = $region8
    $region5: #{cnn_forward.1} parent=1 // loop_body
      %s24 = ssub.s32 %s19, 1
      %s25 = ssub.s32 %s19, 2
      %s26 = sadd.s32 %s19, 1
      %s28 = sadd.s32 %s27, 1
      %p31 = scmp.eq.s32.totalorder %s19, 3
      %p32 = scmp.ne.s32.totalorder %s27, %s29
      %p33 = scmp.eq.s32.totalorder %s19, 0
      %p34 = por %p32, %p33
      %p35 = scmp.ne.s32.totalorder %s27, %s29
      %p36 = scmp.eq.s32.totalorder %s24, 3
      %p37 = por %p35, %p36
      %p38 = scmp.ne.s32.totalorder %s29, %s30
      %p39 = scmp.eq.s32.totalorder %s24, 0
      %p40 = por %p38, %p39
      %p41 = scmp.ne.s32.totalorder %s29, %s30
      %p42 = scmp.eq.s32.totalorder %s25, 3
      %p43 = por %p41, %p42
      %p45 = scmp.ne.s32.totalorder %s30, %s44
      %p46 = scmp.eq.s32.totalorder %s25, 0
      %p47 = por %p45, %p46
      %s49 = sadd.s32 %s48, 1
      %p52 = scmp.eq.s32.totalorder %s19, 3
      %p53 = scmp.ne.s32.totalorder %s48, %s50
      %p54 = scmp.eq.s32.totalorder %s19, 0
      %p55 = por %p53, %p54
      %p56 = scmp.ne.s32.totalorder %s48, %s50
      %p57 = scmp.eq.s32.totalorder %s24, 3
      %p58 = por %p56, %p57
      %p59 = scmp.ne.s32.totalorder %s50, %s51
      %p60 = scmp.eq.s32.totalorder %s24, 0
      %p61 = por %p59, %p60
      %p62 = scmp.ne.s32.totalorder %s50, %s51
      %p63 = scmp.eq.s32.totalorder %s25, 3
      %p64 = por %p62, %p63
      %p66 = scmp.ne.s32.totalorder %s51, %s65
      %p67 = scmp.eq.s32.totalorder %s25, 0
      %p68 = por %p66, %p67
      %s70 = sadd.s32 %s69, 1
      %p73 = scmp.eq.s32.totalorder %s19, 3
      %p74 = scmp.ne.s32.totalorder %s69, %s71
      %p75 = scmp.eq.s32.totalorder %s19, 0
      %p76 = por %p74, %p75
      %p77 = scmp.ne.s32.totalorder %s69, %s71
      %p78 = scmp.eq.s32.totalorder %s24, 3
      %p79 = por %p77, %p78
      %p80 = scmp.ne.s32.totalorder %s71, %s72
      %p81 = scmp.eq.s32.totalorder %s24, 0
      %p82 = por %p80, %p81
      %p83 = scmp.ne.s32.totalorder %s71, %s72
      %p84 = scmp.eq.s32.totalorder %s25, 3
      %p85 = por %p83, %p84
      %p87 = scmp.ne.s32.totalorder %s72, %s86
      %p88 = scmp.eq.s32.totalorder %s25, 0
      %p89 = por %p87, %p88
      %s91 = sadd.s32 %s90, 1
      %p94 = scmp.eq.s32.totalorder %s19, 3
      %p95 = scmp.ne.s32.totalorder %s90, %s92
      %p96 = scmp.eq.s32.totalorder %s19, 0
      %p97 = por %p95, %p96
      %p98 = scmp.ne.s32.totalorder %s90, %s92
      %p99 = scmp.eq.s32.totalorder %s24, 3
      %p100 = por %p98, %p99
      %p101 = scmp.ne.s32.totalorder %s92, %s93
      %p102 = scmp.eq.s32.totalorder %s24, 0
      %p103 = por %p101, %p102
      %p104 = scmp.ne.s32.totalorder %s92, %s93
      %p105 = scmp.eq.s32.totalorder %s25, 3
      %p106 = por %p104, %p105
      %p108 = scmp.ne.s32.totalorder %s93, %s107
      %p109 = scmp.eq.s32.totalorder %s25, 0
      %p110 = por %p108, %p109
      %s112 = sadd.s32 %s111, 1
      %p115 = scmp.eq.s32.totalorder %s19, 3
      %p116 = scmp.ne.s32.totalorder %s111, %s113
      %p117 = scmp.eq.s32.totalorder %s19, 0
      %p118 = por %p116, %p117
      %p119 = scmp.ne.s32.totalorder %s111, %s113
      %p120 = scmp.eq.s32.totalorder %s24, 3
      %p121 = por %p119, %p120
      %p122 = scmp.ne.s32.totalorder %s113, %s114
      %p123 = scmp.eq.s32.totalorder %s24, 0
      %p124 = por %p122, %p123
      %p125 = scmp.ne.s32.totalorder %s113, %s114
      %p126 = scmp.eq.s32.totalorder %s25, 3
      %p127 = por %p125, %p126
      %p129 = scmp.ne.s32.totalorder %s114, %s128
      %p130 = scmp.eq.s32.totalorder %s25, 0
      %p131 = por %p129, %p130
      %s132 = ssub.s32 %s19, %s26
      %p133 = scmp.eq.s32.totalorder %s132, 0
      %s135 = sadd.s32 %s134, 1
      %s136 = scalar_select %p133, %s134, %s135
      %p139 = pneg %p133
      %p140 = scmp.eq.s32.totalorder %s19, 3
      %p141 = por %p139, %p140
      %p142 = scmp.ne.s32.totalorder %s134, %s137
      %p143 = scmp.eq.s32.totalorder %s19, 0
      %p144 = por %p142, %p143
      %p145 = scmp.ne.s32.totalorder %s134, %s137
      %p146 = scmp.eq.s32.totalorder %s24, 3
      %p147 = por %p145, %p146
      %p148 = scmp.ne.s32.totalorder %s137, %s138
      %p149 = scmp.eq.s32.totalorder %s24, 0
      %p150 = por %p148, %p149
      %p151 = scmp.ne.s32.totalorder %s137, %s138
      %p152 = scmp.eq.s32.totalorder %s25, 3
      %p153 = por %p151, %p152
      %p155 = scmp.ne.s32.totalorder %s138, %s154
      %p156 = scmp.eq.s32.totalorder %s25, 0
      %p157 = por %p155, %p156
      %s159 = sadd.s32 %s158, 1
      %p162 = scmp.eq.s32.totalorder %s19, 3
      %p163 = scmp.ne.s32.totalorder %s158, %s160
      %p164 = scmp.eq.s32.totalorder %s19, 0
      %p165 = por %p163, %p164
      %p166 = scmp.ne.s32.totalorder %s158, %s160
      %p167 = scmp.eq.s32.totalorder %s24, 3
      %p168 = por %p166, %p167
      %p169 = scmp.ne.s32.totalorder %s160, %s161
      %p170 = scmp.eq.s32.totalorder %s24, 0
      %p171 = por %p169, %p170
      %p172 = scmp.ne.s32.totalorder %s160, %s161
      %p173 = scmp.eq.s32.totalorder %s25, 3
      %p174 = por %p172, %p173
      %p176 = scmp.ne.s32.totalorder %s161, %s175
      %p177 = scmp.eq.s32.totalorder %s25, 0
      %p178 = por %p176, %p177
      %s180 = sadd.s32 %s179, 1
      %p183 = scmp.eq.s32.totalorder %s19, 3
      %p184 = scmp.ne.s32.totalorder %s179, %s181
      %p185 = scmp.eq.s32.totalorder %s19, 0
      %p186 = por %p184, %p185
      %p187 = scmp.ne.s32.totalorder %s179, %s181
      %p188 = scmp.eq.s32.totalorder %s24, 3
      %p189 = por %p187, %p188
      %p190 = scmp.ne.s32.totalorder %s181, %s182
      %p191 = scmp.eq.s32.totalorder %s24, 0
      %p192 = por %p190, %p191
      %p193 = scmp.ne.s32.totalorder %s181, %s182
      %p194 = scmp.eq.s32.totalorder %s25, 3
      %p195 = por %p193, %p194
      %p197 = scmp.ne.s32.totalorder %s182, %s196
      %p198 = scmp.eq.s32.totalorder %s25, 0
      %p199 = por %p197, %p198
      %s201 = sadd.s32 %s200, 1
      %p204 = scmp.eq.s32.totalorder %s19, 3
      %p205 = scmp.ne.s32.totalorder %s200, %s202
      %p206 = scmp.eq.s32.totalorder %s19, 0
      %p207 = por %p205, %p206
      %p208 = scmp.ne.s32.totalorder %s200, %s202
      %p209 = scmp.eq.s32.totalorder %s24, 3
      %p210 = por %p208, %p209
      %p211 = scmp.ne.s32.totalorder %s202, %s203
      %p212 = scmp.eq.s32.totalorder %s24, 0
      %p213 = por %p211, %p212
      %p214 = scmp.ne.s32.totalorder %s202, %s203
      %p215 = scmp.eq.s32.totalorder %s25, 3
      %p216 = por %p214, %p215
      %p218 = scmp.ne.s32.totalorder %s203, %s217
      %p219 = scmp.eq.s32.totalorder %s25, 0
      %p220 = por %p218, %p219
      %s222 = sadd.s32 %s221, 1
      %p225 = scmp.eq.s32.totalorder %s19, 3
      %p226 = scmp.ne.s32.totalorder %s221, %s223
      %p227 = scmp.eq.s32.totalorder %s19, 0
      %p228 = por %p226, %p227
      %p229 = scmp.ne.s32.totalorder %s221, %s223
      %p230 = scmp.eq.s32.totalorder %s24, 3
      %p231 = por %p229, %p230
      %p232 = scmp.ne.s32.totalorder %s223, %s224
      %p233 = scmp.eq.s32.totalorder %s24, 0
      %p234 = por %p232, %p233
      %p235 = scmp.ne.s32.totalorder %s223, %s224
      %p236 = scmp.eq.s32.totalorder %s25, 3
      %p237 = por %p235, %p236
      %p239 = scmp.ne.s32.totalorder %s224, %s238
      %p240 = scmp.eq.s32.totalorder %s25, 0
      %p241 = por %p239, %p240
      %p242 = scmp.le.s32.totalorder 1, %s19
      %p243 = scmp.lt.s32.totalorder %s19, 5
      %p244 = pnand %p242, %p243
      %p245 = pneg %p244
      // Predicated region
      $region9: #{cnn_forward.1} parent=5 // pred_check
        _
      $region10: #{cnn_forward.1} parent=5 // pred_check_branch
        %247 = sbr.rel (%p244) target = $region12
      $region11: #{cnn_forward.1} parent=5 // pred_region
        %s248 = ssub.s32 %s19, 1
        // Predicated region
        $region13: #{cnn_forward.1} parent=11 // pred_check
          %p249 = pneg %p40
        $region14: #{cnn_forward.1} parent=11 // pred_check_branch
          %251 = sbr.rel (%p249) target = $region16
        $region15: #{cnn_forward.1} parent=11 // pred_region
          %s253 = ssub.s32 32, 32
          %254 = vsyncadd [#allocation5], %s253
          %s256 = sshll.u32 [#allocation4], 4
          %s257 = int_to_ptr.vmem [resolvable:$true] %s256
          %259 = dma.hbm_to_vmem [thread:$0]  %s0, 32, %s257, [#allocation5]
        $region16: #{cnn_forward.1} parent=11 // pred_fallthru
          _
        // Predicated region
        $region17: #{cnn_forward.1} parent=11 // pred_check
          %p260 = pneg %p61
        $region18: #{cnn_forward.1} parent=11 // pred_check_branch
          %262 = sbr.rel (%p260) target = $region20
        $region19: #{cnn_forward.1} parent=11 // pred_region
          _
        $region20: #{cnn_forward.1} parent=11 // pred_fallthru
          _
        // Predicated region
        $region21: #{cnn_forward.1} parent=11 // pred_check
          %p263 = pneg %p82
        $region22: #{cnn_forward.1} parent=11 // pred_check_branch
          %265 = sbr.rel (%p263) target = $region24
        $region23: #{cnn_forward.1} parent=11 // pred_region
          _
        $region24: #{cnn_forward.1} parent=11 // pred_fallthru
          _
        // Predicated region
        $region25: #{cnn_forward.1} parent=11 // pred_check
          %p266 = pneg %p103
        $region26: #{cnn_forward.1} parent=11 // pred_check_branch
          %268 = sbr.rel (%p266) target = $region28
        $region27: #{cnn_forward.1} parent=11 // pred_region
          %s270 = ssub.s32 512, 512
          %271 = vsyncadd [#allocation8], %s270
          %s272 = sshll.u32 [#allocation7], 4
          %s273 = int_to_ptr.vmem [resolvable:$true] %s272
          %278 = dma.hbm_to_vmem [thread:$0]  %s3, 512, %s273, [#allocation8], 64, 64, 4
        $region28: #{cnn_forward.1} parent=11 // pred_fallthru
          _
        // Predicated region
        $region29: #{cnn_forward.1} parent=11 // pred_check
          %p279 = pneg %p124
        $region30: #{cnn_forward.1} parent=11 // pred_check_branch
          %281 = sbr.rel (%p279) target = $region32
        $region31: #{cnn_forward.1} parent=11 // pred_region
          _
        $region32: #{cnn_forward.1} parent=11 // pred_fallthru
          _
        // Predicated region
        $region33: #{cnn_forward.1} parent=11 // pred_check
          %p282 = pneg %p171
        $region34: #{cnn_forward.1} parent=11 // pred_check_branch
          %284 = sbr.rel (%p282) target = $region36
        $region35: #{cnn_forward.1} parent=11 // pred_region
          %s286 = ssub.s32 16, 16
          %287 = vsyncadd [#allocation8], %s286
          %s289 = sshll.u32 [#allocation10], 4
          %s290 = int_to_ptr.vmem [resolvable:$true] %s289
          %292 = dma.hbm_to_vmem [thread:$0]  %s6, 16, %s290, [#allocation8]
        $region36: #{cnn_forward.1} parent=11 // pred_fallthru
          _
        // Predicated region
        $region37: #{cnn_forward.1} parent=11 // pred_check
          %p293 = pneg %p192
        $region38: #{cnn_forward.1} parent=11 // pred_check_branch
          %295 = sbr.rel (%p293) target = $region40
        $region39: #{cnn_forward.1} parent=11 // pred_region
          %s297 = ssub.s32 1024, 1024
          %298 = vsyncadd [#allocation12], %s297
          %s299 = sshll.u32 [#allocation11], 4
          %s300 = int_to_ptr.vmem [resolvable:$true] %s299
          %305 = dma.hbm_to_vmem [thread:$0]  %s7, 1024, %s300, [#allocation12], 64, 64, 4
        $region40: #{cnn_forward.1} parent=11 // pred_fallthru
          _
        // Predicated region
        $region41: #{cnn_forward.1} parent=11 // pred_check
          %p306 = pneg %p213
        $region42: #{cnn_forward.1} parent=11 // pred_check_branch
          %308 = sbr.rel (%p306) target = $region44
        $region43: #{cnn_forward.1} parent=11 // pred_region
          %s310 = ssub.s32 16, 16
          %311 = vsyncadd [#allocation12], %s310
          %s313 = sshll.u32 [#allocation13], 4
          %s314 = int_to_ptr.vmem [resolvable:$true] %s313
          %316 = dma.hbm_to_vmem [thread:$0]  %s8, 16, %s314, [#allocation12]
        $region44: #{cnn_forward.1} parent=11 // pred_fallthru
          _
      $region12: #{cnn_forward.1} parent=5 // pred_fallthru
        _
      %p317 = scmp.lt.s32.totalorder %s19, 4
      // Predicated region
      $region45: #{cnn_forward.1} parent=5 // pred_check
        %p318 = pneg %p317
      $region46: #{cnn_forward.1} parent=5 // pred_check_branch
        %320 = sbr.rel (%p318) target = $region48
      $region47: #{cnn_forward.1} parent=5 // pred_region
        // Predicated region
        $region49: #{cnn_forward.1} parent=47 // pred_check
          %p321 = pneg %p144
        $region50: #{cnn_forward.1} parent=47 // pred_check_branch
          %323 = sbr.rel (%p321) target = $region52
        $region51: #{cnn_forward.1} parent=47 // pred_region
          %s324 = sand.u32 %s19, 1
          %s325 = scalar_lea.sflag [#allocation5], %s324
          %s326 = sand.u32 %s134, 1
          %s327 = smul.addr %s326, 1024
          %s328 = scalar_lea.vmem [#allocation9], %s327
          %s329 = smul.u32 16, %s19
          %s331 = ssub.s32 16384, 16384
          %332 = vsyncadd %s325, %s331
          %s333 = smul.addr %s329, 16
          %s334 = smul.addr %s333, 64
          %s335 = scalar_lea.hbm %s5, %s334
          %s336 = sshll.u32 %s328, 4
          %s337 = int_to_ptr.vmem [resolvable:$true] %s336
          %342 = dma.hbm_to_vmem [thread:$0]  %s335, 16384, %s337, %s325, 64, 64, 4
        $region52: #{cnn_forward.1} parent=47 // pred_fallthru
          _
      $region48: #{cnn_forward.1} parent=5 // pred_fallthru
        _
      %p343 = scmp.le.s32.totalorder 1, %s19
      %p344 = scmp.lt.s32.totalorder %s19, 5
      %p345 = pnand %p343, %p344
      %p346 = pneg %p345
      // Predicated region
      $region53: #{cnn_forward.1} parent=5 // pred_check
        _
      $region54: #{cnn_forward.1} parent=5 // pred_check_branch
        %348 = sbr.rel (%p345) target = $region56
      $region55: #{cnn_forward.1} parent=5 // pred_region
        %s349 = ssub.s32 %s19, 1
        // Predicated region
        $region57: #{cnn_forward.1} parent=55 // pred_check
          %p350 = pneg %p40
        $region58: #{cnn_forward.1} parent=55 // pred_check_branch
          %352 = sbr.rel (%p350) target = $region60
        $region59: #{cnn_forward.1} parent=55 // pred_region
          %353 = dma.done [#allocation5], 32
        $region60: #{cnn_forward.1} parent=55 // pred_fallthru
          _
        // Predicated region
        $region61: #{cnn_forward.1} parent=55 // pred_check
          %p354 = pneg %p103
        $region62: #{cnn_forward.1} parent=55 // pred_check_branch
          %356 = sbr.rel (%p354) target = $region64
        $region63: #{cnn_forward.1} parent=55 // pred_region
          %357 = dma.done [#allocation8], 512
        $region64: #{cnn_forward.1} parent=55 // pred_fallthru
          _
        %s358 = sand.u32 %s24, 1
        %s359 = scalar_lea.sflag [#allocation5], %s358
        %s360 = sand.u32 %s137, 1
        %s361 = smul.addr %s360, 1024
        %s362 = scalar_lea.vmem [#allocation9], %s361
        // Predicated region
        $region65: #{cnn_forward.1} parent=55 // pred_check
          %p363 = pneg %p150
        $region66: #{cnn_forward.1} parent=55 // pred_check_branch
          %365 = sbr.rel (%p363) target = $region68
        $region67: #{cnn_forward.1} parent=55 // pred_region
          %366 = dma.done %s359, 16384
        $region68: #{cnn_forward.1} parent=55 // pred_fallthru
          _
        // Predicated region
        $region69: #{cnn_forward.1} parent=55 // pred_check
          %p367 = pneg %p171
        $region70: #{cnn_forward.1} parent=55 // pred_check_branch
          %369 = sbr.rel (%p367) target = $region72
        $region71: #{cnn_forward.1} parent=55 // pred_region
          %370 = dma.done [#allocation8], 16
        $region72: #{cnn_forward.1} parent=55 // pred_fallthru
          _
        // Predicated region
        $region73: #{cnn_forward.1} parent=55 // pred_check
          %p371 = pneg %p192
        $region74: #{cnn_forward.1} parent=55 // pred_check_branch
          %373 = sbr.rel (%p371) target = $region76
        $region75: #{cnn_forward.1} parent=55 // pred_region
          %374 = dma.done [#allocation12], 1024
        $region76: #{cnn_forward.1} parent=55 // pred_fallthru
          _
        // Predicated region
        $region77: #{cnn_forward.1} parent=55 // pred_check
          %p375 = pneg %p213
        $region78: #{cnn_forward.1} parent=55 // pred_check_branch
          %377 = sbr.rel (%p375) target = $region80
        $region79: #{cnn_forward.1} parent=55 // pred_region
          %378 = dma.done [#allocation12], 16
        $region80: #{cnn_forward.1} parent=55 // pred_fallthru
          _
        %p379 = pneg %p40
        %p380 = pneg %p37
        %p381 = pneg %p61
        %p382 = pneg %p58
        %p383 = pneg %p82
        %p384 = pneg %p79
        %p385 = pneg %p103
        %p386 = pneg %p100
        %p387 = pneg %p124
        %p388 = pneg %p121
        %s389 = sand.u32 %s24, 1
        %s390 = scalar_lea.sflag [#allocation5], %s389
        %s391 = sand.u32 %s137, 1
        %s392 = smul.addr %s391, 1024
        %s393 = scalar_lea.vmem [#allocation9], %s392
        %p394 = pneg %p150
        %p395 = pneg %p147
        %p396 = pneg %p171
        %p397 = pneg %p168
        %p398 = pneg %p192
        %p399 = pneg %p189
        %p400 = pneg %p213
        %p401 = pneg %p210
        %p402 = pneg %p234
        %p403 = pneg %p231
        %s404 = smul.u32 16, %s24
        %p406 = scmp.eq.s32.totalorder %s24, 0
        // Predicated region
        $region81: #{cnn_forward.1} parent=55 // pred_check
          %p407 = pneg %p406
        $region82: #{cnn_forward.1} parent=55 // pred_check_branch
          %409 = sbr.rel (%p407) target = $region84
        $region83: #{cnn_forward.1} parent=55 // pred_region
          %v410 = vld [vmem:[%s1] sm:$0xff]
          %v411 = vld [vmem:[%s1 + $0x8] sm:$0xff]
          %v412 = vld [vmem:[%s1 + $0x10] sm:$0xff]
          %v413 = vld [vmem:[%s1 + $0x18] sm:$0xff]
          %v414 = vld [vmem:[%s2] sm:$0xff]
          %v415 = vld [vmem:[%s2 + $0x8] sm:$0xff]
          %v416 = vld [vmem:[%s2 + $0x10] sm:$0xff]
          %v417 = vld [vmem:[%s2 + $0x18] sm:$0xff]
          %419 = vset.pattern.permute.xlu0 0
          %420 = vperm.xlu0 %419, %v410
          %v421 = vpop.permute.xlu0 %420
          %424 = vset.pattern.permute.xlu0 0
          %425 = vperm.xlu0 %424, %v411
          %v426 = vpop.permute.xlu0 %425
          %429 = vset.pattern.permute.xlu0 0
          %430 = vperm.xlu0 %429, %v412
          %v431 = vpop.permute.xlu0 %430
          %434 = vset.pattern.permute.xlu0 0
          %435 = vperm.xlu0 %434, %v413
          %v436 = vpop.permute.xlu0 %435
          %438 = vset.pattern.permute.xlu0 1
          %439 = vperm.xlu0 %438, %v410
          %v440 = vpop.permute.xlu0 %439
          %442 = vset.pattern.permute.xlu0 1
          %443 = vperm.xlu0 %442, %v411
          %v444 = vpop.permute.xlu0 %443
          %446 = vset.pattern.permute.xlu0 1
          %447 = vperm.xlu0 %446, %v412
          %v448 = vpop.permute.xlu0 %447
          %450 = vset.pattern.permute.xlu0 1
          %451 = vperm.xlu0 %450, %v413
          %v452 = vpop.permute.xlu0 %451
          %454 = vset.pattern.permute.xlu0 2
          %455 = vperm.xlu0 %454, %v410
          %v456 = vpop.permute.xlu0 %455
          %458 = vset.pattern.permute.xlu0 2
          %459 = vperm.xlu0 %458, %v411
          %v460 = vpop.permute.xlu0 %459
          %462 = vset.pattern.permute.xlu0 2
          %463 = vperm.xlu0 %462, %v412
          %v464 = vpop.permute.xlu0 %463
          %466 = vset.pattern.permute.xlu0 2
          %467 = vperm.xlu0 %466, %v413
          %v468 = vpop.permute.xlu0 %467
          %v470 = vld [vmem:[#allocation4] sm:$0x3]
          %472 = vrot.lane.b32.xlu0 %v470, 1
          %v473 = vpop.permute.xlu0 %472
          %vm475 = vcmask 7168
          %v476 = vsel %vm475, 0.0, %v473
          %477 = vrot.lane.b32.xlu0 %v470, 127
          %v478 = vpop.permute.xlu0 %477
          %vm480 = vcmask 1039360
          %v481 = vsel %vm480, %v478, 0.0
          %v482 = vlaneseq
          %v483 = vshrl.u32 %v482, 7
          %v484 = vsub.s32 0, %v483
          %v485 = vrot.slane %v476, %v484
          %v486 = vmul.f32 %v421, %v485
          %v487 = vmul.f32 %v426, %v485
          %v488 = vmul.f32 %v431, %v485
          %v489 = vmul.f32 %v436, %v485
          %v490 = vlaneseq
          %v491 = vshrl.u32 %v490, 7
          %v492 = vsub.s32 0, %v491
          %v493 = vrot.slane %v470, %v492
          %v494 = vmul.f32 %v440, %v493
          %v495 = vmul.f32 %v444, %v493
          %v496 = vmul.f32 %v448, %v493
          %v497 = vmul.f32 %v452, %v493
          %v498 = vadd.f32 %v486, %v494
          %v499 = vadd.f32 %v487, %v495
          %v500 = vadd.f32 %v488, %v496
          %v501 = vadd.f32 %v489, %v497
          %v502 = vlaneseq
          %v503 = vshrl.u32 %v502, 7
          %v504 = vsub.s32 0, %v503
          %v505 = vrot.slane %v481, %v504
          %v506 = vmul.f32 %v456, %v505
          %v507 = vmul.f32 %v460, %v505
          %v508 = vmul.f32 %v464, %v505
          %v509 = vmul.f32 %v468, %v505
          %v510 = vadd.f32 %v498, %v506
          %v511 = vadd.f32 %v499, %v507
          %v512 = vadd.f32 %v500, %v508
          %v513 = vadd.f32 %v501, %v509
          %515 = vset.pattern.permute.xlu0 0
          %516 = vperm.xlu0 %515, %v414
          %v517 = vpop.permute.xlu0 %516
          %520 = vset.pattern.permute.xlu0 0
          %521 = vperm.xlu0 %520, %v415
          %v522 = vpop.permute.xlu0 %521
          %525 = vset.pattern.permute.xlu0 0
          %526 = vperm.xlu0 %525, %v416
          %v527 = vpop.permute.xlu0 %526
          %530 = vset.pattern.permute.xlu0 0
          %531 = vperm.xlu0 %530, %v417
          %v532 = vpop.permute.xlu0 %531
          %v534 = vadd.f32 %v510, %v517
          %v535 = vadd.f32 %v511, %v522
          %v536 = vadd.f32 %v512, %v527
          %v537 = vadd.f32 %v513, %v532
          %vm538 = vcmp.gt.f32.partialorder %v534, 0.0
          %vm539 = vcmp.gt.f32.partialorder %v535, 0.0
          %vm540 = vcmp.gt.f32.partialorder %v536, 0.0
          %vm541 = vcmp.gt.f32.partialorder %v537, 0.0
          %v542 = vmul.f32 %v534, 0.01
          %v543 = vmul.f32 %v535, 0.01
          %v544 = vmul.f32 %v536, 0.01
          %v545 = vmul.f32 %v537, 0.01
          %v546 = vsel %vm538, %v534, %v542
          %v547 = vsel %vm539, %v535, %v543
          %v548 = vsel %vm540, %v536, %v544
          %v549 = vsel %vm541, %v537, %v545
          %554 = vrot.lane.b32.xlu0 %v546, 1
          %v555 = vpop.permute.xlu0 %554
          %556 = vrot.lane.b32.xlu0 %v547, 1
          %v557 = vpop.permute.xlu0 %556
          %558 = vrot.lane.b32.xlu0 %v548, 1
          %v559 = vpop.permute.xlu0 %558
          %560 = vrot.lane.b32.xlu0 %v549, 1
          %v561 = vpop.permute.xlu0 %560
          %v566 = vsel %vm475, 0.0, %v555
          %v567 = vsel %vm475, 0.0, %v557
          %v568 = vsel %vm475, 0.0, %v559
          %v569 = vsel %vm475, 0.0, %v561
          %570 = vrot.lane.b32.xlu0 %v546, 127
          %v571 = vpop.permute.xlu0 %570
          %572 = vrot.lane.b32.xlu0 %v547, 127
          %v573 = vpop.permute.xlu0 %572
          %574 = vrot.lane.b32.xlu0 %v548, 127
          %v575 = vpop.permute.xlu0 %574
          %576 = vrot.lane.b32.xlu0 %v549, 127
          %v577 = vpop.permute.xlu0 %576
          %v582 = vsel %vm480, %v571, 0.0
          %v583 = vsel %vm480, %v573, 0.0
          %v584 = vsel %vm480, %v575, 0.0
          %v585 = vsel %vm480, %v577, 0.0
          %v586 = vrot.slane %v470, 1
          %587 = vrot.lane.b32.xlu0 %v586, 1
          %v588 = vpop.permute.xlu0 %587
          %v590 = vsel %vm475, 0.0, %v588
          %v591 = vlaneseq
          %v592 = vshrl.u32 %v591, 7
          %v593 = vsub.s32 0, %v592
          %v594 = vrot.slane %v590, %v593
          %v595 = vmul.f32 %v421, %v594
          %v596 = vmul.f32 %v426, %v594
          %v597 = vmul.f32 %v431, %v594
          %v598 = vmul.f32 %v436, %v594
          %v599 = vlaneseq
          %v600 = vshrl.u32 %v599, 7
          %v601 = vsub.s32 1, %v600
          %v602 = vrot.slane %v470, %v601
          %v603 = vmul.f32 %v440, %v602
          %v604 = vmul.f32 %v444, %v602
          %v605 = vmul.f32 %v448, %v602
          %v606 = vmul.f32 %v452, %v602
          %v607 = vadd.f32 %v595, %v603
          %v608 = vadd.f32 %v596, %v604
          %v609 = vadd.f32 %v597, %v605
          %v610 = vadd.f32 %v598, %v606
          %v611 = vlaneseq
          %v612 = vshrl.u32 %v611, 7
          %v613 = vsub.s32 1, %v612
          %v614 = vrot.slane %v481, %v613
          %v615 = vmul.f32 %v456, %v614
          %v616 = vmul.f32 %v460, %v614
          %v617 = vmul.f32 %v464, %v614
          %v618 = vmul.f32 %v468, %v614
          %v619 = vadd.f32 %v607, %v615
          %v620 = vadd.f32 %v608, %v616
          %v621 = vadd.f32 %v609, %v617
          %v622 = vadd.f32 %v610, %v618
          %v623 = vadd.f32 %v619, %v517
          %v624 = vadd.f32 %v620, %v522
          %v625 = vadd.f32 %v621, %v527
          %v626 = vadd.f32 %v622, %v532
          %vm627 = vcmp.gt.f32.partialorder %v623, 0.0
          %vm628 = vcmp.gt.f32.partialorder %v624, 0.0
          %vm629 = vcmp.gt.f32.partialorder %v625, 0.0
          %vm630 = vcmp.gt.f32.partialorder %v626, 0.0
          %v631 = vmul.f32 %v623, 0.01
          %v632 = vmul.f32 %v624, 0.01
          %v633 = vmul.f32 %v625, 0.01
          %v634 = vmul.f32 %v626, 0.01
          %v635 = vsel %vm627, %v623, %v631
          %v636 = vsel %vm628, %v624, %v632
          %v637 = vsel %vm629, %v625, %v633
          %v638 = vsel %vm630, %v626, %v634
          %643 = vrot.lane.b32.xlu0 %v635, 1
          %v644 = vpop.permute.xlu0 %643
          %645 = vrot.lane.b32.xlu0 %v636, 1
          %v646 = vpop.permute.xlu0 %645
          %647 = vrot.lane.b32.xlu0 %v637, 1
          %v648 = vpop.permute.xlu0 %647
          %649 = vrot.lane.b32.xlu0 %v638, 1
          %v650 = vpop.permute.xlu0 %649
          %v655 = vsel %vm475, 0.0, %v644
          %v656 = vsel %vm475, 0.0, %v646
          %v657 = vsel %vm475, 0.0, %v648
          %v658 = vsel %vm475, 0.0, %v650
          %659 = vrot.lane.b32.xlu0 %v635, 127
          %v660 = vpop.permute.xlu0 %659
          %661 = vrot.lane.b32.xlu0 %v636, 127
          %v662 = vpop.permute.xlu0 %661
          %663 = vrot.lane.b32.xlu0 %v637, 127
          %v664 = vpop.permute.xlu0 %663
          %665 = vrot.lane.b32.xlu0 %v638, 127
          %v666 = vpop.permute.xlu0 %665
          %v671 = vsel %vm480, %v660, 0.0
          %v672 = vsel %vm480, %v662, 0.0
          %v673 = vsel %vm480, %v664, 0.0
          %v674 = vsel %vm480, %v666, 0.0
          %v675 = vpack.c.bf16 %v567, %v566
          %v676 = vpack.c.bf16 %v656, %v655
          %v677 = vpack.c.bf16 %v569, %v568
          %v678 = vpack.c.bf16 %v658, %v657
          %v679 = vpack.c.bf16 %v547, %v546
          %v680 = vpack.c.bf16 %v636, %v635
          %v681 = vpack.c.bf16 %v549, %v548
          %v682 = vpack.c.bf16 %v638, %v637
          %v683 = vpack.c.bf16 %v583, %v582
          %v684 = vpack.c.bf16 %v672, %v671
          %v685 = vpack.c.bf16 %v585, %v584
          %v686 = vpack.c.bf16 %v674, %v673
          %v687 = vld [vmem:[#allocation7] sm:$0xf]
          %v688 = vld [vmem:[#allocation7 + $0x4] sm:$0xf]
          %v689 = vld [vmem:[#allocation7 + $0x8] sm:$0xf]
          %v690 = vld [vmem:[#allocation7 + $0xc] sm:$0xf]
          %v691 = vld [vmem:[#allocation7 + $0x10] sm:$0xf]
          %v692 = vld [vmem:[#allocation7 + $0x14] sm:$0xf]
          %v693 = vld [vmem:[#allocation7 + $0x18] sm:$0xf]
          %v694 = vld [vmem:[#allocation7 + $0x1c] sm:$0xf]
          %v695 = vld [vmem:[%s4] sm:$0xff]
          %v696 = vld [vmem:[%s4 + $0x8] sm:$0xff]
          %v697 = vld [vmem:[%s4 + $0x10] sm:$0xff]
          %v698 = vld [vmem:[%s4 + $0x18] sm:$0xff]
          %v699 = vld [vmem:[%s4 + $0x20] sm:$0xff]
          %v700 = vld [vmem:[%s4 + $0x28] sm:$0xff]
          %v701 = vld [vmem:[%s4 + $0x30] sm:$0xff]
          %v702 = vld [vmem:[%s4 + $0x38] sm:$0xff]
          %704 = vset.pattern.permute.xlu0 0
          %705 = vperm.xlu0 %704, %v695
          %v706 = vpop.permute.xlu0 %705
          %709 = vset.pattern.permute.xlu0 0
          %710 = vperm.xlu0 %709, %v696
          %v711 = vpop.permute.xlu0 %710
          %714 = vset.pattern.permute.xlu0 0
          %715 = vperm.xlu0 %714, %v697
          %v716 = vpop.permute.xlu0 %715
          %719 = vset.pattern.permute.xlu0 0
          %720 = vperm.xlu0 %719, %v698
          %v721 = vpop.permute.xlu0 %720
          %724 = vset.pattern.permute.xlu0 0
          %725 = vperm.xlu0 %724, %v699
          %v726 = vpop.permute.xlu0 %725
          %729 = vset.pattern.permute.xlu0 0
          %730 = vperm.xlu0 %729, %v700
          %v731 = vpop.permute.xlu0 %730
          %734 = vset.pattern.permute.xlu0 0
          %735 = vperm.xlu0 %734, %v701
          %v736 = vpop.permute.xlu0 %735
          %739 = vset.pattern.permute.xlu0 0
          %740 = vperm.xlu0 %739, %v702
          %v741 = vpop.permute.xlu0 %740
          %v751 = vunpack.c.l.b16 %v687
          %v752 = vunpack.c.l.b16 %v688
          %v753 = vunpack.c.l.b16 %v689
          %v754 = vunpack.c.l.b16 %v690
          %v755 = vunpack.c.l.b16 %v691
          %v756 = vunpack.c.l.b16 %v692
          %v757 = vunpack.c.l.b16 %v693
          %v758 = vunpack.c.l.b16 %v694
          %v759 = vpack.c.b16 %v752, %v751
          %v760 = vpack.c.b16 %v754, %v753
          %v761 = vpack.c.b16 %v756, %v755
          %v762 = vpack.c.b16 %v758, %v757
          %vm763 = vcmask 785408
          %v765 = vsel %vm763, %v759, 0
          %v768 = vsel %vm763, %v760, 0
          %v771 = vsel %vm763, %v761, 0
          %v774 = vsel %vm763, %v762, 0
          %776 = vmatprep.subr.bf16.mxu0 %v676
          %777 = vmatpush1.bf16.msra.mxu0 %v675
          %778 = vmatprep.subr.bf16.mxu0 %v678
          %779 = vmatpush1.bf16.msra.mxu0 %v677
          %780 = vmatprep.subr.bf16.mxu0 %v680
          %781 = vmatpush1.bf16.msra.mxu0 %v679
          %782 = vmatprep.subr.bf16.mxu0 %v682
          %783 = vmatpush1.bf16.msra.mxu0 %v681
          %784 = vmatprep.subr.bf16.mxu0 %v684
          %785 = vmatpush1.bf16.msra.mxu0 %v683
          %786 = vmatprep.subr.bf16.mxu0 %v686
          %787 = vmatpush1.bf16.msra.mxu0 %v685
          %788 = vmatprep.subr.bf16.mxu0 0
          %789 = vmatpush1.bf16.msra.mxu0 0
          %790 = vmatprep.subr.bf16.mxu0 0
          %791 = vmatpush1.bf16.msra.mxu0 0
          %792 = vmatprep.subr.bf16.mxu0 0
          %793 = vmatpush1.bf16.msra.mxu0 0
          %794 = vmatprep.subr.bf16.mxu0 0
          %795 = vmatpush1.bf16.msra.mxu0 0
          %796 = vmatprep.subr.bf16.mxu0 0
          %797 = vmatpush1.bf16.msra.mxu0 0
          %798 = vmatprep.subr.bf16.mxu0 0
          %799 = vmatpush1.bf16.msra.mxu0 0
          %800 = vmatprep.subr.bf16.mxu0 0
          %801 = vmatpush1.bf16.msra.mxu0 0
          %802 = vmatprep.subr.bf16.mxu0 0
          %803 = vmatpush1.bf16.msra.mxu0 0
          %804 = vmatprep.subr.bf16.mxu0 0
          %805 = vmatpush1.bf16.msra.mxu0 0
          %806 = vmatprep.subr.bf16.mxu0 0
          %807 = vmatpush1.bf16.msra.mxu0 0
          %808 = vmatprep.mubr.bf16.mxu0 0
          %809 = vmatmul.mubr.bf16.gmra.mrb[0].mxu0 %v765
          %v810 = vpop.f32.mrb[0].mxu0
          %v811 = vadd.f32 %v706, %v810
          %v812 = vpop.f32.mrb[0].mxu0
          %v813 = vadd.f32 %v706, %v812
          %v814 = vpop.f32.mrb[0].mxu0
          %v815 = vadd.f32 %v711, %v814
          %v816 = vpop.f32.mrb[0].mxu0
          %v817 = vadd.f32 %v711, %v816
          %818 = vmatprep.mubr.bf16.mxu0 0
          %819 = vmatmul.mubr.bf16.gmra.mrb[0].mxu0 %v768
          %v820 = vpop.f32.mrb[0].mxu0
          %v821 = vadd.f32 %v716, %v820
          %v822 = vpop.f32.mrb[0].mxu0
          %v823 = vadd.f32 %v716, %v822
          %v824 = vpop.f32.mrb[0].mxu0
          %v825 = vadd.f32 %v721, %v824
          %v826 = vpop.f32.mrb[0].mxu0
          %v827 = vadd.f32 %v721, %v826
          %828 = vmatprep.mubr.bf16.mxu0 0
          %829 = vmatmul.mubr.bf16.gmra.mrb[0].mxu0 %v771
          %v830 = vpop.f32.mrb[0].mxu0
          %v831 = vadd.f32 %v726, %v830
          %v832 = vpop.f32.mrb[0].mxu0
          %v833 = vadd.f32 %v726, %v832
          %v834 = vpop.f32.mrb[0].mxu0
          %v835 = vadd.f32 %v731, %v834
          %v836 = vpop.f32.mrb[0].mxu0
          %v837 = vadd.f32 %v731, %v836
          %838 = vmatprep.mubr.bf16.mxu0 0
          %839 = vmatmul.mubr.bf16.gmra.mrb[0].mxu0 %v774
          %v840 = vpop.f32.mrb[0].mxu0
          %v841 = vadd.f32 %v736, %v840
          %v842 = vpop.f32.mrb[0].mxu0
          %v843 = vadd.f32 %v736, %v842
          %v844 = vpop.f32.mrb[0].mxu0
          %v845 = vadd.f32 %v741, %v844
          %v846 = vpop.f32.mrb[0].mxu0
          %v847 = vadd.f32 %v741, %v846
          %848 = vdwg.mxu0
          %vm849 = vcmp.gt.f32.partialorder %v811, 0.0
          %vm850 = vcmp.gt.f32.partialorder %v813, 0.0
          %vm851 = vcmp.gt.f32.partialorder %v815, 0.0
          %vm852 = vcmp.gt.f32.partialorder %v817, 0.0
          %vm853 = vcmp.gt.f32.partialorder %v821, 0.0
          %vm854 = vcmp.gt.f32.partialorder %v823, 0.0
          %vm855 = vcmp.gt.f32.partialorder %v825, 0.0
          %vm856 = vcmp.gt.f32.partialorder %v827, 0.0
          %vm857 = vcmp.gt.f32.partialorder %v831, 0.0
          %vm858 = vcmp.gt.f32.partialorder %v833, 0.0
          %vm859 = vcmp.gt.f32.partialorder %v835, 0.0
          %vm860 = vcmp.gt.f32.partialorder %v837, 0.0
          %vm861 = vcmp.gt.f32.partialorder %v841, 0.0
          %vm862 = vcmp.gt.f32.partialorder %v843, 0.0
          %vm863 = vcmp.gt.f32.partialorder %v845, 0.0
          %vm864 = vcmp.gt.f32.partialorder %v847, 0.0
          %v865 = vmul.f32 %v811, 0.01
          %v866 = vmul.f32 %v813, 0.01
          %v867 = vmul.f32 %v815, 0.01
          %v868 = vmul.f32 %v817, 0.01
          %v869 = vmul.f32 %v821, 0.01
          %v870 = vmul.f32 %v823, 0.01
          %v871 = vmul.f32 %v825, 0.01
          %v872 = vmul.f32 %v827, 0.01
          %v873 = vmul.f32 %v831, 0.01
          %v874 = vmul.f32 %v833, 0.01
          %v875 = vmul.f32 %v835, 0.01
          %v876 = vmul.f32 %v837, 0.01
          %v877 = vmul.f32 %v841, 0.01
          %v878 = vmul.f32 %v843, 0.01
          %v879 = vmul.f32 %v845, 0.01
          %v880 = vmul.f32 %v847, 0.01
          %v881 = vsel %vm849, %v811, %v865
          %v882 = vsel %vm850, %v813, %v866
          %v883 = vsel %vm851, %v815, %v867
          %v884 = vsel %vm852, %v817, %v868
          %v885 = vsel %vm853, %v821, %v869
          %v886 = vsel %vm854, %v823, %v870
          %v887 = vsel %vm855, %v825, %v871
          %v888 = vsel %vm856, %v827, %v872
          %v889 = vsel %vm857, %v831, %v873
          %v890 = vsel %vm858, %v833, %v874
          %v891 = vsel %vm859, %v835, %v875
          %v892 = vsel %vm860, %v837, %v876
          %v893 = vsel %vm861, %v841, %v877
          %v894 = vsel %vm862, %v843, %v878
          %v895 = vsel %vm863, %v845, %v879
          %v896 = vsel %vm864, %v847, %v880
          %v897 = vpack.c.bf16 %v883, %v881
          %v898 = vpack.c.bf16 %v887, %v885
          %v899 = vpack.c.bf16 %v891, %v889
          %v900 = vpack.c.bf16 %v895, %v893
          %v905 = vcombine.high %v897, %v897
          %v907 = vunpack.c.l.s4 1966171168
          %v908 = vunpack.c.0.s8 %v907
          %v909 = vlaneseq
          %v910 = vshrl.u32 %v909, 7
          %v911 = vsub.s32 %v908, %v910
          %v912 = vrot.slane %v897, %v911
          %v914 = vunpack.c.l.s4 1966171168
          %v915 = vunpack.c.0.s8 %v914
          %v916 = vlaneseq
          %v917 = vshrl.u32 %v916, 7
          %v918 = vsub.s32 %v915, %v917
          %v919 = vrot.slane %v905, %v918
          %v920 = vcombine.high %v912, %v912
          %v921 = vcombine.high %v919, %v919
          %v923 = vunpack.c.l.s4 1966171168
          %v924 = vunpack.c.0.s8 %v923
          %v925 = vlaneseq
          %v926 = vshrl.u32 %v925, 7
          %v927 = vsub.s32 %v924, %v926
          %v928 = vrot.slane %v912, %v927
          %v930 = vunpack.c.l.s4 1966171168
          %v931 = vunpack.c.0.s8 %v930
          %v932 = vlaneseq
          %v933 = vshrl.u32 %v932, 7
          %v934 = vsub.s32 %v931, %v933
          %v935 = vrot.slane %v919, %v934
          %v937 = vunpack.c.l.s4 1966171168
          %v938 = vunpack.c.0.s8 %v937
          %v939 = vlaneseq
          %v940 = vshrl.u32 %v939, 7
          %v941 = vsub.s32 %v938, %v940
          %v942 = vrot.slane %v920, %v941
          %v944 = vunpack.c.l.s4 1966171168
          %v945 = vunpack.c.0.s8 %v944
          %v946 = vlaneseq
          %v947 = vshrl.u32 %v946, 7
          %v948 = vsub.s32 %v945, %v947
          %v949 = vrot.slane %v921, %v948
          %v950 = vcombine.high %v928, %v928
          %v951 = vcombine.high %v935, %v935
          %v952 = vcombine.high %v942, %v942
          %v953 = vcombine.high %v949, %v949
          %v954 = vcombine.high %v898, %v898
          %v956 = vunpack.c.l.s4 1966171168
          %v957 = vunpack.c.0.s8 %v956
          %v958 = vlaneseq
          %v959 = vshrl.u32 %v958, 7
          %v960 = vsub.s32 %v957, %v959
          %v961 = vrot.slane %v898, %v960
          %v963 = vunpack.c.l.s4 1966171168
          %v964 = vunpack.c.0.s8 %v963
          %v965 = vlaneseq
          %v966 = vshrl.u32 %v965, 7
          %v967 = vsub.s32 %v964, %v966
          %v968 = vrot.slane %v954, %v967
          %v969 = vcombine.high %v961, %v961
          %v970 = vcombine.high %v968, %v968
          %v972 = vunpack.c.l.s4 1966171168
          %v973 = vunpack.c.0.s8 %v972
          %v974 = vlaneseq
          %v975 = vshrl.u32 %v974, 7
          %v976 = vsub.s32 %v973, %v975
          %v977 = vrot.slane %v961, %v976
          %v979 = vunpack.c.l.s4 1966171168
          %v980 = vunpack.c.0.s8 %v979
          %v981 = vlaneseq
          %v982 = vshrl.u32 %v981, 7
          %v983 = vsub.s32 %v980, %v982
          %v984 = vrot.slane %v968, %v983
          %v986 = vunpack.c.l.s4 1966171168
          %v987 = vunpack.c.0.s8 %v986
          %v988 = vlaneseq
          %v989 = vshrl.u32 %v988, 7
          %v990 = vsub.s32 %v987, %v989
          %v991 = vrot.slane %v969, %v990
          %v993 = vunpack.c.l.s4 1966171168
          %v994 = vunpack.c.0.s8 %v993
          %v995 = vlaneseq
          %v996 = vshrl.u32 %v995, 7
          %v997 = vsub.s32 %v994, %v996
          %v998 = vrot.slane %v970, %v997
          %v999 = vcombine.high %v977, %v977
          %v1000 = vcombine.high %v984, %v984
          %v1001 = vcombine.high %v991, %v991
          %v1002 = vcombine.high %v998, %v998
          %v1003 = vcombine.high %v899, %v899
          %v1005 = vunpack.c.l.s4 1966171168
          %v1006 = vunpack.c.0.s8 %v1005
          %v1007 = vlaneseq
          %v1008 = vshrl.u32 %v1007, 7
          %v1009 = vsub.s32 %v1006, %v1008
          %v1010 = vrot.slane %v899, %v1009
          %v1012 = vunpack.c.l.s4 1966171168
          %v1013 = vunpack.c.0.s8 %v1012
          %v1014 = vlaneseq
          %v1015 = vshrl.u32 %v1014, 7
          %v1016 = vsub.s32 %v1013, %v1015
          %v1017 = vrot.slane %v1003, %v1016
          %v1018 = vcombine.high %v1010, %v1010
          %v1019 = vcombine.high %v1017, %v1017
          %v1021 = vunpack.c.l.s4 1966171168
          %v1022 = vunpack.c.0.s8 %v1021
          %v1023 = vlaneseq
          %v1024 = vshrl.u32 %v1023, 7
          %v1025 = vsub.s32 %v1022, %v1024
          %v1026 = vrot.slane %v1010, %v1025
          %v1028 = vunpack.c.l.s4 1966171168
          %v1029 = vunpack.c.0.s8 %v1028
          %v1030 = vlaneseq
          %v1031 = vshrl.u32 %v1030, 7
          %v1032 = vsub.s32 %v1029, %v1031
          %v1033 = vrot.slane %v1017, %v1032
          %v1035 = vunpack.c.l.s4 1966171168
          %v1036 = vunpack.c.0.s8 %v1035
          %v1037 = vlaneseq
          %v1038 = vshrl.u32 %v1037, 7
          %v1039 = vsub.s32 %v1036, %v1038
          %v1040 = vrot.slane %v1018, %v1039
          %v1042 = vunpack.c.l.s4 1966171168
          %v1043 = vunpack.c.0.s8 %v1042
          %v1044 = vlaneseq
          %v1045 = vshrl.u32 %v1044, 7
          %v1046 = vsub.s32 %v1043, %v1045
          %v1047 = vrot.slane %v1019, %v1046
          %v1048 = vcombine.high %v1026, %v1026
          %v1049 = vcombine.high %v1033, %v1033
          %v1050 = vcombine.high %v1040, %v1040
          %v1051 = vcombine.high %v1047, %v1047
          %v1052 = vcombine.high %v900, %v900
          %v1054 = vunpack.c.l.s4 1966171168
          %v1055 = vunpack.c.0.s8 %v1054
          %v1056 = vlaneseq
          %v1057 = vshrl.u32 %v1056, 7
          %v1058 = vsub.s32 %v1055, %v1057
          %v1059 = vrot.slane %v900, %v1058
          %v1061 = vunpack.c.l.s4 1966171168
          %v1062 = vunpack.c.0.s8 %v1061
          %v1063 = vlaneseq
          %v1064 = vshrl.u32 %v1063, 7
          %v1065 = vsub.s32 %v1062, %v1064
          %v1066 = vrot.slane %v1052, %v1065
          %v1067 = vcombine.high %v1059, %v1059
          %v1068 = vcombine.high %v1066, %v1066
          %v1070 = vunpack.c.l.s4 1966171168
          %v1071 = vunpack.c.0.s8 %v1070
          %v1072 = vlaneseq
          %v1073 = vshrl.u32 %v1072, 7
          %v1074 = vsub.s32 %v1071, %v1073
          %v1075 = vrot.slane %v1059, %v1074
          %v1077 = vunpack.c.l.s4 1966171168
          %v1078 = vunpack.c.0.s8 %v1077
          %v1079 = vlaneseq
          %v1080 = vshrl.u32 %v1079, 7
          %v1081 = vsub.s32 %v1078, %v1080
          %v1082 = vrot.slane %v1066, %v1081
          %v1084 = vunpack.c.l.s4 1966171168
          %v1085 = vunpack.c.0.s8 %v1084
          %v1086 = vlaneseq
          %v1087 = vshrl.u32 %v1086, 7
          %v1088 = vsub.s32 %v1085, %v1087
          %v1089 = vrot.slane %v1067, %v1088
          %v1091 = vunpack.c.l.s4 1966171168
          %v1092 = vunpack.c.0.s8 %v1091
          %v1093 = vlaneseq
          %v1094 = vshrl.u32 %v1093, 7
          %v1095 = vsub.s32 %v1092, %v1094
          %v1096 = vrot.slane %v1068, %v1095
          %v1097 = vcombine.high %v1075, %v1075
          %v1098 = vcombine.high %v1082, %v1082
          %v1099 = vcombine.high %v1089, %v1089
          %v1100 = vcombine.high %v1096, %v1096
          %v1101 = vunpack.i.l.s16 %v928
          %v1102 = vunpack.i.h.s16 %v928
          %v1103 = vunpack.i.l.s16 %v942
          %v1104 = vunpack.i.h.s16 %v942
          %v1105 = vunpack.i.l.s16 %v950
          %v1106 = vunpack.i.h.s16 %v950
          %v1107 = vunpack.i.l.s16 %v952
          %v1108 = vunpack.i.h.s16 %v952
          %v1109 = vunpack.i.l.s16 %v935
          %v1110 = vunpack.i.h.s16 %v935
          %v1111 = vunpack.i.l.s16 %v949
          %v1112 = vunpack.i.h.s16 %v949
          %v1113 = vunpack.i.l.s16 %v951
          %v1114 = vunpack.i.h.s16 %v951
          %v1115 = vunpack.i.l.s16 %v953
          %v1116 = vunpack.i.h.s16 %v953
          %v1117 = vunpack.i.l.s16 %v977
          %v1118 = vunpack.i.h.s16 %v977
          %v1119 = vunpack.i.l.s16 %v991
          %v1120 = vunpack.i.h.s16 %v991
          %v1121 = vunpack.i.l.s16 %v999
          %v1122 = vunpack.i.h.s16 %v999
          %v1123 = vunpack.i.l.s16 %v1001
          %v1124 = vunpack.i.h.s16 %v1001
          %v1125 = vunpack.i.l.s16 %v984
          %v1126 = vunpack.i.h.s16 %v984
          %v1127 = vunpack.i.l.s16 %v998
          %v1128 = vunpack.i.h.s16 %v998
          %v1129 = vunpack.i.l.s16 %v1000
          %v1130 = vunpack.i.h.s16 %v1000
          %v1131 = vunpack.i.l.s16 %v1002
          %v1132 = vunpack.i.h.s16 %v1002
          %v1133 = vunpack.i.l.s16 %v1026
          %v1134 = vunpack.i.h.s16 %v1026
          %v1135 = vunpack.i.l.s16 %v1040
          %v1136 = vunpack.i.h.s16 %v1040
          %v1137 = vunpack.i.l.s16 %v1048
          %v1138 = vunpack.i.h.s16 %v1048
          %v1139 = vunpack.i.l.s16 %v1050
          %v1140 = vunpack.i.h.s16 %v1050
          %v1141 = vunpack.i.l.s16 %v1033
          %v1142 = vunpack.i.h.s16 %v1033
          %v1143 = vunpack.i.l.s16 %v1047
          %v1144 = vunpack.i.h.s16 %v1047
          %v1145 = vunpack.i.l.s16 %v1049
          %v1146 = vunpack.i.h.s16 %v1049
          %v1147 = vunpack.i.l.s16 %v1051
          %v1148 = vunpack.i.h.s16 %v1051
          %v1149 = vunpack.i.l.s16 %v1075
          %v1150 = vunpack.i.h.s16 %v1075
          %v1151 = vunpack.i.l.s16 %v1089
          %v1152 = vunpack.i.h.s16 %v1089
          %v1153 = vunpack.i.l.s16 %v1097
          %v1154 = vunpack.i.h.s16 %v1097
          %v1155 = vunpack.i.l.s16 %v1099
          %v1156 = vunpack.i.h.s16 %v1099
          %v1157 = vunpack.i.l.s16 %v1082
          %v1158 = vunpack.i.h.s16 %v1082
          %v1159 = vunpack.i.l.s16 %v1096
          %v1160 = vunpack.i.h.s16 %v1096
          %v1161 = vunpack.i.l.s16 %v1098
          %v1162 = vunpack.i.h.s16 %v1098
          %v1163 = vunpack.i.l.s16 %v1100
          %v1164 = vunpack.i.h.s16 %v1100
          %v1165 = vpack.i.b16 %v1101, %v1101
          %v1166 = vpack.i.b16 %v1102, %v1102
          %v1167 = vpack.i.b16 %v1103, %v1103
          %v1168 = vpack.i.b16 %v1104, %v1104
          %v1169 = vpack.i.b16 %v1105, %v1105
          %v1170 = vpack.i.b16 %v1106, %v1106
          %v1171 = vpack.i.b16 %v1107, %v1107
          %v1172 = vpack.i.b16 %v1108, %v1108
          %v1173 = vpack.i.b16 %v1109, %v1109
          %v1174 = vpack.i.b16 %v1110, %v1110
          %v1175 = vpack.i.b16 %v1111, %v1111
          %v1176 = vpack.i.b16 %v1112, %v1112
          %v1177 = vpack.i.b16 %v1113, %v1113
          %v1178 = vpack.i.b16 %v1114, %v1114
          %v1179 = vpack.i.b16 %v1115, %v1115
          %v1180 = vpack.i.b16 %v1116, %v1116
          %v1181 = vpack.i.b16 %v1117, %v1117
          %v1182 = vpack.i.b16 %v1118, %v1118
          %v1183 = vpack.i.b16 %v1119, %v1119
          %v1184 = vpack.i.b16 %v1120, %v1120
          %v1185 = vpack.i.b16 %v1121, %v1121
          %v1186 = vpack.i.b16 %v1122, %v1122
          %v1187 = vpack.i.b16 %v1123, %v1123
          %v1188 = vpack.i.b16 %v1124, %v1124
          %v1189 = vpack.i.b16 %v1125, %v1125
          %v1190 = vpack.i.b16 %v1126, %v1126
          %v1191 = vpack.i.b16 %v1127, %v1127
          %v1192 = vpack.i.b16 %v1128, %v1128
          %v1193 = vpack.i.b16 %v1129, %v1129
          %v1194 = vpack.i.b16 %v1130, %v1130
          %v1195 = vpack.i.b16 %v1131, %v1131
          %v1196 = vpack.i.b16 %v1132, %v1132
          %v1197 = vpack.i.b16 %v1133, %v1133
          %v1198 = vpack.i.b16 %v1134, %v1134
          %v1199 = vpack.i.b16 %v1135, %v1135
          %v1200 = vpack.i.b16 %v1136, %v1136
          %v1201 = vpack.i.b16 %v1137, %v1137
          %v1202 = vpack.i.b16 %v1138, %v1138
          %v1203 = vpack.i.b16 %v1139, %v1139
          %v1204 = vpack.i.b16 %v1140, %v1140
          %v1205 = vpack.i.b16 %v1141, %v1141
          %v1206 = vpack.i.b16 %v1142, %v1142
          %v1207 = vpack.i.b16 %v1143, %v1143
          %v1208 = vpack.i.b16 %v1144, %v1144
          %v1209 = vpack.i.b16 %v1145, %v1145
          %v1210 = vpack.i.b16 %v1146, %v1146
          %v1211 = vpack.i.b16 %v1147, %v1147
          %v1212 = vpack.i.b16 %v1148, %v1148
          %v1213 = vpack.i.b16 %v1149, %v1149
          %v1214 = vpack.i.b16 %v1150, %v1150
          %v1215 = vpack.i.b16 %v1151, %v1151
          %v1216 = vpack.i.b16 %v1152, %v1152
          %v1217 = vpack.i.b16 %v1153, %v1153
          %v1218 = vpack.i.b16 %v1154, %v1154
          %v1219 = vpack.i.b16 %v1155, %v1155
          %v1220 = vpack.i.b16 %v1156, %v1156
          %v1221 = vpack.i.b16 %v1157, %v1157
          %v1222 = vpack.i.b16 %v1158, %v1158
          %v1223 = vpack.i.b16 %v1159, %v1159
          %v1224 = vpack.i.b16 %v1160, %v1160
          %v1225 = vpack.i.b16 %v1161, %v1161
          %v1226 = vpack.i.b16 %v1162, %v1162
          %v1227 = vpack.i.b16 %v1163, %v1163
          %v1228 = vpack.i.b16 %v1164, %v1164
          %vm1293 = vcmask 1040384
          %vm1294 = vsmask.f32 256
          %vm1295 = vmand %vm1293, %vm1294
          %v1296 = vld [vmem:[#allocation2] sm:$0x1]
          %v1297 = vsel %vm1295, %v1165, %v1296
          %1298 = vst [vmem:[#allocation2] sm:$0x1] %v1297
          %v1299 = vld [vmem:[#allocation2 + $0x1] sm:$0x1]
          %v1300 = vsel %vm1295, %v1166, %v1299
          %1301 = vst [vmem:[#allocation2 + $0x1] sm:$0x1] %v1300
          %v1302 = vld [vmem:[#allocation2 + $0x2] sm:$0x1]
          %v1303 = vsel %vm1295, %v1167, %v1302
          %1304 = vst [vmem:[#allocation2 + $0x2] sm:$0x1] %v1303
          %v1305 = vld [vmem:[#allocation2 + $0x3] sm:$0x1]
          %v1306 = vsel %vm1295, %v1168, %v1305
          %1307 = vst [vmem:[#allocation2 + $0x3] sm:$0x1] %v1306
          %v1308 = vld [vmem:[#allocation2 + $0x4] sm:$0x1]
          %v1309 = vsel %vm1295, %v1169, %v1308
          %1310 = vst [vmem:[#allocation2 + $0x4] sm:$0x1] %v1309
          %v1311 = vld [vmem:[#allocation2 + $0x5] sm:$0x1]
          %v1312 = vsel %vm1295, %v1170, %v1311
          %1313 = vst [vmem:[#allocation2 + $0x5] sm:$0x1] %v1312
          %v1314 = vld [vmem:[#allocation2 + $0x6] sm:$0x1]
          %v1315 = vsel %vm1295, %v1171, %v1314
          %1316 = vst [vmem:[#allocation2 + $0x6] sm:$0x1] %v1315
          %v1317 = vld [vmem:[#allocation2 + $0x7] sm:$0x1]
          %v1318 = vsel %vm1295, %v1172, %v1317
          %1319 = vst [vmem:[#allocation2 + $0x7] sm:$0x1] %v1318
          %v1320 = vld [vmem:[#allocation2 + $0x8] sm:$0x1]
          %v1321 = vsel %vm1295, %v1173, %v1320
          %1322 = vst [vmem:[#allocation2 + $0x8] sm:$0x1] %v1321
          %v1323 = vld [vmem:[#allocation2 + $0x9] sm:$0x1]
          %v1324 = vsel %vm1295, %v1174, %v1323
          %1325 = vst [vmem:[#allocation2 + $0x9] sm:$0x1] %v1324
          %v1326 = vld [vmem:[#allocation2 + $0xa] sm:$0x1]
          %v1327 = vsel %vm1295, %v1175, %v1326
          %1328 = vst [vmem:[#allocation2 + $0xa] sm:$0x1] %v1327
          %v1329 = vld [vmem:[#allocation2 + $0xb] sm:$0x1]
          %v1330 = vsel %vm1295, %v1176, %v1329
          %1331 = vst [vmem:[#allocation2 + $0xb] sm:$0x1] %v1330
          %v1332 = vld [vmem:[#allocation2 + $0xc] sm:$0x1]
          %v1333 = vsel %vm1295, %v1177, %v1332
          %1334 = vst [vmem:[#allocation2 + $0xc] sm:$0x1] %v1333
          %v1335 = vld [vmem:[#allocation2 + $0xd] sm:$0x1]
          %v1336 = vsel %vm1295, %v1178, %v1335
          %1337 = vst [vmem:[#allocation2 + $0xd] sm:$0x1] %v1336
          %v1338 = vld [vmem:[#allocation2 + $0xe] sm:$0x1]
          %v1339 = vsel %vm1295, %v1179, %v1338
          %1340 = vst [vmem:[#allocation2 + $0xe] sm:$0x1] %v1339
          %v1341 = vld [vmem:[#allocation2 + $0xf] sm:$0x1]
          %v1342 = vsel %vm1295, %v1180, %v1341
          %1343 = vst [vmem:[#allocation2 + $0xf] sm:$0x1] %v1342
          %v1344 = vld [vmem:[#allocation2 + $0x10] sm:$0x1]
          %v1345 = vsel %vm1295, %v1181, %v1344
          %1346 = vst [vmem:[#allocation2 + $0x10] sm:$0x1] %v1345
          %v1347 = vld [vmem:[#allocation2 + $0x11] sm:$0x1]
          %v1348 = vsel %vm1295, %v1182, %v1347
          %1349 = vst [vmem:[#allocation2 + $0x11] sm:$0x1] %v1348
          %v1350 = vld [vmem:[#allocation2 + $0x12] sm:$0x1]
          %v1351 = vsel %vm1295, %v1183, %v1350
          %1352 = vst [vmem:[#allocation2 + $0x12] sm:$0x1] %v1351
          %v1353 = vld [vmem:[#allocation2 + $0x13] sm:$0x1]
          %v1354 = vsel %vm1295, %v1184, %v1353
          %1355 = vst [vmem:[#allocation2 + $0x13] sm:$0x1] %v1354
          %v1356 = vld [vmem:[#allocation2 + $0x14] sm:$0x1]
          %v1357 = vsel %vm1295, %v1185, %v1356
          %1358 = vst [vmem:[#allocation2 + $0x14] sm:$0x1] %v1357
          %v1359 = vld [vmem:[#allocation2 + $0x15] sm:$0x1]
          %v1360 = vsel %vm1295, %v1186, %v1359
          %1361 = vst [vmem:[#allocation2 + $0x15] sm:$0x1] %v1360
          %v1362 = vld [vmem:[#allocation2 + $0x16] sm:$0x1]
          %v1363 = vsel %vm1295, %v1187, %v1362
          %1364 = vst [vmem:[#allocation2 + $0x16] sm:$0x1] %v1363
          %v1365 = vld [vmem:[#allocation2 + $0x17] sm:$0x1]
          %v1366 = vsel %vm1295, %v1188, %v1365
          %1367 = vst [vmem:[#allocation2 + $0x17] sm:$0x1] %v1366
          %v1368 = vld [vmem:[#allocation2 + $0x18] sm:$0x1]
          %v1369 = vsel %vm1295, %v1189, %v1368
          %1370 = vst [vmem:[#allocation2 + $0x18] sm:$0x1] %v1369
          %v1371 = vld [vmem:[#allocation2 + $0x19] sm:$0x1]
          %v1372 = vsel %vm1295, %v1190, %v1371
          %1373 = vst [vmem:[#allocation2 + $0x19] sm:$0x1] %v1372
          %v1374 = vld [vmem:[#allocation2 + $0x1a] sm:$0x1]
          %v1375 = vsel %vm1295, %v1191, %v1374
          %1376 = vst [vmem:[#allocation2 + $0x1a] sm:$0x1] %v1375
          %v1377 = vld [vmem:[#allocation2 + $0x1b] sm:$0x1]
          %v1378 = vsel %vm1295, %v1192, %v1377
          %1379 = vst [vmem:[#allocation2 + $0x1b] sm:$0x1] %v1378
          %v1380 = vld [vmem:[#allocation2 + $0x1c] sm:$0x1]
          %v1381 = vsel %vm1295, %v1193, %v1380
          %1382 = vst [vmem:[#allocation2 + $0x1c] sm:$0x1] %v1381
          %v1383 = vld [vmem:[#allocation2 + $0x1d] sm:$0x1]
          %v1384 = vsel %vm1295, %v1194, %v1383
          %1385 = vst [vmem:[#allocation2 + $0x1d] sm:$0x1] %v1384
          %v1386 = vld [vmem:[#allocation2 + $0x1e] sm:$0x1]
          %v1387 = vsel %vm1295, %v1195, %v1386
          %1388 = vst [vmem:[#allocation2 + $0x1e] sm:$0x1] %v1387
          %v1389 = vld [vmem:[#allocation2 + $0x1f] sm:$0x1]
          %v1390 = vsel %vm1295, %v1196, %v1389
          %1391 = vst [vmem:[#allocation2 + $0x1f] sm:$0x1] %v1390
          %v1392 = vld [vmem:[#allocation2 + $0x20] sm:$0x1]
          %v1393 = vsel %vm1295, %v1197, %v1392
          %1394 = vst [vmem:[#allocation2 + $0x20] sm:$0x1] %v1393
          %v1395 = vld [vmem:[#allocation2 + $0x21] sm:$0x1]
          %v1396 = vsel %vm1295, %v1198, %v1395
          %1397 = vst [vmem:[#allocation2 + $0x21] sm:$0x1] %v1396
          %v1398 = vld [vmem:[#allocation2 + $0x22] sm:$0x1]
          %v1399 = vsel %vm1295, %v1199, %v1398
          %1400 = vst [vmem:[#allocation2 + $0x22] sm:$0x1] %v1399
          %v1401 = vld [vmem:[#allocation2 + $0x23] sm:$0x1]
          %v1402 = vsel %vm1295, %v1200, %v1401
          %1403 = vst [vmem:[#allocation2 + $0x23] sm:$0x1] %v1402
          %v1404 = vld [vmem:[#allocation2 + $0x24] sm:$0x1]
          %v1405 = vsel %vm1295, %v1201, %v1404
          %1406 = vst [vmem:[#allocation2 + $0x24] sm:$0x1] %v1405
          %v1407 = vld [vmem:[#allocation2 + $0x25] sm:$0x1]
          %v1408 = vsel %vm1295, %v1202, %v1407
          %1409 = vst [vmem:[#allocation2 + $0x25] sm:$0x1] %v1408
          %v1410 = vld [vmem:[#allocation2 + $0x26] sm:$0x1]
          %v1411 = vsel %vm1295, %v1203, %v1410
          %1412 = vst [vmem:[#allocation2 + $0x26] sm:$0x1] %v1411
          %v1413 = vld [vmem:[#allocation2 + $0x27] sm:$0x1]
          %v1414 = vsel %vm1295, %v1204, %v1413
          %1415 = vst [vmem:[#allocation2 + $0x27] sm:$0x1] %v1414
          %v1416 = vld [vmem:[#allocation2 + $0x28] sm:$0x1]
          %v1417 = vsel %vm1295, %v1205, %v1416
          %1418 = vst [vmem:[#allocation2 + $0x28] sm:$0x1] %v1417
          %v1419 = vld [vmem:[#allocation2 + $0x29] sm:$0x1]
          %v1420 = vsel %vm1295, %v1206, %v1419
          %1421 = vst [vmem:[#allocation2 + $0x29] sm:$0x1] %v1420
          %v1422 = vld [vmem:[#allocation2 + $0x2a] sm:$0x1]
          %v1423 = vsel %vm1295, %v1207, %v1422
          %1424 = vst [vmem:[#allocation2 + $0x2a] sm:$0x1] %v1423
          %v1425 = vld [vmem:[#allocation2 + $0x2b] sm:$0x1]
          %v1426 = vsel %vm1295, %v1208, %v1425
          %1427 = vst [vmem:[#allocation2 + $0x2b] sm:$0x1] %v1426
          %v1428 = vld [vmem:[#allocation2 + $0x2c] sm:$0x1]
          %v1429 = vsel %vm1295, %v1209, %v1428
          %1430 = vst [vmem:[#allocation2 + $0x2c] sm:$0x1] %v1429
          %v1431 = vld [vmem:[#allocation2 + $0x2d] sm:$0x1]
          %v1432 = vsel %vm1295, %v1210, %v1431
          %1433 = vst [vmem:[#allocation2 + $0x2d] sm:$0x1] %v1432
          %v1434 = vld [vmem:[#allocation2 + $0x2e] sm:$0x1]
          %v1435 = vsel %vm1295, %v1211, %v1434
          %1436 = vst [vmem:[#allocation2 + $0x2e] sm:$0x1] %v1435
          %v1437 = vld [vmem:[#allocation2 + $0x2f] sm:$0x1]
          %v1438 = vsel %vm1295, %v1212, %v1437
          %1439 = vst [vmem:[#allocation2 + $0x2f] sm:$0x1] %v1438
          %v1440 = vld [vmem:[#allocation2 + $0x30] sm:$0x1]
          %v1441 = vsel %vm1295, %v1213, %v1440
          %1442 = vst [vmem:[#allocation2 + $0x30] sm:$0x1] %v1441
          %v1443 = vld [vmem:[#allocation2 + $0x31] sm:$0x1]
          %v1444 = vsel %vm1295, %v1214, %v1443
          %1445 = vst [vmem:[#allocation2 + $0x31] sm:$0x1] %v1444
          %v1446 = vld [vmem:[#allocation2 + $0x32] sm:$0x1]
          %v1447 = vsel %vm1295, %v1215, %v1446
          %1448 = vst [vmem:[#allocation2 + $0x32] sm:$0x1] %v1447
          %v1449 = vld [vmem:[#allocation2 + $0x33] sm:$0x1]
          %v1450 = vsel %vm1295, %v1216, %v1449
          %1451 = vst [vmem:[#allocation2 + $0x33] sm:$0x1] %v1450
          %v1452 = vld [vmem:[#allocation2 + $0x34] sm:$0x1]
          %v1453 = vsel %vm1295, %v1217, %v1452
          %1454 = vst [vmem:[#allocation2 + $0x34] sm:$0x1] %v1453
          %v1455 = vld [vmem:[#allocation2 + $0x35] sm:$0x1]
          %v1456 = vsel %vm1295, %v1218, %v1455
          %1457 = vst [vmem:[#allocation2 + $0x35] sm:$0x1] %v1456
          %v1458 = vld [vmem:[#allocation2 + $0x36] sm:$0x1]
          %v1459 = vsel %vm1295, %v1219, %v1458
          %1460 = vst [vmem:[#allocation2 + $0x36] sm:$0x1] %v1459
          %v1461 = vld [vmem:[#allocation2 + $0x37] sm:$0x1]
          %v1462 = vsel %vm1295, %v1220, %v1461
          %1463 = vst [vmem:[#allocation2 + $0x37] sm:$0x1] %v1462
          %v1464 = vld [vmem:[#allocation2 + $0x38] sm:$0x1]
          %v1465 = vsel %vm1295, %v1221, %v1464
          %1466 = vst [vmem:[#allocation2 + $0x38] sm:$0x1] %v1465
          %v1467 = vld [vmem:[#allocation2 + $0x39] sm:$0x1]
          %v1468 = vsel %vm1295, %v1222, %v1467
          %1469 = vst [vmem:[#allocation2 + $0x39] sm:$0x1] %v1468
          %v1470 = vld [vmem:[#allocation2 + $0x3a] sm:$0x1]
          %v1471 = vsel %vm1295, %v1223, %v1470
          %1472 = vst [vmem:[#allocation2 + $0x3a] sm:$0x1] %v1471
          %v1473 = vld [vmem:[#allocation2 + $0x3b] sm:$0x1]
          %v1474 = vsel %vm1295, %v1224, %v1473
          %1475 = vst [vmem:[#allocation2 + $0x3b] sm:$0x1] %v1474
          %v1476 = vld [vmem:[#allocation2 + $0x3c] sm:$0x1]
          %v1477 = vsel %vm1295, %v1225, %v1476
          %1478 = vst [vmem:[#allocation2 + $0x3c] sm:$0x1] %v1477
          %v1479 = vld [vmem:[#allocation2 + $0x3d] sm:$0x1]
          %v1480 = vsel %vm1295, %v1226, %v1479
          %1481 = vst [vmem:[#allocation2 + $0x3d] sm:$0x1] %v1480
          %v1482 = vld [vmem:[#allocation2 + $0x3e] sm:$0x1]
          %v1483 = vsel %vm1295, %v1227, %v1482
          %1484 = vst [vmem:[#allocation2 + $0x3e] sm:$0x1] %v1483
          %v1485 = vld [vmem:[#allocation2 + $0x3f] sm:$0x1]
          %v1486 = vsel %vm1295, %v1228, %v1485
          %1487 = vst [vmem:[#allocation2 + $0x3f] sm:$0x1] %v1486
          %v1488 = vpack.c.bf16 %v884, %v882
          %v1489 = vpack.c.bf16 %v888, %v886
          %v1490 = vpack.c.bf16 %v892, %v890
          %v1491 = vpack.c.bf16 %v896, %v894
          %v1496 = vcombine.high %v1488, %v1488
          %v1498 = vunpack.c.l.s4 1966171168
          %v1499 = vunpack.c.0.s8 %v1498
          %v1500 = vlaneseq
          %v1501 = vshrl.u32 %v1500, 7
          %v1502 = vsub.s32 %v1499, %v1501
          %v1503 = vrot.slane %v1488, %v1502
          %v1505 = vunpack.c.l.s4 1966171168
          %v1506 = vunpack.c.0.s8 %v1505
          %v1507 = vlaneseq
          %v1508 = vshrl.u32 %v1507, 7
          %v1509 = vsub.s32 %v1506, %v1508
          %v1510 = vrot.slane %v1496, %v1509
          %v1511 = vcombine.high %v1503, %v1503
          %v1512 = vcombine.high %v1510, %v1510
          %v1514 = vunpack.c.l.s4 1966171168
          %v1515 = vunpack.c.0.s8 %v1514
          %v1516 = vlaneseq
          %v1517 = vshrl.u32 %v1516, 7
          %v1518 = vsub.s32 %v1515, %v1517
          %v1519 = vrot.slane %v1503, %v1518
          %v1521 = vunpack.c.l.s4 1966171168
          %v1522 = vunpack.c.0.s8 %v1521
          %v1523 = vlaneseq
          %v1524 = vshrl.u32 %v1523, 7
          %v1525 = vsub.s32 %v1522, %v1524
          %v1526 = vrot.slane %v1510, %v1525
          %v1528 = vunpack.c.l.s4 1966171168
          %v1529 = vunpack.c.0.s8 %v1528
          %v1530 = vlaneseq
          %v1531 = vshrl.u32 %v1530, 7
          %v1532 = vsub.s32 %v1529, %v1531
          %v1533 = vrot.slane %v1511, %v1532
          %v1535 = vunpack.c.l.s4 1966171168
          %v1536 = vunpack.c.0.s8 %v1535
          %v1537 = vlaneseq
          %v1538 = vshrl.u32 %v1537, 7
          %v1539 = vsub.s32 %v1536, %v1538
          %v1540 = vrot.slane %v1512, %v1539
          %v1541 = vcombine.high %v1519, %v1519
          %v1542 = vcombine.high %v1526, %v1526
          %v1543 = vcombine.high %v1533, %v1533
          %v1544 = vcombine.high %v1540, %v1540
          %v1545 = vcombine.high %v1489, %v1489
          %v1547 = vunpack.c.l.s4 1966171168
          %v1548 = vunpack.c.0.s8 %v1547
          %v1549 = vlaneseq
          %v1550 = vshrl.u32 %v1549, 7
          %v1551 = vsub.s32 %v1548, %v1550
          %v1552 = vrot.slane %v1489, %v1551
          %v1554 = vunpack.c.l.s4 1966171168
          %v1555 = vunpack.c.0.s8 %v1554
          %v1556 = vlaneseq
          %v1557 = vshrl.u32 %v1556, 7
          %v1558 = vsub.s32 %v1555, %v1557
          %v1559 = vrot.slane %v1545, %v1558
          %v1560 = vcombine.high %v1552, %v1552
          %v1561 = vcombine.high %v1559, %v1559
          %v1563 = vunpack.c.l.s4 1966171168
          %v1564 = vunpack.c.0.s8 %v1563
          %v1565 = vlaneseq
          %v1566 = vshrl.u32 %v1565, 7
          %v1567 = vsub.s32 %v1564, %v1566
          %v1568 = vrot.slane %v1552, %v1567
          %v1570 = vunpack.c.l.s4 1966171168
          %v1571 = vunpack.c.0.s8 %v1570
          %v1572 = vlaneseq
          %v1573 = vshrl.u32 %v1572, 7
          %v1574 = vsub.s32 %v1571, %v1573
          %v1575 = vrot.slane %v1559, %v1574
          %v1577 = vunpack.c.l.s4 1966171168
          %v1578 = vunpack.c.0.s8 %v1577
          %v1579 = vlaneseq
          %v1580 = vshrl.u32 %v1579, 7
          %v1581 = vsub.s32 %v1578, %v1580
          %v1582 = vrot.slane %v1560, %v1581
          %v1584 = vunpack.c.l.s4 1966171168
          %v1585 = vunpack.c.0.s8 %v1584
          %v1586 = vlaneseq
          %v1587 = vshrl.u32 %v1586, 7
          %v1588 = vsub.s32 %v1585, %v1587
          %v1589 = vrot.slane %v1561, %v1588
          %v1590 = vcombine.high %v1568, %v1568
          %v1591 = vcombine.high %v1575, %v1575
          %v1592 = vcombine.high %v1582, %v1582
          %v1593 = vcombine.high %v1589, %v1589
          %v1594 = vcombine.high %v1490, %v1490
          %v1596 = vunpack.c.l.s4 1966171168
          %v1597 = vunpack.c.0.s8 %v1596
          %v1598 = vlaneseq
          %v1599 = vshrl.u32 %v1598, 7
          %v1600 = vsub.s32 %v1597, %v1599
          %v1601 = vrot.slane %v1490, %v1600
          %v1603 = vunpack.c.l.s4 1966171168
          %v1604 = vunpack.c.0.s8 %v1603
          %v1605 = vlaneseq
          %v1606 = vshrl.u32 %v1605, 7
          %v1607 = vsub.s32 %v1604, %v1606
          %v1608 = vrot.slane %v1594, %v1607
          %v1609 = vcombine.high %v1601, %v1601
          %v1610 = vcombine.high %v1608, %v1608
          %v1612 = vunpack.c.l.s4 1966171168
          %v1613 = vunpack.c.0.s8 %v1612
          %v1614 = vlaneseq
          %v1615 = vshrl.u32 %v1614, 7
          %v1616 = vsub.s32 %v1613, %v1615
          %v1617 = vrot.slane %v1601, %v1616
          %v1619 = vunpack.c.l.s4 1966171168
          %v1620 = vunpack.c.0.s8 %v1619
          %v1621 = vlaneseq
          %v1622 = vshrl.u32 %v1621, 7
          %v1623 = vsub.s32 %v1620, %v1622
          %v1624 = vrot.slane %v1608, %v1623
          %v1626 = vunpack.c.l.s4 1966171168
          %v1627 = vunpack.c.0.s8 %v1626
          %v1628 = vlaneseq
          %v1629 = vshrl.u32 %v1628, 7
          %v1630 = vsub.s32 %v1627, %v1629
          %v1631 = vrot.slane %v1609, %v1630
          %v1633 = vunpack.c.l.s4 1966171168
          %v1634 = vunpack.c.0.s8 %v1633
          %v1635 = vlaneseq
          %v1636 = vshrl.u32 %v1635, 7
          %v1637 = vsub.s32 %v1634, %v1636
          %v1638 = vrot.slane %v1610, %v1637
          %v1639 = vcombine.high %v1617, %v1617
          %v1640 = vcombine.high %v1624, %v1624
          %v1641 = vcombine.high %v1631, %v1631
          %v1642 = vcombine.high %v1638, %v1638
          %v1643 = vcombine.high %v1491, %v1491
          %v1645 = vunpack.c.l.s4 1966171168
          %v1646 = vunpack.c.0.s8 %v1645
          %v1647 = vlaneseq
          %v1648 = vshrl.u32 %v1647, 7
          %v1649 = vsub.s32 %v1646, %v1648
          %v1650 = vrot.slane %v1491, %v1649
          %v1652 = vunpack.c.l.s4 1966171168
          %v1653 = vunpack.c.0.s8 %v1652
          %v1654 = vlaneseq
          %v1655 = vshrl.u32 %v1654, 7
          %v1656 = vsub.s32 %v1653, %v1655
          %v1657 = vrot.slane %v1643, %v1656
          %v1658 = vcombine.high %v1650, %v1650
          %v1659 = vcombine.high %v1657, %v1657
          %v1661 = vunpack.c.l.s4 1966171168
          %v1662 = vunpack.c.0.s8 %v1661
          %v1663 = vlaneseq
          %v1664 = vshrl.u32 %v1663, 7
          %v1665 = vsub.s32 %v1662, %v1664
          %v1666 = vrot.slane %v1650, %v1665
          %v1668 = vunpack.c.l.s4 1966171168
          %v1669 = vunpack.c.0.s8 %v1668
          %v1670 = vlaneseq
          %v1671 = vshrl.u32 %v1670, 7
          %v1672 = vsub.s32 %v1669, %v1671
          %v1673 = vrot.slane %v1657, %v1672
          %v1675 = vunpack.c.l.s4 1966171168
          %v1676 = vunpack.c.0.s8 %v1675
          %v1677 = vlaneseq
          %v1678 = vshrl.u32 %v1677, 7
          %v1679 = vsub.s32 %v1676, %v1678
          %v1680 = vrot.slane %v1658, %v1679
          %v1682 = vunpack.c.l.s4 1966171168
          %v1683 = vunpack.c.0.s8 %v1682
          %v1684 = vlaneseq
          %v1685 = vshrl.u32 %v1684, 7
          %v1686 = vsub.s32 %v1683, %v1685
          %v1687 = vrot.slane %v1659, %v1686
          %v1688 = vcombine.high %v1666, %v1666
          %v1689 = vcombine.high %v1673, %v1673
          %v1690 = vcombine.high %v1680, %v1680
          %v1691 = vcombine.high %v1687, %v1687
          %v1692 = vunpack.i.l.s16 %v1519
          %v1693 = vunpack.i.h.s16 %v1519
          %v1694 = vunpack.i.l.s16 %v1533
          %v1695 = vunpack.i.h.s16 %v1533
          %v1696 = vunpack.i.l.s16 %v1541
          %v1697 = vunpack.i.h.s16 %v1541
          %v1698 = vunpack.i.l.s16 %v1543
          %v1699 = vunpack.i.h.s16 %v1543
          %v1700 = vunpack.i.l.s16 %v1526
          %v1701 = vunpack.i.h.s16 %v1526
          %v1702 = vunpack.i.l.s16 %v1540
          %v1703 = vunpack.i.h.s16 %v1540
          %v1704 = vunpack.i.l.s16 %v1542
          %v1705 = vunpack.i.h.s16 %v1542
          %v1706 = vunpack.i.l.s16 %v1544
          %v1707 = vunpack.i.h.s16 %v1544
          %v1708 = vunpack.i.l.s16 %v1568
          %v1709 = vunpack.i.h.s16 %v1568
          %v1710 = vunpack.i.l.s16 %v1582
          %v1711 = vunpack.i.h.s16 %v1582
          %v1712 = vunpack.i.l.s16 %v1590
          %v1713 = vunpack.i.h.s16 %v1590
          %v1714 = vunpack.i.l.s16 %v1592
          %v1715 = vunpack.i.h.s16 %v1592
          %v1716 = vunpack.i.l.s16 %v1575
          %v1717 = vunpack.i.h.s16 %v1575
          %v1718 = vunpack.i.l.s16 %v1589
          %v1719 = vunpack.i.h.s16 %v1589
          %v1720 = vunpack.i.l.s16 %v1591
          %v1721 = vunpack.i.h.s16 %v1591
          %v1722 = vunpack.i.l.s16 %v1593
          %v1723 = vunpack.i.h.s16 %v1593
          %v1724 = vunpack.i.l.s16 %v1617
          %v1725 = vunpack.i.h.s16 %v1617
          %v1726 = vunpack.i.l.s16 %v1631
          %v1727 = vunpack.i.h.s16 %v1631
          %v1728 = vunpack.i.l.s16 %v1639
          %v1729 = vunpack.i.h.s16 %v1639
          %v1730 = vunpack.i.l.s16 %v1641
          %v1731 = vunpack.i.h.s16 %v1641
          %v1732 = vunpack.i.l.s16 %v1624
          %v1733 = vunpack.i.h.s16 %v1624
          %v1734 = vunpack.i.l.s16 %v1638
          %v1735 = vunpack.i.h.s16 %v1638
          %v1736 = vunpack.i.l.s16 %v1640
          %v1737 = vunpack.i.h.s16 %v1640
          %v1738 = vunpack.i.l.s16 %v1642
          %v1739 = vunpack.i.h.s16 %v1642
          %v1740 = vunpack.i.l.s16 %v1666
          %v1741 = vunpack.i.h.s16 %v1666
          %v1742 = vunpack.i.l.s16 %v1680
          %v1743 = vunpack.i.h.s16 %v1680
          %v1744 = vunpack.i.l.s16 %v1688
          %v1745 = vunpack.i.h.s16 %v1688
          %v1746 = vunpack.i.l.s16 %v1690
          %v1747 = vunpack.i.h.s16 %v1690
          %v1748 = vunpack.i.l.s16 %v1673
          %v1749 = vunpack.i.h.s16 %v1673
          %v1750 = vunpack.i.l.s16 %v1687
          %v1751 = vunpack.i.h.s16 %v1687
          %v1752 = vunpack.i.l.s16 %v1689
          %v1753 = vunpack.i.h.s16 %v1689
          %v1754 = vunpack.i.l.s16 %v1691
          %v1755 = vunpack.i.h.s16 %v1691
          %v1756 = vpack.i.b16 %v1692, %v1692
          %v1757 = vpack.i.b16 %v1693, %v1693
          %v1758 = vpack.i.b16 %v1694, %v1694
          %v1759 = vpack.i.b16 %v1695, %v1695
          %v1760 = vpack.i.b16 %v1696, %v1696
          %v1761 = vpack.i.b16 %v1697, %v1697
          %v1762 = vpack.i.b16 %v1698, %v1698
          %v1763 = vpack.i.b16 %v1699, %v1699
          %v1764 = vpack.i.b16 %v1700, %v1700
          %v1765 = vpack.i.b16 %v1701, %v1701
          %v1766 = vpack.i.b16 %v1702, %v1702
          %v1767 = vpack.i.b16 %v1703, %v1703
          %v1768 = vpack.i.b16 %v1704, %v1704
          %v1769 = vpack.i.b16 %v1705, %v1705
          %v1770 = vpack.i.b16 %v1706, %v1706
          %v1771 = vpack.i.b16 %v1707, %v1707
          %v1772 = vpack.i.b16 %v1708, %v1708
          %v1773 = vpack.i.b16 %v1709, %v1709
          %v1774 = vpack.i.b16 %v1710, %v1710
          %v1775 = vpack.i.b16 %v1711, %v1711
          %v1776 = vpack.i.b16 %v1712, %v1712
          %v1777 = vpack.i.b16 %v1713, %v1713
          %v1778 = vpack.i.b16 %v1714, %v1714
          %v1779 = vpack.i.b16 %v1715, %v1715
          %v1780 = vpack.i.b16 %v1716, %v1716
          %v1781 = vpack.i.b16 %v1717, %v1717
          %v1782 = vpack.i.b16 %v1718, %v1718
          %v1783 = vpack.i.b16 %v1719, %v1719
          %v1784 = vpack.i.b16 %v1720, %v1720
          %v1785 = vpack.i.b16 %v1721, %v1721
          %v1786 = vpack.i.b16 %v1722, %v1722
          %v1787 = vpack.i.b16 %v1723, %v1723
          %v1788 = vpack.i.b16 %v1724, %v1724
          %v1789 = vpack.i.b16 %v1725, %v1725
          %v1790 = vpack.i.b16 %v1726, %v1726
          %v1791 = vpack.i.b16 %v1727, %v1727
          %v1792 = vpack.i.b16 %v1728, %v1728
          %v1793 = vpack.i.b16 %v1729, %v1729
          %v1794 = vpack.i.b16 %v1730, %v1730
          %v1795 = vpack.i.b16 %v1731, %v1731
          %v1796 = vpack.i.b16 %v1732, %v1732
          %v1797 = vpack.i.b16 %v1733, %v1733
          %v1798 = vpack.i.b16 %v1734, %v1734
          %v1799 = vpack.i.b16 %v1735, %v1735
          %v1800 = vpack.i.b16 %v1736, %v1736
          %v1801 = vpack.i.b16 %v1737, %v1737
          %v1802 = vpack.i.b16 %v1738, %v1738
          %v1803 = vpack.i.b16 %v1739, %v1739
          %v1804 = vpack.i.b16 %v1740, %v1740
          %v1805 = vpack.i.b16 %v1741, %v1741
          %v1806 = vpack.i.b16 %v1742, %v1742
          %v1807 = vpack.i.b16 %v1743, %v1743
          %v1808 = vpack.i.b16 %v1744, %v1744
          %v1809 = vpack.i.b16 %v1745, %v1745
          %v1810 = vpack.i.b16 %v1746, %v1746
          %v1811 = vpack.i.b16 %v1747, %v1747
          %v1812 = vpack.i.b16 %v1748, %v1748
          %v1813 = vpack.i.b16 %v1749, %v1749
          %v1814 = vpack.i.b16 %v1750, %v1750
          %v1815 = vpack.i.b16 %v1751, %v1751
          %v1816 = vpack.i.b16 %v1752, %v1752
          %v1817 = vpack.i.b16 %v1753, %v1753
          %v1818 = vpack.i.b16 %v1754, %v1754
          %v1819 = vpack.i.b16 %v1755, %v1755
          %vm1884 = vsmask.f32 7938
          %vm1885 = vmand %vm1293, %vm1884
          %v1886 = vld [vmem:[#allocation2] sm:$0x1]
          %v1887 = vsel %vm1885, %v1756, %v1886
          %1888 = vst [vmem:[#allocation2] sm:$0x1] %v1887
          %v1889 = vld [vmem:[#allocation2 + $0x1] sm:$0x1]
          %v1890 = vsel %vm1885, %v1757, %v1889
          %1891 = vst [vmem:[#allocation2 + $0x1] sm:$0x1] %v1890
          %v1892 = vld [vmem:[#allocation2 + $0x2] sm:$0x1]
          %v1893 = vsel %vm1885, %v1758, %v1892
          %1894 = vst [vmem:[#allocation2 + $0x2] sm:$0x1] %v1893
          %v1895 = vld [vmem:[#allocation2 + $0x3] sm:$0x1]
          %v1896 = vsel %vm1885, %v1759, %v1895
          %1897 = vst [vmem:[#allocation2 + $0x3] sm:$0x1] %v1896
          %v1898 = vld [vmem:[#allocation2 + $0x4] sm:$0x1]
          %v1899 = vsel %vm1885, %v1760, %v1898
          %1900 = vst [vmem:[#allocation2 + $0x4] sm:$0x1] %v1899
          %v1901 = vld [vmem:[#allocation2 + $0x5] sm:$0x1]
          %v1902 = vsel %vm1885, %v1761, %v1901
          %1903 = vst [vmem:[#allocation2 + $0x5] sm:$0x1] %v1902
          %v1904 = vld [vmem:[#allocation2 + $0x6] sm:$0x1]
          %v1905 = vsel %vm1885, %v1762, %v1904
          %1906 = vst [vmem:[#allocation2 + $0x6] sm:$0x1] %v1905
          %v1907 = vld [vmem:[#allocation2 + $0x7] sm:$0x1]
          %v1908 = vsel %vm1885, %v1763, %v1907
          %1909 = vst [vmem:[#allocation2 + $0x7] sm:$0x1] %v1908
          %v1910 = vld [vmem:[#allocation2 + $0x8] sm:$0x1]
          %v1911 = vsel %vm1885, %v1764, %v1910
          %1912 = vst [vmem:[#allocation2 + $0x8] sm:$0x1] %v1911
          %v1913 = vld [vmem:[#allocation2 + $0x9] sm:$0x1]
          %v1914 = vsel %vm1885, %v1765, %v1913
          %1915 = vst [vmem:[#allocation2 + $0x9] sm:$0x1] %v1914
          %v1916 = vld [vmem:[#allocation2 + $0xa] sm:$0x1]
          %v1917 = vsel %vm1885, %v1766, %v1916
          %1918 = vst [vmem:[#allocation2 + $0xa] sm:$0x1] %v1917
          %v1919 = vld [vmem:[#allocation2 + $0xb] sm:$0x1]
          %v1920 = vsel %vm1885, %v1767, %v1919
          %1921 = vst [vmem:[#allocation2 + $0xb] sm:$0x1] %v1920
          %v1922 = vld [vmem:[#allocation2 + $0xc] sm:$0x1]
          %v1923 = vsel %vm1885, %v1768, %v1922
          %1924 = vst [vmem:[#allocation2 + $0xc] sm:$0x1] %v1923
          %v1925 = vld [vmem:[#allocation2 + $0xd] sm:$0x1]
          %v1926 = vsel %vm1885, %v1769, %v1925
          %1927 = vst [vmem:[#allocation2 + $0xd] sm:$0x1] %v1926
          %v1928 = vld [vmem:[#allocation2 + $0xe] sm:$0x1]
          %v1929 = vsel %vm1885, %v1770, %v1928
          %1930 = vst [vmem:[#allocation2 + $0xe] sm:$0x1] %v1929
          %v1931 = vld [vmem:[#allocation2 + $0xf] sm:$0x1]
          %v1932 = vsel %vm1885, %v1771, %v1931
          %1933 = vst [vmem:[#allocation2 + $0xf] sm:$0x1] %v1932
          %v1934 = vld [vmem:[#allocation2 + $0x10] sm:$0x1]
          %v1935 = vsel %vm1885, %v1772, %v1934
          %1936 = vst [vmem:[#allocation2 + $0x10] sm:$0x1] %v1935
          %v1937 = vld [vmem:[#allocation2 + $0x11] sm:$0x1]
          %v1938 = vsel %vm1885, %v1773, %v1937
          %1939 = vst [vmem:[#allocation2 + $0x11] sm:$0x1] %v1938
          %v1940 = vld [vmem:[#allocation2 + $0x12] sm:$0x1]
          %v1941 = vsel %vm1885, %v1774, %v1940
          %1942 = vst [vmem:[#allocation2 + $0x12] sm:$0x1] %v1941
          %v1943 = vld [vmem:[#allocation2 + $0x13] sm:$0x1]
          %v1944 = vsel %vm1885, %v1775, %v1943
          %1945 = vst [vmem:[#allocation2 + $0x13] sm:$0x1] %v1944
          %v1946 = vld [vmem:[#allocation2 + $0x14] sm:$0x1]
          %v1947 = vsel %vm1885, %v1776, %v1946
          %1948 = vst [vmem:[#allocation2 + $0x14] sm:$0x1] %v1947
          %v1949 = vld [vmem:[#allocation2 + $0x15] sm:$0x1]
          %v1950 = vsel %vm1885, %v1777, %v1949
          %1951 = vst [vmem:[#allocation2 + $0x15] sm:$0x1] %v1950
          %v1952 = vld [vmem:[#allocation2 + $0x16] sm:$0x1]
          %v1953 = vsel %vm1885, %v1778, %v1952
          %1954 = vst [vmem:[#allocation2 + $0x16] sm:$0x1] %v1953
          %v1955 = vld [vmem:[#allocation2 + $0x17] sm:$0x1]
          %v1956 = vsel %vm1885, %v1779, %v1955
          %1957 = vst [vmem:[#allocation2 + $0x17] sm:$0x1] %v1956
          %v1958 = vld [vmem:[#allocation2 + $0x18] sm:$0x1]
          %v1959 = vsel %vm1885, %v1780, %v1958
          %1960 = vst [vmem:[#allocation2 + $0x18] sm:$0x1] %v1959
          %v1961 = vld [vmem:[#allocation2 + $0x19] sm:$0x1]
          %v1962 = vsel %vm1885, %v1781, %v1961
          %1963 = vst [vmem:[#allocation2 + $0x19] sm:$0x1] %v1962
          %v1964 = vld [vmem:[#allocation2 + $0x1a] sm:$0x1]
          %v1965 = vsel %vm1885, %v1782, %v1964
          %1966 = vst [vmem:[#allocation2 + $0x1a] sm:$0x1] %v1965
          %v1967 = vld [vmem:[#allocation2 + $0x1b] sm:$0x1]
          %v1968 = vsel %vm1885, %v1783, %v1967
          %1969 = vst [vmem:[#allocation2 + $0x1b] sm:$0x1] %v1968
          %v1970 = vld [vmem:[#allocation2 + $0x1c] sm:$0x1]
          %v1971 = vsel %vm1885, %v1784, %v1970
          %1972 = vst [vmem:[#allocation2 + $0x1c] sm:$0x1] %v1971
          %v1973 = vld [vmem:[#allocation2 + $0x1d] sm:$0x1]
          %v1974 = vsel %vm1885, %v1785, %v1973
          %1975 = vst [vmem:[#allocation2 + $0x1d] sm:$0x1] %v1974
          %v1976 = vld [vmem:[#allocation2 + $0x1e] sm:$0x1]
          %v1977 = vsel %vm1885, %v1786, %v1976
          %1978 = vst [vmem:[#allocation2 + $0x1e] sm:$0x1] %v1977
          %v1979 = vld [vmem:[#allocation2 + $0x1f] sm:$0x1]
          %v1980 = vsel %vm1885, %v1787, %v1979
          %1981 = vst [vmem:[#allocation2 + $0x1f] sm:$0x1] %v1980
          %v1982 = vld [vmem:[#allocation2 + $0x20] sm:$0x1]
          %v1983 = vsel %vm1885, %v1788, %v1982
          %1984 = vst [vmem:[#allocation2 + $0x20] sm:$0x1] %v1983
          %v1985 = vld [vmem:[#allocation2 + $0x21] sm:$0x1]
          %v1986 = vsel %vm1885, %v1789, %v1985
          %1987 = vst [vmem:[#allocation2 + $0x21] sm:$0x1] %v1986
          %v1988 = vld [vmem:[#allocation2 + $0x22] sm:$0x1]
          %v1989 = vsel %vm1885, %v1790, %v1988
          %1990 = vst [vmem:[#allocation2 + $0x22] sm:$0x1] %v1989
          %v1991 = vld [vmem:[#allocation2 + $0x23] sm:$0x1]
          %v1992 = vsel %vm1885, %v1791, %v1991
          %1993 = vst [vmem:[#allocation2 + $0x23] sm:$0x1] %v1992
          %v1994 = vld [vmem:[#allocation2 + $0x24] sm:$0x1]
          %v1995 = vsel %vm1885, %v1792, %v1994
          %1996 = vst [vmem:[#allocation2 + $0x24] sm:$0x1] %v1995
          %v1997 = vld [vmem:[#allocation2 + $0x25] sm:$0x1]
          %v1998 = vsel %vm1885, %v1793, %v1997
          %1999 = vst [vmem:[#allocation2 + $0x25] sm:$0x1] %v1998
          %v2000 = vld [vmem:[#allocation2 + $0x26] sm:$0x1]
          %v2001 = vsel %vm1885, %v1794, %v2000
          %2002 = vst [vmem:[#allocation2 + $0x26] sm:$0x1] %v2001
          %v2003 = vld [vmem:[#allocation2 + $0x27] sm:$0x1]
          %v2004 = vsel %vm1885, %v1795, %v2003
          %2005 = vst [vmem:[#allocation2 + $0x27] sm:$0x1] %v2004
          %v2006 = vld [vmem:[#allocation2 + $0x28] sm:$0x1]
          %v2007 = vsel %vm1885, %v1796, %v2006
          %2008 = vst [vmem:[#allocation2 + $0x28] sm:$0x1] %v2007
          %v2009 = vld [vmem:[#allocation2 + $0x29] sm:$0x1]
          %v2010 = vsel %vm1885, %v1797, %v2009
          %2011 = vst [vmem:[#allocation2 + $0x29] sm:$0x1] %v2010
          %v2012 = vld [vmem:[#allocation2 + $0x2a] sm:$0x1]
          %v2013 = vsel %vm1885, %v1798, %v2012
          %2014 = vst [vmem:[#allocation2 + $0x2a] sm:$0x1] %v2013
          %v2015 = vld [vmem:[#allocation2 + $0x2b] sm:$0x1]
          %v2016 = vsel %vm1885, %v1799, %v2015
          %2017 = vst [vmem:[#allocation2 + $0x2b] sm:$0x1] %v2016
          %v2018 = vld [vmem:[#allocation2 + $0x2c] sm:$0x1]
          %v2019 = vsel %vm1885, %v1800, %v2018
          %2020 = vst [vmem:[#allocation2 + $0x2c] sm:$0x1] %v2019
          %v2021 = vld [vmem:[#allocation2 + $0x2d] sm:$0x1]
          %v2022 = vsel %vm1885, %v1801, %v2021
          %2023 = vst [vmem:[#allocation2 + $0x2d] sm:$0x1] %v2022
          %v2024 = vld [vmem:[#allocation2 + $0x2e] sm:$0x1]
          %v2025 = vsel %vm1885, %v1802, %v2024
          %2026 = vst [vmem:[#allocation2 + $0x2e] sm:$0x1] %v2025
          %v2027 = vld [vmem:[#allocation2 + $0x2f] sm:$0x1]
          %v2028 = vsel %vm1885, %v1803, %v2027
          %2029 = vst [vmem:[#allocation2 + $0x2f] sm:$0x1] %v2028
          %v2030 = vld [vmem:[#allocation2 + $0x30] sm:$0x1]
          %v2031 = vsel %vm1885, %v1804, %v2030
          %2032 = vst [vmem:[#allocation2 + $0x30] sm:$0x1] %v2031
          %v2033 = vld [vmem:[#allocation2 + $0x31] sm:$0x1]
          %v2034 = vsel %vm1885, %v1805, %v2033
          %2035 = vst [vmem:[#allocation2 + $0x31] sm:$0x1] %v2034
          %v2036 = vld [vmem:[#allocation2 + $0x32] sm:$0x1]
          %v2037 = vsel %vm1885, %v1806, %v2036
          %2038 = vst [vmem:[#allocation2 + $0x32] sm:$0x1] %v2037
          %v2039 = vld [vmem:[#allocation2 + $0x33] sm:$0x1]
          %v2040 = vsel %vm1885, %v1807, %v2039
          %2041 = vst [vmem:[#allocation2 + $0x33] sm:$0x1] %v2040
          %v2042 = vld [vmem:[#allocation2 + $0x34] sm:$0x1]
          %v2043 = vsel %vm1885, %v1808, %v2042
          %2044 = vst [vmem:[#allocation2 + $0x34] sm:$0x1] %v2043
          %v2045 = vld [vmem:[#allocation2 + $0x35] sm:$0x1]
          %v2046 = vsel %vm1885, %v1809, %v2045
          %2047 = vst [vmem:[#allocation2 + $0x35] sm:$0x1] %v2046
          %v2048 = vld [vmem:[#allocation2 + $0x36] sm:$0x1]
          %v2049 = vsel %vm1885, %v1810, %v2048
          %2050 = vst [vmem:[#allocation2 + $0x36] sm:$0x1] %v2049
          %v2051 = vld [vmem:[#allocation2 + $0x37] sm:$0x1]
          %v2052 = vsel %vm1885, %v1811, %v2051
          %2053 = vst [vmem:[#allocation2 + $0x37] sm:$0x1] %v2052
          %v2054 = vld [vmem:[#allocation2 + $0x38] sm:$0x1]
          %v2055 = vsel %vm1885, %v1812, %v2054
          %2056 = vst [vmem:[#allocation2 + $0x38] sm:$0x1] %v2055
          %v2057 = vld [vmem:[#allocation2 + $0x39] sm:$0x1]
          %v2058 = vsel %vm1885, %v1813, %v2057
          %2059 = vst [vmem:[#allocation2 + $0x39] sm:$0x1] %v2058
          %v2060 = vld [vmem:[#allocation2 + $0x3a] sm:$0x1]
          %v2061 = vsel %vm1885, %v1814, %v2060
          %2062 = vst [vmem:[#allocation2 + $0x3a] sm:$0x1] %v2061
          %v2063 = vld [vmem:[#allocation2 + $0x3b] sm:$0x1]
          %v2064 = vsel %vm1885, %v1815, %v2063
          %2065 = vst [vmem:[#allocation2 + $0x3b] sm:$0x1] %v2064
          %v2066 = vld [vmem:[#allocation2 + $0x3c] sm:$0x1]
          %v2067 = vsel %vm1885, %v1816, %v2066
          %2068 = vst [vmem:[#allocation2 + $0x3c] sm:$0x1] %v2067
          %v2069 = vld [vmem:[#allocation2 + $0x3d] sm:$0x1]
          %v2070 = vsel %vm1885, %v1817, %v2069
          %2071 = vst [vmem:[#allocation2 + $0x3d] sm:$0x1] %v2070
          %v2072 = vld [vmem:[#allocation2 + $0x3e] sm:$0x1]
          %v2073 = vsel %vm1885, %v1818, %v2072
          %2074 = vst [vmem:[#allocation2 + $0x3e] sm:$0x1] %v2073
          %v2075 = vld [vmem:[#allocation2 + $0x3f] sm:$0x1]
          %v2076 = vsel %vm1885, %v1819, %v2075
          %2077 = vst [vmem:[#allocation2 + $0x3f] sm:$0x1] %v2076
          %2078 = vst [vmem:[#allocation3] sm:$0x3] 0.0
        $region84: #{cnn_forward.1} parent=55 // pred_fallthru
          _
        %s2079 = smul.u32 %s24, 16
        %s2080 = scalar_lea.vmem [#allocation2], %s2079
        %v2081 = vld [vmem:[%s2080] sm:$0x1]
        %v2082 = vld [vmem:[%s2080 + $0x1] sm:$0x1]
        %v2083 = vld [vmem:[%s2080 + $0x2] sm:$0x1]
        %v2084 = vld [vmem:[%s2080 + $0x3] sm:$0x1]
        %v2085 = vld [vmem:[%s2080 + $0x4] sm:$0x1]
        %v2086 = vld [vmem:[%s2080 + $0x5] sm:$0x1]
        %v2087 = vld [vmem:[%s2080 + $0x6] sm:$0x1]
        %v2088 = vld [vmem:[%s2080 + $0x7] sm:$0x1]
        %v2089 = vld [vmem:[%s2080 + $0x8] sm:$0x1]
        %v2090 = vld [vmem:[%s2080 + $0x9] sm:$0x1]
        %v2091 = vld [vmem:[%s2080 + $0xa] sm:$0x1]
        %v2092 = vld [vmem:[%s2080 + $0xb] sm:$0x1]
        %v2093 = vld [vmem:[%s2080 + $0xc] sm:$0x1]
        %v2094 = vld [vmem:[%s2080 + $0xd] sm:$0x1]
        %v2095 = vld [vmem:[%s2080 + $0xe] sm:$0x1]
        %v2096 = vld [vmem:[%s2080 + $0xf] sm:$0x1]
        %v2097 = vld [vmem:[%s362] sm:$0xf]
        %v2098 = vld [vmem:[%s362 + $0x4] sm:$0xf]
        %v2099 = vld [vmem:[%s362 + $0x8] sm:$0xf]
        %v2100 = vld [vmem:[%s362 + $0xc] sm:$0xf]
        %v2101 = vld [vmem:[%s362 + $0x10] sm:$0xf]
        %v2102 = vld [vmem:[%s362 + $0x14] sm:$0xf]
        %v2103 = vld [vmem:[%s362 + $0x18] sm:$0xf]
        %v2104 = vld [vmem:[%s362 + $0x1c] sm:$0xf]
        %v2105 = vld [vmem:[%s362 + $0x20] sm:$0xf]
        %v2106 = vld [vmem:[%s362 + $0x24] sm:$0xf]
        %v2107 = vld [vmem:[%s362 + $0x28] sm:$0xf]
        %v2108 = vld [vmem:[%s362 + $0x2c] sm:$0xf]
        %v2109 = vld [vmem:[%s362 + $0x30] sm:$0xf]
        %v2110 = vld [vmem:[%s362 + $0x34] sm:$0xf]
        %v2111 = vld [vmem:[%s362 + $0x38] sm:$0xf]
        %v2112 = vld [vmem:[%s362 + $0x3c] sm:$0xf]
        %v2113 = vld [vmem:[%s362 + $0x40] sm:$0xf]
        %v2114 = vld [vmem:[%s362 + $0x44] sm:$0xf]
        %v2115 = vld [vmem:[%s362 + $0x48] sm:$0xf]
        %v2116 = vld [vmem:[%s362 + $0x4c] sm:$0xf]
        %v2117 = vld [vmem:[%s362 + $0x50] sm:$0xf]
        %v2118 = vld [vmem:[%s362 + $0x54] sm:$0xf]
        %v2119 = vld [vmem:[%s362 + $0x58] sm:$0xf]
        %v2120 = vld [vmem:[%s362 + $0x5c] sm:$0xf]
        %v2121 = vld [vmem:[%s362 + $0x60] sm:$0xf]
        %v2122 = vld [vmem:[%s362 + $0x64] sm:$0xf]
        %v2123 = vld [vmem:[%s362 + $0x68] sm:$0xf]
        %v2124 = vld [vmem:[%s362 + $0x6c] sm:$0xf]
        %v2125 = vld [vmem:[%s362 + $0x70] sm:$0xf]
        %v2126 = vld [vmem:[%s362 + $0x74] sm:$0xf]
        %v2127 = vld [vmem:[%s362 + $0x78] sm:$0xf]
        %v2128 = vld [vmem:[%s362 + $0x7c] sm:$0xf]
        %v2129 = vld [vmem:[%s362 + $0x80] sm:$0xf]
        %v2130 = vld [vmem:[%s362 + $0x84] sm:$0xf]
        %v2131 = vld [vmem:[%s362 + $0x88] sm:$0xf]
        %v2132 = vld [vmem:[%s362 + $0x8c] sm:$0xf]
        %v2133 = vld [vmem:[%s362 + $0x90] sm:$0xf]
        %v2134 = vld [vmem:[%s362 + $0x94] sm:$0xf]
        %v2135 = vld [vmem:[%s362 + $0x98] sm:$0xf]
        %v2136 = vld [vmem:[%s362 + $0x9c] sm:$0xf]
        %v2137 = vld [vmem:[%s362 + $0xa0] sm:$0xf]
        %v2138 = vld [vmem:[%s362 + $0xa4] sm:$0xf]
        %v2139 = vld [vmem:[%s362 + $0xa8] sm:$0xf]
        %v2140 = vld [vmem:[%s362 + $0xac] sm:$0xf]
        %v2141 = vld [vmem:[%s362 + $0xb0] sm:$0xf]
        %v2142 = vld [vmem:[%s362 + $0xb4] sm:$0xf]
        %v2143 = vld [vmem:[%s362 + $0xb8] sm:$0xf]
        %v2144 = vld [vmem:[%s362 + $0xbc] sm:$0xf]
        %v2145 = vld [vmem:[%s362 + $0xc0] sm:$0xf]
        %v2146 = vld [vmem:[%s362 + $0xc4] sm:$0xf]
        %v2147 = vld [vmem:[%s362 + $0xc8] sm:$0xf]
        %v2148 = vld [vmem:[%s362 + $0xcc] sm:$0xf]
        %v2149 = vld [vmem:[%s362 + $0xd0] sm:$0xf]
        %v2150 = vld [vmem:[%s362 + $0xd4] sm:$0xf]
        %v2151 = vld [vmem:[%s362 + $0xd8] sm:$0xf]
        %v2152 = vld [vmem:[%s362 + $0xdc] sm:$0xf]
        %v2153 = vld [vmem:[%s362 + $0xe0] sm:$0xf]
        %v2154 = vld [vmem:[%s362 + $0xe4] sm:$0xf]
        %v2155 = vld [vmem:[%s362 + $0xe8] sm:$0xf]
        %v2156 = vld [vmem:[%s362 + $0xec] sm:$0xf]
        %v2157 = vld [vmem:[%s362 + $0xf0] sm:$0xf]
        %v2158 = vld [vmem:[%s362 + $0xf4] sm:$0xf]
        %v2159 = vld [vmem:[%s362 + $0xf8] sm:$0xf]
        %v2160 = vld [vmem:[%s362 + $0xfc] sm:$0xf]
        %v2161 = vld [vmem:[%s362 + $0x100] sm:$0xf]
        %v2162 = vld [vmem:[%s362 + $0x104] sm:$0xf]
        %v2163 = vld [vmem:[%s362 + $0x108] sm:$0xf]
        %v2164 = vld [vmem:[%s362 + $0x10c] sm:$0xf]
        %v2165 = vld [vmem:[%s362 + $0x110] sm:$0xf]
        %v2166 = vld [vmem:[%s362 + $0x114] sm:$0xf]
        %v2167 = vld [vmem:[%s362 + $0x118] sm:$0xf]
        %v2168 = vld [vmem:[%s362 + $0x11c] sm:$0xf]
        %v2169 = vld [vmem:[%s362 + $0x120] sm:$0xf]
        %v2170 = vld [vmem:[%s362 + $0x124] sm:$0xf]
        %v2171 = vld [vmem:[%s362 + $0x128] sm:$0xf]
        %v2172 = vld [vmem:[%s362 + $0x12c] sm:$0xf]
        %v2173 = vld [vmem:[%s362 + $0x130] sm:$0xf]
        %v2174 = vld [vmem:[%s362 + $0x134] sm:$0xf]
        %v2175 = vld [vmem:[%s362 + $0x138] sm:$0xf]
        %v2176 = vld [vmem:[%s362 + $0x13c] sm:$0xf]
        %v2177 = vld [vmem:[%s362 + $0x140] sm:$0xf]
        %v2178 = vld [vmem:[%s362 + $0x144] sm:$0xf]
        %v2179 = vld [vmem:[%s362 + $0x148] sm:$0xf]
        %v2180 = vld [vmem:[%s362 + $0x14c] sm:$0xf]
        %v2181 = vld [vmem:[%s362 + $0x150] sm:$0xf]
        %v2182 = vld [vmem:[%s362 + $0x154] sm:$0xf]
        %v2183 = vld [vmem:[%s362 + $0x158] sm:$0xf]
        %v2184 = vld [vmem:[%s362 + $0x15c] sm:$0xf]
        %v2185 = vld [vmem:[%s362 + $0x160] sm:$0xf]
        %v2186 = vld [vmem:[%s362 + $0x164] sm:$0xf]
        %v2187 = vld [vmem:[%s362 + $0x168] sm:$0xf]
        %v2188 = vld [vmem:[%s362 + $0x16c] sm:$0xf]
        %v2189 = vld [vmem:[%s362 + $0x170] sm:$0xf]
        %v2190 = vld [vmem:[%s362 + $0x174] sm:$0xf]
        %v2191 = vld [vmem:[%s362 + $0x178] sm:$0xf]
        %v2192 = vld [vmem:[%s362 + $0x17c] sm:$0xf]
        %v2193 = vld [vmem:[%s362 + $0x180] sm:$0xf]
        %v2194 = vld [vmem:[%s362 + $0x184] sm:$0xf]
        %v2195 = vld [vmem:[%s362 + $0x188] sm:$0xf]
        %v2196 = vld [vmem:[%s362 + $0x18c] sm:$0xf]
        %v2197 = vld [vmem:[%s362 + $0x190] sm:$0xf]
        %v2198 = vld [vmem:[%s362 + $0x194] sm:$0xf]
        %v2199 = vld [vmem:[%s362 + $0x198] sm:$0xf]
        %v2200 = vld [vmem:[%s362 + $0x19c] sm:$0xf]
        %v2201 = vld [vmem:[%s362 + $0x1a0] sm:$0xf]
        %v2202 = vld [vmem:[%s362 + $0x1a4] sm:$0xf]
        %v2203 = vld [vmem:[%s362 + $0x1a8] sm:$0xf]
        %v2204 = vld [vmem:[%s362 + $0x1ac] sm:$0xf]
        %v2205 = vld [vmem:[%s362 + $0x1b0] sm:$0xf]
        %v2206 = vld [vmem:[%s362 + $0x1b4] sm:$0xf]
        %v2207 = vld [vmem:[%s362 + $0x1b8] sm:$0xf]
        %v2208 = vld [vmem:[%s362 + $0x1bc] sm:$0xf]
        %v2209 = vld [vmem:[%s362 + $0x1c0] sm:$0xf]
        %v2210 = vld [vmem:[%s362 + $0x1c4] sm:$0xf]
        %v2211 = vld [vmem:[%s362 + $0x1c8] sm:$0xf]
        %v2212 = vld [vmem:[%s362 + $0x1cc] sm:$0xf]
        %v2213 = vld [vmem:[%s362 + $0x1d0] sm:$0xf]
        %v2214 = vld [vmem:[%s362 + $0x1d4] sm:$0xf]
        %v2215 = vld [vmem:[%s362 + $0x1d8] sm:$0xf]
        %v2216 = vld [vmem:[%s362 + $0x1dc] sm:$0xf]
        %v2217 = vld [vmem:[%s362 + $0x1e0] sm:$0xf]
        %v2218 = vld [vmem:[%s362 + $0x1e4] sm:$0xf]
        %v2219 = vld [vmem:[%s362 + $0x1e8] sm:$0xf]
        %v2220 = vld [vmem:[%s362 + $0x1ec] sm:$0xf]
        %v2221 = vld [vmem:[%s362 + $0x1f0] sm:$0xf]
        %v2222 = vld [vmem:[%s362 + $0x1f4] sm:$0xf]
        %v2223 = vld [vmem:[%s362 + $0x1f8] sm:$0xf]
        %v2224 = vld [vmem:[%s362 + $0x1fc] sm:$0xf]
        %v2225 = vld [vmem:[%s362 + $0x200] sm:$0xf]
        %v2226 = vld [vmem:[%s362 + $0x204] sm:$0xf]
        %v2227 = vld [vmem:[%s362 + $0x208] sm:$0xf]
        %v2228 = vld [vmem:[%s362 + $0x20c] sm:$0xf]
        %v2229 = vld [vmem:[%s362 + $0x210] sm:$0xf]
        %v2230 = vld [vmem:[%s362 + $0x214] sm:$0xf]
        %v2231 = vld [vmem:[%s362 + $0x218] sm:$0xf]
        %v2232 = vld [vmem:[%s362 + $0x21c] sm:$0xf]
        %v2233 = vld [vmem:[%s362 + $0x220] sm:$0xf]
        %v2234 = vld [vmem:[%s362 + $0x224] sm:$0xf]
        %v2235 = vld [vmem:[%s362 + $0x228] sm:$0xf]
        %v2236 = vld [vmem:[%s362 + $0x22c] sm:$0xf]
        %v2237 = vld [vmem:[%s362 + $0x230] sm:$0xf]
        %v2238 = vld [vmem:[%s362 + $0x234] sm:$0xf]
        %v2239 = vld [vmem:[%s362 + $0x238] sm:$0xf]
        %v2240 = vld [vmem:[%s362 + $0x23c] sm:$0xf]
        %v2241 = vld [vmem:[%s362 + $0x240] sm:$0xf]
        %v2242 = vld [vmem:[%s362 + $0x244] sm:$0xf]
        %v2243 = vld [vmem:[%s362 + $0x248] sm:$0xf]
        %v2244 = vld [vmem:[%s362 + $0x24c] sm:$0xf]
        %v2245 = vld [vmem:[%s362 + $0x250] sm:$0xf]
        %v2246 = vld [vmem:[%s362 + $0x254] sm:$0xf]
        %v2247 = vld [vmem:[%s362 + $0x258] sm:$0xf]
        %v2248 = vld [vmem:[%s362 + $0x25c] sm:$0xf]
        %v2249 = vld [vmem:[%s362 + $0x260] sm:$0xf]
        %v2250 = vld [vmem:[%s362 + $0x264] sm:$0xf]
        %v2251 = vld [vmem:[%s362 + $0x268] sm:$0xf]
        %v2252 = vld [vmem:[%s362 + $0x26c] sm:$0xf]
        %v2253 = vld [vmem:[%s362 + $0x270] sm:$0xf]
        %v2254 = vld [vmem:[%s362 + $0x274] sm:$0xf]
        %v2255 = vld [vmem:[%s362 + $0x278] sm:$0xf]
        %v2256 = vld [vmem:[%s362 + $0x27c] sm:$0xf]
        %v2257 = vld [vmem:[%s362 + $0x280] sm:$0xf]
        %v2258 = vld [vmem:[%s362 + $0x284] sm:$0xf]
        %v2259 = vld [vmem:[%s362 + $0x288] sm:$0xf]
        %v2260 = vld [vmem:[%s362 + $0x28c] sm:$0xf]
        %v2261 = vld [vmem:[%s362 + $0x290] sm:$0xf]
        %v2262 = vld [vmem:[%s362 + $0x294] sm:$0xf]
        %v2263 = vld [vmem:[%s362 + $0x298] sm:$0xf]
        %v2264 = vld [vmem:[%s362 + $0x29c] sm:$0xf]
        %v2265 = vld [vmem:[%s362 + $0x2a0] sm:$0xf]
        %v2266 = vld [vmem:[%s362 + $0x2a4] sm:$0xf]
        %v2267 = vld [vmem:[%s362 + $0x2a8] sm:$0xf]
        %v2268 = vld [vmem:[%s362 + $0x2ac] sm:$0xf]
        %v2269 = vld [vmem:[%s362 + $0x2b0] sm:$0xf]
        %v2270 = vld [vmem:[%s362 + $0x2b4] sm:$0xf]
        %v2271 = vld [vmem:[%s362 + $0x2b8] sm:$0xf]
        %v2272 = vld [vmem:[%s362 + $0x2bc] sm:$0xf]
        %v2273 = vld [vmem:[%s362 + $0x2c0] sm:$0xf]
        %v2274 = vld [vmem:[%s362 + $0x2c4] sm:$0xf]
        %v2275 = vld [vmem:[%s362 + $0x2c8] sm:$0xf]
        %v2276 = vld [vmem:[%s362 + $0x2cc] sm:$0xf]
        %v2277 = vld [vmem:[%s362 + $0x2d0] sm:$0xf]
        %v2278 = vld [vmem:[%s362 + $0x2d4] sm:$0xf]
        %v2279 = vld [vmem:[%s362 + $0x2d8] sm:$0xf]
        %v2280 = vld [vmem:[%s362 + $0x2dc] sm:$0xf]
        %v2281 = vld [vmem:[%s362 + $0x2e0] sm:$0xf]
        %v2282 = vld [vmem:[%s362 + $0x2e4] sm:$0xf]
        %v2283 = vld [vmem:[%s362 + $0x2e8] sm:$0xf]
        %v2284 = vld [vmem:[%s362 + $0x2ec] sm:$0xf]
        %v2285 = vld [vmem:[%s362 + $0x2f0] sm:$0xf]
        %v2286 = vld [vmem:[%s362 + $0x2f4] sm:$0xf]
        %v2287 = vld [vmem:[%s362 + $0x2f8] sm:$0xf]
        %v2288 = vld [vmem:[%s362 + $0x2fc] sm:$0xf]
        %v2289 = vld [vmem:[%s362 + $0x300] sm:$0xf]
        %v2290 = vld [vmem:[%s362 + $0x304] sm:$0xf]
        %v2291 = vld [vmem:[%s362 + $0x308] sm:$0xf]
        %v2292 = vld [vmem:[%s362 + $0x30c] sm:$0xf]
        %v2293 = vld [vmem:[%s362 + $0x310] sm:$0xf]
        %v2294 = vld [vmem:[%s362 + $0x314] sm:$0xf]
        %v2295 = vld [vmem:[%s362 + $0x318] sm:$0xf]
        %v2296 = vld [vmem:[%s362 + $0x31c] sm:$0xf]
        %v2297 = vld [vmem:[%s362 + $0x320] sm:$0xf]
        %v2298 = vld [vmem:[%s362 + $0x324] sm:$0xf]
        %v2299 = vld [vmem:[%s362 + $0x328] sm:$0xf]
        %v2300 = vld [vmem:[%s362 + $0x32c] sm:$0xf]
        %v2301 = vld [vmem:[%s362 + $0x330] sm:$0xf]
        %v2302 = vld [vmem:[%s362 + $0x334] sm:$0xf]
        %v2303 = vld [vmem:[%s362 + $0x338] sm:$0xf]
        %v2304 = vld [vmem:[%s362 + $0x33c] sm:$0xf]
        %v2305 = vld [vmem:[%s362 + $0x340] sm:$0xf]
        %v2306 = vld [vmem:[%s362 + $0x344] sm:$0xf]
        %v2307 = vld [vmem:[%s362 + $0x348] sm:$0xf]
        %v2308 = vld [vmem:[%s362 + $0x34c] sm:$0xf]
        %v2309 = vld [vmem:[%s362 + $0x350] sm:$0xf]
        %v2310 = vld [vmem:[%s362 + $0x354] sm:$0xf]
        %v2311 = vld [vmem:[%s362 + $0x358] sm:$0xf]
        %v2312 = vld [vmem:[%s362 + $0x35c] sm:$0xf]
        %v2313 = vld [vmem:[%s362 + $0x360] sm:$0xf]
        %v2314 = vld [vmem:[%s362 + $0x364] sm:$0xf]
        %v2315 = vld [vmem:[%s362 + $0x368] sm:$0xf]
        %v2316 = vld [vmem:[%s362 + $0x36c] sm:$0xf]
        %v2317 = vld [vmem:[%s362 + $0x370] sm:$0xf]
        %v2318 = vld [vmem:[%s362 + $0x374] sm:$0xf]
        %v2319 = vld [vmem:[%s362 + $0x378] sm:$0xf]
        %v2320 = vld [vmem:[%s362 + $0x37c] sm:$0xf]
        %v2321 = vld [vmem:[%s362 + $0x380] sm:$0xf]
        %v2322 = vld [vmem:[%s362 + $0x384] sm:$0xf]
        %v2323 = vld [vmem:[%s362 + $0x388] sm:$0xf]
        %v2324 = vld [vmem:[%s362 + $0x38c] sm:$0xf]
        %v2325 = vld [vmem:[%s362 + $0x390] sm:$0xf]
        %v2326 = vld [vmem:[%s362 + $0x394] sm:$0xf]
        %v2327 = vld [vmem:[%s362 + $0x398] sm:$0xf]
        %v2328 = vld [vmem:[%s362 + $0x39c] sm:$0xf]
        %v2329 = vld [vmem:[%s362 + $0x3a0] sm:$0xf]
        %v2330 = vld [vmem:[%s362 + $0x3a4] sm:$0xf]
        %v2331 = vld [vmem:[%s362 + $0x3a8] sm:$0xf]
        %v2332 = vld [vmem:[%s362 + $0x3ac] sm:$0xf]
        %v2333 = vld [vmem:[%s362 + $0x3b0] sm:$0xf]
        %v2334 = vld [vmem:[%s362 + $0x3b4] sm:$0xf]
        %v2335 = vld [vmem:[%s362 + $0x3b8] sm:$0xf]
        %v2336 = vld [vmem:[%s362 + $0x3bc] sm:$0xf]
        %v2337 = vld [vmem:[%s362 + $0x3c0] sm:$0xf]
        %v2338 = vld [vmem:[%s362 + $0x3c4] sm:$0xf]
        %v2339 = vld [vmem:[%s362 + $0x3c8] sm:$0xf]
        %v2340 = vld [vmem:[%s362 + $0x3cc] sm:$0xf]
        %v2341 = vld [vmem:[%s362 + $0x3d0] sm:$0xf]
        %v2342 = vld [vmem:[%s362 + $0x3d4] sm:$0xf]
        %v2343 = vld [vmem:[%s362 + $0x3d8] sm:$0xf]
        %v2344 = vld [vmem:[%s362 + $0x3dc] sm:$0xf]
        %v2345 = vld [vmem:[%s362 + $0x3e0] sm:$0xf]
        %v2346 = vld [vmem:[%s362 + $0x3e4] sm:$0xf]
        %v2347 = vld [vmem:[%s362 + $0x3e8] sm:$0xf]
        %v2348 = vld [vmem:[%s362 + $0x3ec] sm:$0xf]
        %v2349 = vld [vmem:[%s362 + $0x3f0] sm:$0xf]
        %v2350 = vld [vmem:[%s362 + $0x3f4] sm:$0xf]
        %v2351 = vld [vmem:[%s362 + $0x3f8] sm:$0xf]
        %v2352 = vld [vmem:[%s362 + $0x3fc] sm:$0xf]
        %v2369 = vunpack.c.l.b16 %v2097
        %v2370 = vunpack.c.l.b16 %v2098
        %v2371 = vunpack.c.l.b16 %v2099
        %v2372 = vunpack.c.l.b16 %v2100
        %v2373 = vunpack.c.l.b16 %v2101
        %v2374 = vunpack.c.l.b16 %v2102
        %v2375 = vunpack.c.l.b16 %v2103
        %v2376 = vunpack.c.l.b16 %v2104
        %v2377 = vunpack.c.l.b16 %v2105
        %v2378 = vunpack.c.l.b16 %v2106
        %v2379 = vunpack.c.l.b16 %v2107
        %v2380 = vunpack.c.l.b16 %v2108
        %v2381 = vunpack.c.l.b16 %v2109
        %v2382 = vunpack.c.l.b16 %v2110
        %v2383 = vunpack.c.l.b16 %v2111
        %v2384 = vunpack.c.l.b16 %v2112
        %v2385 = vpack.c.b16 %v2370, %v2369
        %v2386 = vpack.c.b16 %v2372, %v2371
        %v2387 = vpack.c.b16 %v2374, %v2373
        %v2388 = vpack.c.b16 %v2376, %v2375
        %v2389 = vpack.c.b16 %v2378, %v2377
        %v2390 = vpack.c.b16 %v2380, %v2379
        %v2391 = vpack.c.b16 %v2382, %v2381
        %v2392 = vpack.c.b16 %v2384, %v2383
        %2401 = vmatprep.subr.bf16.mxu0 0
        %2402 = vmatpush1.bf16.msra.mxu0 %v2385
        %2403 = vmatprep.subr.bf16.mxu0 0
        %2404 = vmatpush1.bf16.msra.mxu0 %v2386
        %2405 = vmatprep.subr.bf16.mxu0 0
        %2406 = vmatpush1.bf16.msra.mxu0 %v2387
        %2407 = vmatprep.subr.bf16.mxu0 0
        %2408 = vmatpush1.bf16.msra.mxu0 %v2388
        %2409 = vmatprep.subr.bf16.mxu0 0
        %2410 = vmatpush1.bf16.msra.mxu0 %v2389
        %2411 = vmatprep.subr.bf16.mxu0 0
        %2412 = vmatpush1.bf16.msra.mxu0 %v2390
        %2413 = vmatprep.subr.bf16.mxu0 0
        %2414 = vmatpush1.bf16.msra.mxu0 %v2391
        %2415 = vmatprep.subr.bf16.mxu0 0
        %2416 = vmatpush1.bf16.msra.mxu0 %v2392
        %2417 = vmatprep.subr.bf16.mxu0 0
        %2418 = vmatpush1.bf16.msra.mxu0 0
        %2419 = vmatprep.subr.bf16.mxu0 0
        %2420 = vmatpush1.bf16.msra.mxu0 0
        %2421 = vmatprep.subr.bf16.mxu0 0
        %2422 = vmatpush1.bf16.msra.mxu0 0
        %2423 = vmatprep.subr.bf16.mxu0 0
        %2424 = vmatpush1.bf16.msra.mxu0 0
        %2425 = vmatprep.subr.bf16.mxu0 0
        %2426 = vmatpush1.bf16.msra.mxu0 0
        %2427 = vmatprep.subr.bf16.mxu0 0
        %2428 = vmatpush1.bf16.msra.mxu0 0
        %2429 = vmatprep.subr.bf16.mxu0 0
        %2430 = vmatpush1.bf16.msra.mxu0 0
        %2431 = vmatprep.subr.bf16.mxu0 0
        %2432 = vmatpush1.bf16.msra.mxu0 0
        %2433 = vmatprep.mubr.bf16.mxu0 0
        %2434 = vmatmul.mubr.bf16.gmra.mrb[0].mxu0 %v2081
        %v2435 = vpop.f32.mrb[0].mxu0
        %v2436 = vadd.f32 0.0, %v2435
        %v2437 = vpop.f32.mrb[0].mxu0
        %v2438 = vpop.f32.mrb[0].mxu0
        %v2439 = vpop.f32.mrb[0].mxu0
        %2440 = vdwg.mxu0
        %v2457 = vunpack.c.l.b16 %v2113
        %v2458 = vunpack.c.l.b16 %v2114
        %v2459 = vunpack.c.l.b16 %v2115
        %v2460 = vunpack.c.l.b16 %v2116
        %v2461 = vunpack.c.l.b16 %v2117
        %v2462 = vunpack.c.l.b16 %v2118
        %v2463 = vunpack.c.l.b16 %v2119
        %v2464 = vunpack.c.l.b16 %v2120
        %v2465 = vunpack.c.l.b16 %v2121
        %v2466 = vunpack.c.l.b16 %v2122
        %v2467 = vunpack.c.l.b16 %v2123
        %v2468 = vunpack.c.l.b16 %v2124
        %v2469 = vunpack.c.l.b16 %v2125
        %v2470 = vunpack.c.l.b16 %v2126
        %v2471 = vunpack.c.l.b16 %v2127
        %v2472 = vunpack.c.l.b16 %v2128
        %v2473 = vpack.c.b16 %v2458, %v2457
        %v2474 = vpack.c.b16 %v2460, %v2459
        %v2475 = vpack.c.b16 %v2462, %v2461
        %v2476 = vpack.c.b16 %v2464, %v2463
        %v2477 = vpack.c.b16 %v2466, %v2465
        %v2478 = vpack.c.b16 %v2468, %v2467
        %v2479 = vpack.c.b16 %v2470, %v2469
        %v2480 = vpack.c.b16 %v2472, %v2471
        %2489 = vmatprep.subr.bf16.mxu0 0
        %2490 = vmatpush1.bf16.msra.mxu0 %v2473
        %2491 = vmatprep.subr.bf16.mxu0 0
        %2492 = vmatpush1.bf16.msra.mxu0 %v2474
        %2493 = vmatprep.subr.bf16.mxu0 0
        %2494 = vmatpush1.bf16.msra.mxu0 %v2475
        %2495 = vmatprep.subr.bf16.mxu0 0
        %2496 = vmatpush1.bf16.msra.mxu0 %v2476
        %2497 = vmatprep.subr.bf16.mxu0 0
        %2498 = vmatpush1.bf16.msra.mxu0 %v2477
        %2499 = vmatprep.subr.bf16.mxu0 0
        %2500 = vmatpush1.bf16.msra.mxu0 %v2478
        %2501 = vmatprep.subr.bf16.mxu0 0
        %2502 = vmatpush1.bf16.msra.mxu0 %v2479
        %2503 = vmatprep.subr.bf16.mxu0 0
        %2504 = vmatpush1.bf16.msra.mxu0 %v2480
        %2505 = vmatprep.subr.bf16.mxu0 0
        %2506 = vmatpush1.bf16.msra.mxu0 0
        %2507 = vmatprep.subr.bf16.mxu0 0
        %2508 = vmatpush1.bf16.msra.mxu0 0
        %2509 = vmatprep.subr.bf16.mxu0 0
        %2510 = vmatpush1.bf16.msra.mxu0 0
        %2511 = vmatprep.subr.bf16.mxu0 0
        %2512 = vmatpush1.bf16.msra.mxu0 0
        %2513 = vmatprep.subr.bf16.mxu0 0
        %2514 = vmatpush1.bf16.msra.mxu0 0
        %2515 = vmatprep.subr.bf16.mxu0 0
        %2516 = vmatpush1.bf16.msra.mxu0 0
        %2517 = vmatprep.subr.bf16.mxu0 0
        %2518 = vmatpush1.bf16.msra.mxu0 0
        %2519 = vmatprep.subr.bf16.mxu0 0
        %2520 = vmatpush1.bf16.msra.mxu0 0
        %2521 = vmatprep.mubr.bf16.mxu0 0
        %2522 = vmatmul.mubr.bf16.gmra.mrb[0].mxu0 %v2082
        %v2523 = vpop.f32.mrb[0].mxu0
        %v2524 = vadd.f32 0.0, %v2523
        %v2525 = vpop.f32.mrb[0].mxu0
        %v2526 = vpop.f32.mrb[0].mxu0
        %v2527 = vpop.f32.mrb[0].mxu0
        %2528 = vdwg.mxu0
        %v2545 = vunpack.c.l.b16 %v2129
        %v2546 = vunpack.c.l.b16 %v2130
        %v2547 = vunpack.c.l.b16 %v2131
        %v2548 = vunpack.c.l.b16 %v2132
        %v2549 = vunpack.c.l.b16 %v2133
        %v2550 = vunpack.c.l.b16 %v2134
        %v2551 = vunpack.c.l.b16 %v2135
        %v2552 = vunpack.c.l.b16 %v2136
        %v2553 = vunpack.c.l.b16 %v2137
        %v2554 = vunpack.c.l.b16 %v2138
        %v2555 = vunpack.c.l.b16 %v2139
        %v2556 = vunpack.c.l.b16 %v2140
        %v2557 = vunpack.c.l.b16 %v2141
        %v2558 = vunpack.c.l.b16 %v2142
        %v2559 = vunpack.c.l.b16 %v2143
        %v2560 = vunpack.c.l.b16 %v2144
        %v2561 = vpack.c.b16 %v2546, %v2545
        %v2562 = vpack.c.b16 %v2548, %v2547
        %v2563 = vpack.c.b16 %v2550, %v2549
        %v2564 = vpack.c.b16 %v2552, %v2551
        %v2565 = vpack.c.b16 %v2554, %v2553
        %v2566 = vpack.c.b16 %v2556, %v2555
        %v2567 = vpack.c.b16 %v2558, %v2557
        %v2568 = vpack.c.b16 %v2560, %v2559
        %2577 = vmatprep.subr.bf16.mxu0 0
        %2578 = vmatpush1.bf16.msra.mxu0 %v2561
        %2579 = vmatprep.subr.bf16.mxu0 0
        %2580 = vmatpush1.bf16.msra.mxu0 %v2562
        %2581 = vmatprep.subr.bf16.mxu0 0
        %2582 = vmatpush1.bf16.msra.mxu0 %v2563
        %2583 = vmatprep.subr.bf16.mxu0 0
        %2584 = vmatpush1.bf16.msra.mxu0 %v2564
        %2585 = vmatprep.subr.bf16.mxu0 0
        %2586 = vmatpush1.bf16.msra.mxu0 %v2565
        %2587 = vmatprep.subr.bf16.mxu0 0
        %2588 = vmatpush1.bf16.msra.mxu0 %v2566
        %2589 = vmatprep.subr.bf16.mxu0 0
        %2590 = vmatpush1.bf16.msra.mxu0 %v2567
        %2591 = vmatprep.subr.bf16.mxu0 0
        %2592 = vmatpush1.bf16.msra.mxu0 %v2568
        %2593 = vmatprep.subr.bf16.mxu0 0
        %2594 = vmatpush1.bf16.msra.mxu0 0
        %2595 = vmatprep.subr.bf16.mxu0 0
        %2596 = vmatpush1.bf16.msra.mxu0 0
        %2597 = vmatprep.subr.bf16.mxu0 0
        %2598 = vmatpush1.bf16.msra.mxu0 0
        %2599 = vmatprep.subr.bf16.mxu0 0
        %2600 = vmatpush1.bf16.msra.mxu0 0
        %2601 = vmatprep.subr.bf16.mxu0 0
        %2602 = vmatpush1.bf16.msra.mxu0 0
        %2603 = vmatprep.subr.bf16.mxu0 0
        %2604 = vmatpush1.bf16.msra.mxu0 0
        %2605 = vmatprep.subr.bf16.mxu0 0
        %2606 = vmatpush1.bf16.msra.mxu0 0
        %2607 = vmatprep.subr.bf16.mxu0 0
        %2608 = vmatpush1.bf16.msra.mxu0 0
        %2609 = vmatprep.mubr.bf16.mxu0 0
        %2610 = vmatmul.mubr.bf16.gmra.mrb[0].mxu0 %v2083
        %v2611 = vpop.f32.mrb[0].mxu0
        %v2612 = vadd.f32 0.0, %v2611
        %v2613 = vpop.f32.mrb[0].mxu0
        %v2614 = vpop.f32.mrb[0].mxu0
        %v2615 = vpop.f32.mrb[0].mxu0
        %2616 = vdwg.mxu0
        %v2633 = vunpack.c.l.b16 %v2145
        %v2634 = vunpack.c.l.b16 %v2146
        %v2635 = vunpack.c.l.b16 %v2147
        %v2636 = vunpack.c.l.b16 %v2148
        %v2637 = vunpack.c.l.b16 %v2149
        %v2638 = vunpack.c.l.b16 %v2150
        %v2639 = vunpack.c.l.b16 %v2151
        %v2640 = vunpack.c.l.b16 %v2152
        %v2641 = vunpack.c.l.b16 %v2153
        %v2642 = vunpack.c.l.b16 %v2154
        %v2643 = vunpack.c.l.b16 %v2155
        %v2644 = vunpack.c.l.b16 %v2156
        %v2645 = vunpack.c.l.b16 %v2157
        %v2646 = vunpack.c.l.b16 %v2158
        %v2647 = vunpack.c.l.b16 %v2159
        %v2648 = vunpack.c.l.b16 %v2160
        %v2649 = vpack.c.b16 %v2634, %v2633
        %v2650 = vpack.c.b16 %v2636, %v2635
        %v2651 = vpack.c.b16 %v2638, %v2637
        %v2652 = vpack.c.b16 %v2640, %v2639
        %v2653 = vpack.c.b16 %v2642, %v2641
        %v2654 = vpack.c.b16 %v2644, %v2643
        %v2655 = vpack.c.b16 %v2646, %v2645
        %v2656 = vpack.c.b16 %v2648, %v2647
        %2665 = vmatprep.subr.bf16.mxu0 0
        %2666 = vmatpush1.bf16.msra.mxu0 %v2649
        %2667 = vmatprep.subr.bf16.mxu0 0
        %2668 = vmatpush1.bf16.msra.mxu0 %v2650
        %2669 = vmatprep.subr.bf16.mxu0 0
        %2670 = vmatpush1.bf16.msra.mxu0 %v2651
        %2671 = vmatprep.subr.bf16.mxu0 0
        %2672 = vmatpush1.bf16.msra.mxu0 %v2652
        %2673 = vmatprep.subr.bf16.mxu0 0
        %2674 = vmatpush1.bf16.msra.mxu0 %v2653
        %2675 = vmatprep.subr.bf16.mxu0 0
        %2676 = vmatpush1.bf16.msra.mxu0 %v2654
        %2677 = vmatprep.subr.bf16.mxu0 0
        %2678 = vmatpush1.bf16.msra.mxu0 %v2655
        %2679 = vmatprep.subr.bf16.mxu0 0
        %2680 = vmatpush1.bf16.msra.mxu0 %v2656
        %2681 = vmatprep.subr.bf16.mxu0 0
        %2682 = vmatpush1.bf16.msra.mxu0 0
        %2683 = vmatprep.subr.bf16.mxu0 0
        %2684 = vmatpush1.bf16.msra.mxu0 0
        %2685 = vmatprep.subr.bf16.mxu0 0
        %2686 = vmatpush1.bf16.msra.mxu0 0
        %2687 = vmatprep.subr.bf16.mxu0 0
        %2688 = vmatpush1.bf16.msra.mxu0 0
        %2689 = vmatprep.subr.bf16.mxu0 0
        %2690 = vmatpush1.bf16.msra.mxu0 0
        %2691 = vmatprep.subr.bf16.mxu0 0
        %2692 = vmatpush1.bf16.msra.mxu0 0
        %2693 = vmatprep.subr.bf16.mxu0 0
        %2694 = vmatpush1.bf16.msra.mxu0 0
        %2695 = vmatprep.subr.bf16.mxu0 0
        %2696 = vmatpush1.bf16.msra.mxu0 0
        %2697 = vmatprep.mubr.bf16.mxu0 0
        %2698 = vmatmul.mubr.bf16.gmra.mrb[0].mxu0 %v2084
        %v2699 = vpop.f32.mrb[0].mxu0
        %v2700 = vadd.f32 0.0, %v2699
        %v2701 = vpop.f32.mrb[0].mxu0
        %v2702 = vpop.f32.mrb[0].mxu0
        %v2703 = vpop.f32.mrb[0].mxu0
        %2704 = vdwg.mxu0
        %v2721 = vunpack.c.l.b16 %v2161
        %v2722 = vunpack.c.l.b16 %v2162
        %v2723 = vunpack.c.l.b16 %v2163
        %v2724 = vunpack.c.l.b16 %v2164
        %v2725 = vunpack.c.l.b16 %v2165
        %v2726 = vunpack.c.l.b16 %v2166
        %v2727 = vunpack.c.l.b16 %v2167
        %v2728 = vunpack.c.l.b16 %v2168
        %v2729 = vunpack.c.l.b16 %v2169
        %v2730 = vunpack.c.l.b16 %v2170
        %v2731 = vunpack.c.l.b16 %v2171
        %v2732 = vunpack.c.l.b16 %v2172
        %v2733 = vunpack.c.l.b16 %v2173
        %v2734 = vunpack.c.l.b16 %v2174
        %v2735 = vunpack.c.l.b16 %v2175
        %v2736 = vunpack.c.l.b16 %v2176
        %v2737 = vpack.c.b16 %v2722, %v2721
        %v2738 = vpack.c.b16 %v2724, %v2723
        %v2739 = vpack.c.b16 %v2726, %v2725
        %v2740 = vpack.c.b16 %v2728, %v2727
        %v2741 = vpack.c.b16 %v2730, %v2729
        %v2742 = vpack.c.b16 %v2732, %v2731
        %v2743 = vpack.c.b16 %v2734, %v2733
        %v2744 = vpack.c.b16 %v2736, %v2735
        %2753 = vmatprep.subr.bf16.mxu0 0
        %2754 = vmatpush1.bf16.msra.mxu0 %v2737
        %2755 = vmatprep.subr.bf16.mxu0 0
        %2756 = vmatpush1.bf16.msra.mxu0 %v2738
        %2757 = vmatprep.subr.bf16.mxu0 0
        %2758 = vmatpush1.bf16.msra.mxu0 %v2739
        %2759 = vmatprep.subr.bf16.mxu0 0
        %2760 = vmatpush1.bf16.msra.mxu0 %v2740
        %2761 = vmatprep.subr.bf16.mxu0 0
        %2762 = vmatpush1.bf16.msra.mxu0 %v2741
        %2763 = vmatprep.subr.bf16.mxu0 0
        %2764 = vmatpush1.bf16.msra.mxu0 %v2742
        %2765 = vmatprep.subr.bf16.mxu0 0
        %2766 = vmatpush1.bf16.msra.mxu0 %v2743
        %2767 = vmatprep.subr.bf16.mxu0 0
        %2768 = vmatpush1.bf16.msra.mxu0 %v2744
        %2769 = vmatprep.subr.bf16.mxu0 0
        %2770 = vmatpush1.bf16.msra.mxu0 0
        %2771 = vmatprep.subr.bf16.mxu0 0
        %2772 = vmatpush1.bf16.msra.mxu0 0
        %2773 = vmatprep.subr.bf16.mxu0 0
        %2774 = vmatpush1.bf16.msra.mxu0 0
        %2775 = vmatprep.subr.bf16.mxu0 0
        %2776 = vmatpush1.bf16.msra.mxu0 0
        %2777 = vmatprep.subr.bf16.mxu0 0
        %2778 = vmatpush1.bf16.msra.mxu0 0
        %2779 = vmatprep.subr.bf16.mxu0 0
        %2780 = vmatpush1.bf16.msra.mxu0 0
        %2781 = vmatprep.subr.bf16.mxu0 0
        %2782 = vmatpush1.bf16.msra.mxu0 0
        %2783 = vmatprep.subr.bf16.mxu0 0
        %2784 = vmatpush1.bf16.msra.mxu0 0
        %2785 = vmatprep.mubr.bf16.mxu0 0
        %2786 = vmatmul.mubr.bf16.gmra.mrb[0].mxu0 %v2085
        %v2787 = vpop.f32.mrb[0].mxu0
        %v2788 = vadd.f32 0.0, %v2787
        %v2789 = vpop.f32.mrb[0].mxu0
        %v2790 = vpop.f32.mrb[0].mxu0
        %v2791 = vpop.f32.mrb[0].mxu0
        %2792 = vdwg.mxu0
        %v2809 = vunpack.c.l.b16 %v2177
        %v2810 = vunpack.c.l.b16 %v2178
        %v2811 = vunpack.c.l.b16 %v2179
        %v2812 = vunpack.c.l.b16 %v2180
        %v2813 = vunpack.c.l.b16 %v2181
        %v2814 = vunpack.c.l.b16 %v2182
        %v2815 = vunpack.c.l.b16 %v2183
        %v2816 = vunpack.c.l.b16 %v2184
        %v2817 = vunpack.c.l.b16 %v2185
        %v2818 = vunpack.c.l.b16 %v2186
        %v2819 = vunpack.c.l.b16 %v2187
        %v2820 = vunpack.c.l.b16 %v2188
        %v2821 = vunpack.c.l.b16 %v2189
        %v2822 = vunpack.c.l.b16 %v2190
        %v2823 = vunpack.c.l.b16 %v2191
        %v2824 = vunpack.c.l.b16 %v2192
        %v2825 = vpack.c.b16 %v2810, %v2809
        %v2826 = vpack.c.b16 %v2812, %v2811
        %v2827 = vpack.c.b16 %v2814, %v2813
        %v2828 = vpack.c.b16 %v2816, %v2815
        %v2829 = vpack.c.b16 %v2818, %v2817
        %v2830 = vpack.c.b16 %v2820, %v2819
        %v2831 = vpack.c.b16 %v2822, %v2821
        %v2832 = vpack.c.b16 %v2824, %v2823
        %2841 = vmatprep.subr.bf16.mxu0 0
        %2842 = vmatpush1.bf16.msra.mxu0 %v2825
        %2843 = vmatprep.subr.bf16.mxu0 0
        %2844 = vmatpush1.bf16.msra.mxu0 %v2826
        %2845 = vmatprep.subr.bf16.mxu0 0
        %2846 = vmatpush1.bf16.msra.mxu0 %v2827
        %2847 = vmatprep.subr.bf16.mxu0 0
        %2848 = vmatpush1.bf16.msra.mxu0 %v2828
        %2849 = vmatprep.subr.bf16.mxu0 0
        %2850 = vmatpush1.bf16.msra.mxu0 %v2829
        %2851 = vmatprep.subr.bf16.mxu0 0
        %2852 = vmatpush1.bf16.msra.mxu0 %v2830
        %2853 = vmatprep.subr.bf16.mxu0 0
        %2854 = vmatpush1.bf16.msra.mxu0 %v2831
        %2855 = vmatprep.subr.bf16.mxu0 0
        %2856 = vmatpush1.bf16.msra.mxu0 %v2832
        %2857 = vmatprep.subr.bf16.mxu0 0
        %2858 = vmatpush1.bf16.msra.mxu0 0
        %2859 = vmatprep.subr.bf16.mxu0 0
        %2860 = vmatpush1.bf16.msra.mxu0 0
        %2861 = vmatprep.subr.bf16.mxu0 0
        %2862 = vmatpush1.bf16.msra.mxu0 0
        %2863 = vmatprep.subr.bf16.mxu0 0
        %2864 = vmatpush1.bf16.msra.mxu0 0
        %2865 = vmatprep.subr.bf16.mxu0 0
        %2866 = vmatpush1.bf16.msra.mxu0 0
        %2867 = vmatprep.subr.bf16.mxu0 0
        %2868 = vmatpush1.bf16.msra.mxu0 0
        %2869 = vmatprep.subr.bf16.mxu0 0
        %2870 = vmatpush1.bf16.msra.mxu0 0
        %2871 = vmatprep.subr.bf16.mxu0 0
        %2872 = vmatpush1.bf16.msra.mxu0 0
        %2873 = vmatprep.mubr.bf16.mxu0 0
        %2874 = vmatmul.mubr.bf16.gmra.mrb[0].mxu0 %v2086
        %v2875 = vpop.f32.mrb[0].mxu0
        %v2876 = vadd.f32 0.0, %v2875
        %v2877 = vpop.f32.mrb[0].mxu0
        %v2878 = vpop.f32.mrb[0].mxu0
        %v2879 = vpop.f32.mrb[0].mxu0
        %2880 = vdwg.mxu0
        %v2897 = vunpack.c.l.b16 %v2193
        %v2898 = vunpack.c.l.b16 %v2194
        %v2899 = vunpack.c.l.b16 %v2195
        %v2900 = vunpack.c.l.b16 %v2196
        %v2901 = vunpack.c.l.b16 %v2197
        %v2902 = vunpack.c.l.b16 %v2198
        %v2903 = vunpack.c.l.b16 %v2199
        %v2904 = vunpack.c.l.b16 %v2200
        %v2905 = vunpack.c.l.b16 %v2201
        %v2906 = vunpack.c.l.b16 %v2202
        %v2907 = vunpack.c.l.b16 %v2203
        %v2908 = vunpack.c.l.b16 %v2204
        %v2909 = vunpack.c.l.b16 %v2205
        %v2910 = vunpack.c.l.b16 %v2206
        %v2911 = vunpack.c.l.b16 %v2207
        %v2912 = vunpack.c.l.b16 %v2208
        %v2913 = vpack.c.b16 %v2898, %v2897
        %v2914 = vpack.c.b16 %v2900, %v2899
        %v2915 = vpack.c.b16 %v2902, %v2901
        %v2916 = vpack.c.b16 %v2904, %v2903
        %v2917 = vpack.c.b16 %v2906, %v2905
        %v2918 = vpack.c.b16 %v2908, %v2907
        %v2919 = vpack.c.b16 %v2910, %v2909
        %v2920 = vpack.c.b16 %v2912, %v2911
        %2929 = vmatprep.subr.bf16.mxu0 0
        %2930 = vmatpush1.bf16.msra.mxu0 %v2913
        %2931 = vmatprep.subr.bf16.mxu0 0
        %2932 = vmatpush1.bf16.msra.mxu0 %v2914
        %2933 = vmatprep.subr.bf16.mxu0 0
        %2934 = vmatpush1.bf16.msra.mxu0 %v2915
        %2935 = vmatprep.subr.bf16.mxu0 0
        %2936 = vmatpush1.bf16.msra.mxu0 %v2916
        %2937 = vmatprep.subr.bf16.mxu0 0
        %2938 = vmatpush1.bf16.msra.mxu0 %v2917
        %2939 = vmatprep.subr.bf16.mxu0 0
        %2940 = vmatpush1.bf16.msra.mxu0 %v2918
        %2941 = vmatprep.subr.bf16.mxu0 0
        %2942 = vmatpush1.bf16.msra.mxu0 %v2919
        %2943 = vmatprep.subr.bf16.mxu0 0
        %2944 = vmatpush1.bf16.msra.mxu0 %v2920
        %2945 = vmatprep.subr.bf16.mxu0 0
        %2946 = vmatpush1.bf16.msra.mxu0 0
        %2947 = vmatprep.subr.bf16.mxu0 0
        %2948 = vmatpush1.bf16.msra.mxu0 0
        %2949 = vmatprep.subr.bf16.mxu0 0
        %2950 = vmatpush1.bf16.msra.mxu0 0
        %2951 = vmatprep.subr.bf16.mxu0 0
        %2952 = vmatpush1.bf16.msra.mxu0 0
        %2953 = vmatprep.subr.bf16.mxu0 0
        %2954 = vmatpush1.bf16.msra.mxu0 0
        %2955 = vmatprep.subr.bf16.mxu0 0
        %2956 = vmatpush1.bf16.msra.mxu0 0
        %2957 = vmatprep.subr.bf16.mxu0 0
        %2958 = vmatpush1.bf16.msra.mxu0 0
        %2959 = vmatprep.subr.bf16.mxu0 0
        %2960 = vmatpush1.bf16.msra.mxu0 0
        %2961 = vmatprep.mubr.bf16.mxu0 0
        %2962 = vmatmul.mubr.bf16.gmra.mrb[0].mxu0 %v2087
        %v2963 = vpop.f32.mrb[0].mxu0
        %v2964 = vadd.f32 0.0, %v2963
        %v2965 = vpop.f32.mrb[0].mxu0
        %v2966 = vpop.f32.mrb[0].mxu0
        %v2967 = vpop.f32.mrb[0].mxu0
        %2968 = vdwg.mxu0
        %v2985 = vunpack.c.l.b16 %v2209
        %v2986 = vunpack.c.l.b16 %v2210
        %v2987 = vunpack.c.l.b16 %v2211
        %v2988 = vunpack.c.l.b16 %v2212
        %v2989 = vunpack.c.l.b16 %v2213
        %v2990 = vunpack.c.l.b16 %v2214
        %v2991 = vunpack.c.l.b16 %v2215
        %v2992 = vunpack.c.l.b16 %v2216
        %v2993 = vunpack.c.l.b16 %v2217
        %v2994 = vunpack.c.l.b16 %v2218
        %v2995 = vunpack.c.l.b16 %v2219
        %v2996 = vunpack.c.l.b16 %v2220
        %v2997 = vunpack.c.l.b16 %v2221
        %v2998 = vunpack.c.l.b16 %v2222
        %v2999 = vunpack.c.l.b16 %v2223
        %v3000 = vunpack.c.l.b16 %v2224
        %v3001 = vpack.c.b16 %v2986, %v2985
        %v3002 = vpack.c.b16 %v2988, %v2987
        %v3003 = vpack.c.b16 %v2990, %v2989
        %v3004 = vpack.c.b16 %v2992, %v2991
        %v3005 = vpack.c.b16 %v2994, %v2993
        %v3006 = vpack.c.b16 %v2996, %v2995
        %v3007 = vpack.c.b16 %v2998, %v2997
        %v3008 = vpack.c.b16 %v3000, %v2999
        %3017 = vmatprep.subr.bf16.mxu0 0
        %3018 = vmatpush1.bf16.msra.mxu0 %v3001
        %3019 = vmatprep.subr.bf16.mxu0 0
        %3020 = vmatpush1.bf16.msra.mxu0 %v3002
        %3021 = vmatprep.subr.bf16.mxu0 0
        %3022 = vmatpush1.bf16.msra.mxu0 %v3003
        %3023 = vmatprep.subr.bf16.mxu0 0
        %3024 = vmatpush1.bf16.msra.mxu0 %v3004
        %3025 = vmatprep.subr.bf16.mxu0 0
        %3026 = vmatpush1.bf16.msra.mxu0 %v3005
        %3027 = vmatprep.subr.bf16.mxu0 0
        %3028 = vmatpush1.bf16.msra.mxu0 %v3006
        %3029 = vmatprep.subr.bf16.mxu0 0
        %3030 = vmatpush1.bf16.msra.mxu0 %v3007
        %3031 = vmatprep.subr.bf16.mxu0 0
        %3032 = vmatpush1.bf16.msra.mxu0 %v3008
        %3033 = vmatprep.subr.bf16.mxu0 0
        %3034 = vmatpush1.bf16.msra.mxu0 0
        %3035 = vmatprep.subr.bf16.mxu0 0
        %3036 = vmatpush1.bf16.msra.mxu0 0
        %3037 = vmatprep.subr.bf16.mxu0 0
        %3038 = vmatpush1.bf16.msra.mxu0 0
        %3039 = vmatprep.subr.bf16.mxu0 0
        %3040 = vmatpush1.bf16.msra.mxu0 0
        %3041 = vmatprep.subr.bf16.mxu0 0
        %3042 = vmatpush1.bf16.msra.mxu0 0
        %3043 = vmatprep.subr.bf16.mxu0 0
        %3044 = vmatpush1.bf16.msra.mxu0 0
        %3045 = vmatprep.subr.bf16.mxu0 0
        %3046 = vmatpush1.bf16.msra.mxu0 0
        %3047 = vmatprep.subr.bf16.mxu0 0
        %3048 = vmatpush1.bf16.msra.mxu0 0
        %3049 = vmatprep.mubr.bf16.mxu0 0
        %3050 = vmatmul.mubr.bf16.gmra.mrb[0].mxu0 %v2088
        %v3051 = vpop.f32.mrb[0].mxu0
        %v3052 = vadd.f32 0.0, %v3051
        %v3053 = vpop.f32.mrb[0].mxu0
        %v3054 = vpop.f32.mrb[0].mxu0
        %v3055 = vpop.f32.mrb[0].mxu0
        %3056 = vdwg.mxu0
        %v3073 = vunpack.c.l.b16 %v2225
        %v3074 = vunpack.c.l.b16 %v2226
        %v3075 = vunpack.c.l.b16 %v2227
        %v3076 = vunpack.c.l.b16 %v2228
        %v3077 = vunpack.c.l.b16 %v2229
        %v3078 = vunpack.c.l.b16 %v2230
        %v3079 = vunpack.c.l.b16 %v2231
        %v3080 = vunpack.c.l.b16 %v2232
        %v3081 = vunpack.c.l.b16 %v2233
        %v3082 = vunpack.c.l.b16 %v2234
        %v3083 = vunpack.c.l.b16 %v2235
        %v3084 = vunpack.c.l.b16 %v2236
        %v3085 = vunpack.c.l.b16 %v2237
        %v3086 = vunpack.c.l.b16 %v2238
        %v3087 = vunpack.c.l.b16 %v2239
        %v3088 = vunpack.c.l.b16 %v2240
        %v3089 = vpack.c.b16 %v3074, %v3073
        %v3090 = vpack.c.b16 %v3076, %v3075
        %v3091 = vpack.c.b16 %v3078, %v3077
        %v3092 = vpack.c.b16 %v3080, %v3079
        %v3093 = vpack.c.b16 %v3082, %v3081
        %v3094 = vpack.c.b16 %v3084, %v3083
        %v3095 = vpack.c.b16 %v3086, %v3085
        %v3096 = vpack.c.b16 %v3088, %v3087
        %3105 = vmatprep.subr.bf16.mxu0 0
        %3106 = vmatpush1.bf16.msra.mxu0 %v3089
        %3107 = vmatprep.subr.bf16.mxu0 0
        %3108 = vmatpush1.bf16.msra.mxu0 %v3090
        %3109 = vmatprep.subr.bf16.mxu0 0
        %3110 = vmatpush1.bf16.msra.mxu0 %v3091
        %3111 = vmatprep.subr.bf16.mxu0 0
        %3112 = vmatpush1.bf16.msra.mxu0 %v3092
        %3113 = vmatprep.subr.bf16.mxu0 0
        %3114 = vmatpush1.bf16.msra.mxu0 %v3093
        %3115 = vmatprep.subr.bf16.mxu0 0
        %3116 = vmatpush1.bf16.msra.mxu0 %v3094
        %3117 = vmatprep.subr.bf16.mxu0 0
        %3118 = vmatpush1.bf16.msra.mxu0 %v3095
        %3119 = vmatprep.subr.bf16.mxu0 0
        %3120 = vmatpush1.bf16.msra.mxu0 %v3096
        %3121 = vmatprep.subr.bf16.mxu0 0
        %3122 = vmatpush1.bf16.msra.mxu0 0
        %3123 = vmatprep.subr.bf16.mxu0 0
        %3124 = vmatpush1.bf16.msra.mxu0 0
        %3125 = vmatprep.subr.bf16.mxu0 0
        %3126 = vmatpush1.bf16.msra.mxu0 0
        %3127 = vmatprep.subr.bf16.mxu0 0
        %3128 = vmatpush1.bf16.msra.mxu0 0
        %3129 = vmatprep.subr.bf16.mxu0 0
        %3130 = vmatpush1.bf16.msra.mxu0 0
        %3131 = vmatprep.subr.bf16.mxu0 0
        %3132 = vmatpush1.bf16.msra.mxu0 0
        %3133 = vmatprep.subr.bf16.mxu0 0
        %3134 = vmatpush1.bf16.msra.mxu0 0
        %3135 = vmatprep.subr.bf16.mxu0 0
        %3136 = vmatpush1.bf16.msra.mxu0 0
        %3137 = vmatprep.mubr.bf16.mxu0 0
        %3138 = vmatmul.mubr.bf16.gmra.mrb[0].mxu0 %v2089
        %v3139 = vpop.f32.mrb[0].mxu0
        %v3140 = vadd.f32 0.0, %v3139
        %v3141 = vpop.f32.mrb[0].mxu0
        %v3142 = vpop.f32.mrb[0].mxu0
        %v3143 = vpop.f32.mrb[0].mxu0
        %3144 = vdwg.mxu0
        %v3161 = vunpack.c.l.b16 %v2241
        %v3162 = vunpack.c.l.b16 %v2242
        %v3163 = vunpack.c.l.b16 %v2243
        %v3164 = vunpack.c.l.b16 %v2244
        %v3165 = vunpack.c.l.b16 %v2245
        %v3166 = vunpack.c.l.b16 %v2246
        %v3167 = vunpack.c.l.b16 %v2247
        %v3168 = vunpack.c.l.b16 %v2248
        %v3169 = vunpack.c.l.b16 %v2249
        %v3170 = vunpack.c.l.b16 %v2250
        %v3171 = vunpack.c.l.b16 %v2251
        %v3172 = vunpack.c.l.b16 %v2252
        %v3173 = vunpack.c.l.b16 %v2253
        %v3174 = vunpack.c.l.b16 %v2254
        %v3175 = vunpack.c.l.b16 %v2255
        %v3176 = vunpack.c.l.b16 %v2256
        %v3177 = vpack.c.b16 %v3162, %v3161
        %v3178 = vpack.c.b16 %v3164, %v3163
        %v3179 = vpack.c.b16 %v3166, %v3165
        %v3180 = vpack.c.b16 %v3168, %v3167
        %v3181 = vpack.c.b16 %v3170, %v3169
        %v3182 = vpack.c.b16 %v3172, %v3171
        %v3183 = vpack.c.b16 %v3174, %v3173
        %v3184 = vpack.c.b16 %v3176, %v3175
        %3193 = vmatprep.subr.bf16.mxu0 0
        %3194 = vmatpush1.bf16.msra.mxu0 %v3177
        %3195 = vmatprep.subr.bf16.mxu0 0
        %3196 = vmatpush1.bf16.msra.mxu0 %v3178
        %3197 = vmatprep.subr.bf16.mxu0 0
        %3198 = vmatpush1.bf16.msra.mxu0 %v3179
        %3199 = vmatprep.subr.bf16.mxu0 0
        %3200 = vmatpush1.bf16.msra.mxu0 %v3180
        %3201 = vmatprep.subr.bf16.mxu0 0
        %3202 = vmatpush1.bf16.msra.mxu0 %v3181
        %3203 = vmatprep.subr.bf16.mxu0 0
        %3204 = vmatpush1.bf16.msra.mxu0 %v3182
        %3205 = vmatprep.subr.bf16.mxu0 0
        %3206 = vmatpush1.bf16.msra.mxu0 %v3183
        %3207 = vmatprep.subr.bf16.mxu0 0
        %3208 = vmatpush1.bf16.msra.mxu0 %v3184
        %3209 = vmatprep.subr.bf16.mxu0 0
        %3210 = vmatpush1.bf16.msra.mxu0 0
        %3211 = vmatprep.subr.bf16.mxu0 0
        %3212 = vmatpush1.bf16.msra.mxu0 0
        %3213 = vmatprep.subr.bf16.mxu0 0
        %3214 = vmatpush1.bf16.msra.mxu0 0
        %3215 = vmatprep.subr.bf16.mxu0 0
        %3216 = vmatpush1.bf16.msra.mxu0 0
        %3217 = vmatprep.subr.bf16.mxu0 0
        %3218 = vmatpush1.bf16.msra.mxu0 0
        %3219 = vmatprep.subr.bf16.mxu0 0
        %3220 = vmatpush1.bf16.msra.mxu0 0
        %3221 = vmatprep.subr.bf16.mxu0 0
        %3222 = vmatpush1.bf16.msra.mxu0 0
        %3223 = vmatprep.subr.bf16.mxu0 0
        %3224 = vmatpush1.bf16.msra.mxu0 0
        %3225 = vmatprep.mubr.bf16.mxu0 0
        %3226 = vmatmul.mubr.bf16.gmra.mrb[0].mxu0 %v2090
        %v3227 = vpop.f32.mrb[0].mxu0
        %v3228 = vadd.f32 0.0, %v3227
        %v3229 = vpop.f32.mrb[0].mxu0
        %v3230 = vpop.f32.mrb[0].mxu0
        %v3231 = vpop.f32.mrb[0].mxu0
        %3232 = vdwg.mxu0
        %v3249 = vunpack.c.l.b16 %v2257
        %v3250 = vunpack.c.l.b16 %v2258
        %v3251 = vunpack.c.l.b16 %v2259
        %v3252 = vunpack.c.l.b16 %v2260
        %v3253 = vunpack.c.l.b16 %v2261
        %v3254 = vunpack.c.l.b16 %v2262
        %v3255 = vunpack.c.l.b16 %v2263
        %v3256 = vunpack.c.l.b16 %v2264
        %v3257 = vunpack.c.l.b16 %v2265
        %v3258 = vunpack.c.l.b16 %v2266
        %v3259 = vunpack.c.l.b16 %v2267
        %v3260 = vunpack.c.l.b16 %v2268
        %v3261 = vunpack.c.l.b16 %v2269
        %v3262 = vunpack.c.l.b16 %v2270
        %v3263 = vunpack.c.l.b16 %v2271
        %v3264 = vunpack.c.l.b16 %v2272
        %v3265 = vpack.c.b16 %v3250, %v3249
        %v3266 = vpack.c.b16 %v3252, %v3251
        %v3267 = vpack.c.b16 %v3254, %v3253
        %v3268 = vpack.c.b16 %v3256, %v3255
        %v3269 = vpack.c.b16 %v3258, %v3257
        %v3270 = vpack.c.b16 %v3260, %v3259
        %v3271 = vpack.c.b16 %v3262, %v3261
        %v3272 = vpack.c.b16 %v3264, %v3263
        %3281 = vmatprep.subr.bf16.mxu0 0
        %3282 = vmatpush1.bf16.msra.mxu0 %v3265
        %3283 = vmatprep.subr.bf16.mxu0 0
        %3284 = vmatpush1.bf16.msra.mxu0 %v3266
        %3285 = vmatprep.subr.bf16.mxu0 0
        %3286 = vmatpush1.bf16.msra.mxu0 %v3267
        %3287 = vmatprep.subr.bf16.mxu0 0
        %3288 = vmatpush1.bf16.msra.mxu0 %v3268
        %3289 = vmatprep.subr.bf16.mxu0 0
        %3290 = vmatpush1.bf16.msra.mxu0 %v3269
        %3291 = vmatprep.subr.bf16.mxu0 0
        %3292 = vmatpush1.bf16.msra.mxu0 %v3270
        %3293 = vmatprep.subr.bf16.mxu0 0
        %3294 = vmatpush1.bf16.msra.mxu0 %v3271
        %3295 = vmatprep.subr.bf16.mxu0 0
        %3296 = vmatpush1.bf16.msra.mxu0 %v3272
        %3297 = vmatprep.subr.bf16.mxu0 0
        %3298 = vmatpush1.bf16.msra.mxu0 0
        %3299 = vmatprep.subr.bf16.mxu0 0
        %3300 = vmatpush1.bf16.msra.mxu0 0
        %3301 = vmatprep.subr.bf16.mxu0 0
        %3302 = vmatpush1.bf16.msra.mxu0 0
        %3303 = vmatprep.subr.bf16.mxu0 0
        %3304 = vmatpush1.bf16.msra.mxu0 0
        %3305 = vmatprep.subr.bf16.mxu0 0
        %3306 = vmatpush1.bf16.msra.mxu0 0
        %3307 = vmatprep.subr.bf16.mxu0 0
        %3308 = vmatpush1.bf16.msra.mxu0 0
        %3309 = vmatprep.subr.bf16.mxu0 0
        %3310 = vmatpush1.bf16.msra.mxu0 0
        %3311 = vmatprep.subr.bf16.mxu0 0
        %3312 = vmatpush1.bf16.msra.mxu0 0
        %3313 = vmatprep.mubr.bf16.mxu0 0
        %3314 = vmatmul.mubr.bf16.gmra.mrb[0].mxu0 %v2091
        %v3315 = vpop.f32.mrb[0].mxu0
        %v3316 = vadd.f32 0.0, %v3315
        %v3317 = vpop.f32.mrb[0].mxu0
        %v3318 = vpop.f32.mrb[0].mxu0
        %v3319 = vpop.f32.mrb[0].mxu0
        %3320 = vdwg.mxu0
        %v3337 = vunpack.c.l.b16 %v2273
        %v3338 = vunpack.c.l.b16 %v2274
        %v3339 = vunpack.c.l.b16 %v2275
        %v3340 = vunpack.c.l.b16 %v2276
        %v3341 = vunpack.c.l.b16 %v2277
        %v3342 = vunpack.c.l.b16 %v2278
        %v3343 = vunpack.c.l.b16 %v2279
        %v3344 = vunpack.c.l.b16 %v2280
        %v3345 = vunpack.c.l.b16 %v2281
        %v3346 = vunpack.c.l.b16 %v2282
        %v3347 = vunpack.c.l.b16 %v2283
        %v3348 = vunpack.c.l.b16 %v2284
        %v3349 = vunpack.c.l.b16 %v2285
        %v3350 = vunpack.c.l.b16 %v2286
        %v3351 = vunpack.c.l.b16 %v2287
        %v3352 = vunpack.c.l.b16 %v2288
        %v3353 = vpack.c.b16 %v3338, %v3337
        %v3354 = vpack.c.b16 %v3340, %v3339
        %v3355 = vpack.c.b16 %v3342, %v3341
        %v3356 = vpack.c.b16 %v3344, %v3343
        %v3357 = vpack.c.b16 %v3346, %v3345
        %v3358 = vpack.c.b16 %v3348, %v3347
        %v3359 = vpack.c.b16 %v3350, %v3349
        %v3360 = vpack.c.b16 %v3352, %v3351
        %3369 = vmatprep.subr.bf16.mxu0 0
        %3370 = vmatpush1.bf16.msra.mxu0 %v3353
        %3371 = vmatprep.subr.bf16.mxu0 0
        %3372 = vmatpush1.bf16.msra.mxu0 %v3354
        %3373 = vmatprep.subr.bf16.mxu0 0
        %3374 = vmatpush1.bf16.msra.mxu0 %v3355
        %3375 = vmatprep.subr.bf16.mxu0 0
        %3376 = vmatpush1.bf16.msra.mxu0 %v3356
        %3377 = vmatprep.subr.bf16.mxu0 0
        %3378 = vmatpush1.bf16.msra.mxu0 %v3357
        %3379 = vmatprep.subr.bf16.mxu0 0
        %3380 = vmatpush1.bf16.msra.mxu0 %v3358
        %3381 = vmatprep.subr.bf16.mxu0 0
        %3382 = vmatpush1.bf16.msra.mxu0 %v3359
        %3383 = vmatprep.subr.bf16.mxu0 0
        %3384 = vmatpush1.bf16.msra.mxu0 %v3360
        %3385 = vmatprep.subr.bf16.mxu0 0
        %3386 = vmatpush1.bf16.msra.mxu0 0
        %3387 = vmatprep.subr.bf16.mxu0 0
        %3388 = vmatpush1.bf16.msra.mxu0 0
        %3389 = vmatprep.subr.bf16.mxu0 0
        %3390 = vmatpush1.bf16.msra.mxu0 0
        %3391 = vmatprep.subr.bf16.mxu0 0
        %3392 = vmatpush1.bf16.msra.mxu0 0
        %3393 = vmatprep.subr.bf16.mxu0 0
        %3394 = vmatpush1.bf16.msra.mxu0 0
        %3395 = vmatprep.subr.bf16.mxu0 0
        %3396 = vmatpush1.bf16.msra.mxu0 0
        %3397 = vmatprep.subr.bf16.mxu0 0
        %3398 = vmatpush1.bf16.msra.mxu0 0
        %3399 = vmatprep.subr.bf16.mxu0 0
        %3400 = vmatpush1.bf16.msra.mxu0 0
        %3401 = vmatprep.mubr.bf16.mxu0 0
        %3402 = vmatmul.mubr.bf16.gmra.mrb[0].mxu0 %v2092
        %v3403 = vpop.f32.mrb[0].mxu0
        %v3404 = vadd.f32 0.0, %v3403
        %v3405 = vpop.f32.mrb[0].mxu0
        %v3406 = vpop.f32.mrb[0].mxu0
        %v3407 = vpop.f32.mrb[0].mxu0
        %3408 = vdwg.mxu0
        %v3425 = vunpack.c.l.b16 %v2289
        %v3426 = vunpack.c.l.b16 %v2290
        %v3427 = vunpack.c.l.b16 %v2291
        %v3428 = vunpack.c.l.b16 %v2292
        %v3429 = vunpack.c.l.b16 %v2293
        %v3430 = vunpack.c.l.b16 %v2294
        %v3431 = vunpack.c.l.b16 %v2295
        %v3432 = vunpack.c.l.b16 %v2296
        %v3433 = vunpack.c.l.b16 %v2297
        %v3434 = vunpack.c.l.b16 %v2298
        %v3435 = vunpack.c.l.b16 %v2299
        %v3436 = vunpack.c.l.b16 %v2300
        %v3437 = vunpack.c.l.b16 %v2301
        %v3438 = vunpack.c.l.b16 %v2302
        %v3439 = vunpack.c.l.b16 %v2303
        %v3440 = vunpack.c.l.b16 %v2304
        %v3441 = vpack.c.b16 %v3426, %v3425
        %v3442 = vpack.c.b16 %v3428, %v3427
        %v3443 = vpack.c.b16 %v3430, %v3429
        %v3444 = vpack.c.b16 %v3432, %v3431
        %v3445 = vpack.c.b16 %v3434, %v3433
        %v3446 = vpack.c.b16 %v3436, %v3435
        %v3447 = vpack.c.b16 %v3438, %v3437
        %v3448 = vpack.c.b16 %v3440, %v3439
        %3457 = vmatprep.subr.bf16.mxu0 0
        %3458 = vmatpush1.bf16.msra.mxu0 %v3441
        %3459 = vmatprep.subr.bf16.mxu0 0
        %3460 = vmatpush1.bf16.msra.mxu0 %v3442
        %3461 = vmatprep.subr.bf16.mxu0 0
        %3462 = vmatpush1.bf16.msra.mxu0 %v3443
        %3463 = vmatprep.subr.bf16.mxu0 0
        %3464 = vmatpush1.bf16.msra.mxu0 %v3444
        %3465 = vmatprep.subr.bf16.mxu0 0
        %3466 = vmatpush1.bf16.msra.mxu0 %v3445
        %3467 = vmatprep.subr.bf16.mxu0 0
        %3468 = vmatpush1.bf16.msra.mxu0 %v3446
        %3469 = vmatprep.subr.bf16.mxu0 0
        %3470 = vmatpush1.bf16.msra.mxu0 %v3447
        %3471 = vmatprep.subr.bf16.mxu0 0
        %3472 = vmatpush1.bf16.msra.mxu0 %v3448
        %3473 = vmatprep.subr.bf16.mxu0 0
        %3474 = vmatpush1.bf16.msra.mxu0 0
        %3475 = vmatprep.subr.bf16.mxu0 0
        %3476 = vmatpush1.bf16.msra.mxu0 0
        %3477 = vmatprep.subr.bf16.mxu0 0
        %3478 = vmatpush1.bf16.msra.mxu0 0
        %3479 = vmatprep.subr.bf16.mxu0 0
        %3480 = vmatpush1.bf16.msra.mxu0 0
        %3481 = vmatprep.subr.bf16.mxu0 0
        %3482 = vmatpush1.bf16.msra.mxu0 0
        %3483 = vmatprep.subr.bf16.mxu0 0
        %3484 = vmatpush1.bf16.msra.mxu0 0
        %3485 = vmatprep.subr.bf16.mxu0 0
        %3486 = vmatpush1.bf16.msra.mxu0 0
        %3487 = vmatprep.subr.bf16.mxu0 0
        %3488 = vmatpush1.bf16.msra.mxu0 0
        %3489 = vmatprep.mubr.bf16.mxu0 0
        %3490 = vmatmul.mubr.bf16.gmra.mrb[0].mxu0 %v2093
        %v3491 = vpop.f32.mrb[0].mxu0
        %v3492 = vadd.f32 0.0, %v3491
        %v3493 = vpop.f32.mrb[0].mxu0
        %v3494 = vpop.f32.mrb[0].mxu0
        %v3495 = vpop.f32.mrb[0].mxu0
        %3496 = vdwg.mxu0
        %v3513 = vunpack.c.l.b16 %v2305
        %v3514 = vunpack.c.l.b16 %v2306
        %v3515 = vunpack.c.l.b16 %v2307
        %v3516 = vunpack.c.l.b16 %v2308
        %v3517 = vunpack.c.l.b16 %v2309
        %v3518 = vunpack.c.l.b16 %v2310
        %v3519 = vunpack.c.l.b16 %v2311
        %v3520 = vunpack.c.l.b16 %v2312
        %v3521 = vunpack.c.l.b16 %v2313
        %v3522 = vunpack.c.l.b16 %v2314
        %v3523 = vunpack.c.l.b16 %v2315
        %v3524 = vunpack.c.l.b16 %v2316
        %v3525 = vunpack.c.l.b16 %v2317
        %v3526 = vunpack.c.l.b16 %v2318
        %v3527 = vunpack.c.l.b16 %v2319
        %v3528 = vunpack.c.l.b16 %v2320
        %v3529 = vpack.c.b16 %v3514, %v3513
        %v3530 = vpack.c.b16 %v3516, %v3515
        %v3531 = vpack.c.b16 %v3518, %v3517
        %v3532 = vpack.c.b16 %v3520, %v3519
        %v3533 = vpack.c.b16 %v3522, %v3521
        %v3534 = vpack.c.b16 %v3524, %v3523
        %v3535 = vpack.c.b16 %v3526, %v3525
        %v3536 = vpack.c.b16 %v3528, %v3527
        %3545 = vmatprep.subr.bf16.mxu0 0
        %3546 = vmatpush1.bf16.msra.mxu0 %v3529
        %3547 = vmatprep.subr.bf16.mxu0 0
        %3548 = vmatpush1.bf16.msra.mxu0 %v3530
        %3549 = vmatprep.subr.bf16.mxu0 0
        %3550 = vmatpush1.bf16.msra.mxu0 %v3531
        %3551 = vmatprep.subr.bf16.mxu0 0
        %3552 = vmatpush1.bf16.msra.mxu0 %v3532
        %3553 = vmatprep.subr.bf16.mxu0 0
        %3554 = vmatpush1.bf16.msra.mxu0 %v3533
        %3555 = vmatprep.subr.bf16.mxu0 0
        %3556 = vmatpush1.bf16.msra.mxu0 %v3534
        %3557 = vmatprep.subr.bf16.mxu0 0
        %3558 = vmatpush1.bf16.msra.mxu0 %v3535
        %3559 = vmatprep.subr.bf16.mxu0 0
        %3560 = vmatpush1.bf16.msra.mxu0 %v3536
        %3561 = vmatprep.subr.bf16.mxu0 0
        %3562 = vmatpush1.bf16.msra.mxu0 0
        %3563 = vmatprep.subr.bf16.mxu0 0
        %3564 = vmatpush1.bf16.msra.mxu0 0
        %3565 = vmatprep.subr.bf16.mxu0 0
        %3566 = vmatpush1.bf16.msra.mxu0 0
        %3567 = vmatprep.subr.bf16.mxu0 0
        %3568 = vmatpush1.bf16.msra.mxu0 0
        %3569 = vmatprep.subr.bf16.mxu0 0
        %3570 = vmatpush1.bf16.msra.mxu0 0
        %3571 = vmatprep.subr.bf16.mxu0 0
        %3572 = vmatpush1.bf16.msra.mxu0 0
        %3573 = vmatprep.subr.bf16.mxu0 0
        %3574 = vmatpush1.bf16.msra.mxu0 0
        %3575 = vmatprep.subr.bf16.mxu0 0
        %3576 = vmatpush1.bf16.msra.mxu0 0
        %3577 = vmatprep.mubr.bf16.mxu0 0
        %3578 = vmatmul.mubr.bf16.gmra.mrb[0].mxu0 %v2094
        %v3579 = vpop.f32.mrb[0].mxu0
        %v3580 = vadd.f32 0.0, %v3579
        %v3581 = vpop.f32.mrb[0].mxu0
        %v3582 = vpop.f32.mrb[0].mxu0
        %v3583 = vpop.f32.mrb[0].mxu0
        %3584 = vdwg.mxu0
        %v3601 = vunpack.c.l.b16 %v2321
        %v3602 = vunpack.c.l.b16 %v2322
        %v3603 = vunpack.c.l.b16 %v2323
        %v3604 = vunpack.c.l.b16 %v2324
        %v3605 = vunpack.c.l.b16 %v2325
        %v3606 = vunpack.c.l.b16 %v2326
        %v3607 = vunpack.c.l.b16 %v2327
        %v3608 = vunpack.c.l.b16 %v2328
        %v3609 = vunpack.c.l.b16 %v2329
        %v3610 = vunpack.c.l.b16 %v2330
        %v3611 = vunpack.c.l.b16 %v2331
        %v3612 = vunpack.c.l.b16 %v2332
        %v3613 = vunpack.c.l.b16 %v2333
        %v3614 = vunpack.c.l.b16 %v2334
        %v3615 = vunpack.c.l.b16 %v2335
        %v3616 = vunpack.c.l.b16 %v2336
        %v3617 = vpack.c.b16 %v3602, %v3601
        %v3618 = vpack.c.b16 %v3604, %v3603
        %v3619 = vpack.c.b16 %v3606, %v3605
        %v3620 = vpack.c.b16 %v3608, %v3607
        %v3621 = vpack.c.b16 %v3610, %v3609
        %v3622 = vpack.c.b16 %v3612, %v3611
        %v3623 = vpack.c.b16 %v3614, %v3613
        %v3624 = vpack.c.b16 %v3616, %v3615
        %3633 = vmatprep.subr.bf16.mxu0 0
        %3634 = vmatpush1.bf16.msra.mxu0 %v3617
        %3635 = vmatprep.subr.bf16.mxu0 0
        %3636 = vmatpush1.bf16.msra.mxu0 %v3618
        %3637 = vmatprep.subr.bf16.mxu0 0
        %3638 = vmatpush1.bf16.msra.mxu0 %v3619
        %3639 = vmatprep.subr.bf16.mxu0 0
        %3640 = vmatpush1.bf16.msra.mxu0 %v3620
        %3641 = vmatprep.subr.bf16.mxu0 0
        %3642 = vmatpush1.bf16.msra.mxu0 %v3621
        %3643 = vmatprep.subr.bf16.mxu0 0
        %3644 = vmatpush1.bf16.msra.mxu0 %v3622
        %3645 = vmatprep.subr.bf16.mxu0 0
        %3646 = vmatpush1.bf16.msra.mxu0 %v3623
        %3647 = vmatprep.subr.bf16.mxu0 0
        %3648 = vmatpush1.bf16.msra.mxu0 %v3624
        %3649 = vmatprep.subr.bf16.mxu0 0
        %3650 = vmatpush1.bf16.msra.mxu0 0
        %3651 = vmatprep.subr.bf16.mxu0 0
        %3652 = vmatpush1.bf16.msra.mxu0 0
        %3653 = vmatprep.subr.bf16.mxu0 0
        %3654 = vmatpush1.bf16.msra.mxu0 0
        %3655 = vmatprep.subr.bf16.mxu0 0
        %3656 = vmatpush1.bf16.msra.mxu0 0
        %3657 = vmatprep.subr.bf16.mxu0 0
        %3658 = vmatpush1.bf16.msra.mxu0 0
        %3659 = vmatprep.subr.bf16.mxu0 0
        %3660 = vmatpush1.bf16.msra.mxu0 0
        %3661 = vmatprep.subr.bf16.mxu0 0
        %3662 = vmatpush1.bf16.msra.mxu0 0
        %3663 = vmatprep.subr.bf16.mxu0 0
        %3664 = vmatpush1.bf16.msra.mxu0 0
        %3665 = vmatprep.mubr.bf16.mxu0 0
        %3666 = vmatmul.mubr.bf16.gmra.mrb[0].mxu0 %v2095
        %v3667 = vpop.f32.mrb[0].mxu0
        %v3668 = vadd.f32 0.0, %v3667
        %v3669 = vpop.f32.mrb[0].mxu0
        %v3670 = vpop.f32.mrb[0].mxu0
        %v3671 = vpop.f32.mrb[0].mxu0
        %3672 = vdwg.mxu0
        %v3689 = vunpack.c.l.b16 %v2337
        %v3690 = vunpack.c.l.b16 %v2338
        %v3691 = vunpack.c.l.b16 %v2339
        %v3692 = vunpack.c.l.b16 %v2340
        %v3693 = vunpack.c.l.b16 %v2341
        %v3694 = vunpack.c.l.b16 %v2342
        %v3695 = vunpack.c.l.b16 %v2343
        %v3696 = vunpack.c.l.b16 %v2344
        %v3697 = vunpack.c.l.b16 %v2345
        %v3698 = vunpack.c.l.b16 %v2346
        %v3699 = vunpack.c.l.b16 %v2347
        %v3700 = vunpack.c.l.b16 %v2348
        %v3701 = vunpack.c.l.b16 %v2349
        %v3702 = vunpack.c.l.b16 %v2350
        %v3703 = vunpack.c.l.b16 %v2351
        %v3704 = vunpack.c.l.b16 %v2352
        %v3705 = vpack.c.b16 %v3690, %v3689
        %v3706 = vpack.c.b16 %v3692, %v3691
        %v3707 = vpack.c.b16 %v3694, %v3693
        %v3708 = vpack.c.b16 %v3696, %v3695
        %v3709 = vpack.c.b16 %v3698, %v3697
        %v3710 = vpack.c.b16 %v3700, %v3699
        %v3711 = vpack.c.b16 %v3702, %v3701
        %v3712 = vpack.c.b16 %v3704, %v3703
        %3721 = vmatprep.subr.bf16.mxu0 0
        %3722 = vmatpush1.bf16.msra.mxu0 %v3705
        %3723 = vmatprep.subr.bf16.mxu0 0
        %3724 = vmatpush1.bf16.msra.mxu0 %v3706
        %3725 = vmatprep.subr.bf16.mxu0 0
        %3726 = vmatpush1.bf16.msra.mxu0 %v3707
        %3727 = vmatprep.subr.bf16.mxu0 0
        %3728 = vmatpush1.bf16.msra.mxu0 %v3708
        %3729 = vmatprep.subr.bf16.mxu0 0
        %3730 = vmatpush1.bf16.msra.mxu0 %v3709
        %3731 = vmatprep.subr.bf16.mxu0 0
        %3732 = vmatpush1.bf16.msra.mxu0 %v3710
        %3733 = vmatprep.subr.bf16.mxu0 0
        %3734 = vmatpush1.bf16.msra.mxu0 %v3711
        %3735 = vmatprep.subr.bf16.mxu0 0
        %3736 = vmatpush1.bf16.msra.mxu0 %v3712
        %3737 = vmatprep.subr.bf16.mxu0 0
        %3738 = vmatpush1.bf16.msra.mxu0 0
        %3739 = vmatprep.subr.bf16.mxu0 0
        %3740 = vmatpush1.bf16.msra.mxu0 0
        %3741 = vmatprep.subr.bf16.mxu0 0
        %3742 = vmatpush1.bf16.msra.mxu0 0
        %3743 = vmatprep.subr.bf16.mxu0 0
        %3744 = vmatpush1.bf16.msra.mxu0 0
        %3745 = vmatprep.subr.bf16.mxu0 0
        %3746 = vmatpush1.bf16.msra.mxu0 0
        %3747 = vmatprep.subr.bf16.mxu0 0
        %3748 = vmatpush1.bf16.msra.mxu0 0
        %3749 = vmatprep.subr.bf16.mxu0 0
        %3750 = vmatpush1.bf16.msra.mxu0 0
        %3751 = vmatprep.subr.bf16.mxu0 0
        %3752 = vmatpush1.bf16.msra.mxu0 0
        %3753 = vmatprep.mubr.bf16.mxu0 0
        %3754 = vmatmul.mubr.bf16.gmra.mrb[0].mxu0 %v2096
        %v3755 = vpop.f32.mrb[0].mxu0
        %v3756 = vadd.f32 0.0, %v3755
        %v3757 = vpop.f32.mrb[0].mxu0
        %v3758 = vpop.f32.mrb[0].mxu0
        %v3759 = vpop.f32.mrb[0].mxu0
        %3760 = vdwg.mxu0
        %v3761 = vld [vmem:[#allocation3] sm:$0x3]
        %vm3762 = vcmask 1041408
        %v3763 = vsel %vm3762, %v2436, 0.0
        %v3764 = vsel %vm3762, %v2524, 0.0
        %v3765 = vadd.f32 %v3763, %v3764
        %v3766 = vsel %vm3762, %v2612, 0.0
        %v3767 = vadd.f32 %v3765, %v3766
        %v3768 = vsel %vm3762, %v2700, 0.0
        %v3769 = vadd.f32 %v3767, %v3768
        %v3770 = vsel %vm3762, %v2788, 0.0
        %v3771 = vadd.f32 %v3769, %v3770
        %v3772 = vsel %vm3762, %v2876, 0.0
        %v3773 = vadd.f32 %v3771, %v3772
        %v3774 = vsel %vm3762, %v2964, 0.0
        %v3775 = vadd.f32 %v3773, %v3774
        %v3776 = vsel %vm3762, %v3052, 0.0
        %v3777 = vadd.f32 %v3775, %v3776
        %v3778 = vsel %vm3762, %v3140, 0.0
        %v3779 = vadd.f32 %v3777, %v3778
        %v3780 = vsel %vm3762, %v3228, 0.0
        %v3781 = vadd.f32 %v3779, %v3780
        %v3782 = vsel %vm3762, %v3316, 0.0
        %v3783 = vadd.f32 %v3781, %v3782
        %v3784 = vsel %vm3762, %v3404, 0.0
        %v3785 = vadd.f32 %v3783, %v3784
        %v3786 = vsel %vm3762, %v3492, 0.0
        %v3787 = vadd.f32 %v3785, %v3786
        %v3788 = vsel %vm3762, %v3580, 0.0
        %v3789 = vadd.f32 %v3787, %v3788
        %v3790 = vsel %vm3762, %v3668, 0.0
        %v3791 = vadd.f32 %v3789, %v3790
        %v3792 = vsel %vm3762, %v3756, 0.0
        %v3793 = vadd.f32 %v3791, %v3792
        %v3794 = vadd.f32 %v3761, %v3793
        %3795 = vst [vmem:[#allocation3] sm:$0x3] %v3794
        %p3796 = scmp.eq.s32.totalorder %s24, 3
        // Predicated region
        $region85: #{cnn_forward.1} parent=55 // pred_check
          %p3797 = pneg %p3796
        $region86: #{cnn_forward.1} parent=55 // pred_check_branch
          %3799 = sbr.rel (%p3797) target = $region88
        $region87: #{cnn_forward.1} parent=55 // pred_region
          %v3800 = vld [vmem:[#allocation3] sm:$0x3]
          %v3801 = vld [vmem:[#allocation10] sm:$0x1]
          %v3803 = vlaneseq
          %v3804 = vshrl.u32 %v3803, 7
          %v3805 = vsub.s32 0, %v3804
          %v3806 = vrot.slane %v3801, %v3805
          %v3808 = vadd.f32 %v3800, %v3806
          %vm3809 = vcmp.gt.f32.partialorder %v3808, 0.0
          %v3810 = vmul.f32 %v3808, 0.01
          %v3811 = vsel %vm3809, %v3808, %v3810
          %v3812 = vpack.c.bf16 %v3811, %v3811
          %v3813 = vld [vmem:[#allocation11] sm:$0xf]
          %v3814 = vld [vmem:[#allocation11 + $0x4] sm:$0xf]
          %v3815 = vld [vmem:[#allocation11 + $0x8] sm:$0xf]
          %v3816 = vld [vmem:[#allocation11 + $0xc] sm:$0xf]
          %v3817 = vld [vmem:[#allocation11 + $0x10] sm:$0xf]
          %v3818 = vld [vmem:[#allocation11 + $0x14] sm:$0xf]
          %v3819 = vld [vmem:[#allocation11 + $0x18] sm:$0xf]
          %v3820 = vld [vmem:[#allocation11 + $0x1c] sm:$0xf]
          %v3821 = vld [vmem:[#allocation11 + $0x20] sm:$0xf]
          %v3822 = vld [vmem:[#allocation11 + $0x24] sm:$0xf]
          %v3823 = vld [vmem:[#allocation11 + $0x28] sm:$0xf]
          %v3824 = vld [vmem:[#allocation11 + $0x2c] sm:$0xf]
          %v3825 = vld [vmem:[#allocation11 + $0x30] sm:$0xf]
          %v3826 = vld [vmem:[#allocation11 + $0x34] sm:$0xf]
          %v3827 = vld [vmem:[#allocation11 + $0x38] sm:$0xf]
          %v3828 = vld [vmem:[#allocation11 + $0x3c] sm:$0xf]
          %v3829 = vld [vmem:[#allocation13] sm:$0x1]
          %v3831 = vlaneseq
          %v3832 = vshrl.u32 %v3831, 7
          %v3833 = vsub.s32 0, %v3832
          %v3834 = vrot.slane %v3829, %v3833
          %v3852 = vunpack.c.l.b16 %v3813
          %v3853 = vunpack.c.l.b16 %v3814
          %v3854 = vunpack.c.l.b16 %v3815
          %v3855 = vunpack.c.l.b16 %v3816
          %v3856 = vunpack.c.l.b16 %v3817
          %v3857 = vunpack.c.l.b16 %v3818
          %v3858 = vunpack.c.l.b16 %v3819
          %v3859 = vunpack.c.l.b16 %v3820
          %v3860 = vunpack.c.l.b16 %v3821
          %v3861 = vunpack.c.l.b16 %v3822
          %v3862 = vunpack.c.l.b16 %v3823
          %v3863 = vunpack.c.l.b16 %v3824
          %v3864 = vunpack.c.l.b16 %v3825
          %v3865 = vunpack.c.l.b16 %v3826
          %v3866 = vunpack.c.l.b16 %v3827
          %v3867 = vunpack.c.l.b16 %v3828
          %v3868 = vpack.c.b16 %v3853, %v3852
          %v3869 = vpack.c.b16 %v3855, %v3854
          %v3870 = vpack.c.b16 %v3857, %v3856
          %v3871 = vpack.c.b16 %v3859, %v3858
          %v3872 = vpack.c.b16 %v3861, %v3860
          %v3873 = vpack.c.b16 %v3863, %v3862
          %v3874 = vpack.c.b16 %v3865, %v3864
          %v3875 = vpack.c.b16 %v3867, %v3866
          %3884 = vmatprep.subr.bf16.mxu0 0
          %3885 = vmatpush1.bf16.msra.mxu0 %v3868
          %3886 = vmatprep.subr.bf16.mxu0 0
          %3887 = vmatpush1.bf16.msra.mxu0 %v3869
          %3888 = vmatprep.subr.bf16.mxu0 0
          %3889 = vmatpush1.bf16.msra.mxu0 %v3870
          %3890 = vmatprep.subr.bf16.mxu0 0
          %3891 = vmatpush1.bf16.msra.mxu0 %v3871
          %3892 = vmatprep.subr.bf16.mxu0 0
          %3893 = vmatpush1.bf16.msra.mxu0 %v3872
          %3894 = vmatprep.subr.bf16.mxu0 0
          %3895 = vmatpush1.bf16.msra.mxu0 %v3873
          %3896 = vmatprep.subr.bf16.mxu0 0
          %3897 = vmatpush1.bf16.msra.mxu0 %v3874
          %3898 = vmatprep.subr.bf16.mxu0 0
          %3899 = vmatpush1.bf16.msra.mxu0 %v3875
          %3900 = vmatprep.subr.bf16.mxu0 0
          %3901 = vmatpush1.bf16.msra.mxu0 0
          %3902 = vmatprep.subr.bf16.mxu0 0
          %3903 = vmatpush1.bf16.msra.mxu0 0
          %3904 = vmatprep.subr.bf16.mxu0 0
          %3905 = vmatpush1.bf16.msra.mxu0 0
          %3906 = vmatprep.subr.bf16.mxu0 0
          %3907 = vmatpush1.bf16.msra.mxu0 0
          %3908 = vmatprep.subr.bf16.mxu0 0
          %3909 = vmatpush1.bf16.msra.mxu0 0
          %3910 = vmatprep.subr.bf16.mxu0 0
          %3911 = vmatpush1.bf16.msra.mxu0 0
          %3912 = vmatprep.subr.bf16.mxu0 0
          %3913 = vmatpush1.bf16.msra.mxu0 0
          %3914 = vmatprep.subr.bf16.mxu0 0
          %3915 = vmatpush1.bf16.msra.mxu0 0
          %3916 = vmatprep.mubr.bf16.mxu0 0
          %3917 = vmatmul.mubr.bf16.gmra.mrb[0].mxu0 %v3812
          %v3918 = vpop.f32.mrb[0].mxu0
          %v3919 = vadd.f32 %v3834, %v3918
          %v3920 = vpop.f32.mrb[0].mxu0
          %v3921 = vpop.f32.mrb[0].mxu0
          %v3922 = vpop.f32.mrb[0].mxu0
          %3923 = vdwg.mxu0
          %3924 = vst [vmem:[#allocation14] sm:$0x3] %v3919
        $region88: #{cnn_forward.1} parent=55 // pred_fallthru
          _
        // Predicated region
        $region89: #{cnn_forward.1} parent=55 // pred_check
          %p3925 = pneg %p231
        $region90: #{cnn_forward.1} parent=55 // pred_check_branch
          %3927 = sbr.rel (%p3925) target = $region92
        $region91: #{cnn_forward.1} parent=55 // pred_region
          %s3929 = ssub.s32 32, 32
          %3930 = vsyncadd [#allocation6], %s3929
          %s3932 = sshll.u32 [#allocation14], 4
          %s3933 = int_to_ptr.vmem [resolvable:$true] %s3932
          %3935 = dma.vmem_to_hbm [thread:$0]  %s3933, 32, %s9, [#allocation6]
        $region92: #{cnn_forward.1} parent=55 // pred_fallthru
          _
        // Predicated region
        $region93: #{cnn_forward.1} parent=55 // pred_check
          %p3936 = pneg %p231
        $region94: #{cnn_forward.1} parent=55 // pred_check_branch
          %3938 = sbr.rel (%p3936) target = $region96
        $region95: #{cnn_forward.1} parent=55 // pred_region
          %3939 = dma.done [#allocation6], 32
        $region96: #{cnn_forward.1} parent=55 // pred_fallthru
          _
      $region56: #{cnn_forward.1} parent=5 // pred_fallthru
        _
      %p3940 = scmp.le.s32.totalorder 2, %s19
      // Predicated region
      $region97: #{cnn_forward.1} parent=5 // pred_check
        %p3941 = pneg %p3940
      $region98: #{cnn_forward.1} parent=5 // pred_check_branch
        %3943 = sbr.rel (%p3941) target = $region100
      $region99: #{cnn_forward.1} parent=5 // pred_region
        %s3944 = ssub.s32 %s19, 2
      $region100: #{cnn_forward.1} parent=5 // pred_fallthru
        _
    $region6: #{cnn_forward.1} parent=1 // loop_footer
      %s23 = sadd.s32 1, %s19
    $region7: #{cnn_forward.1} parent=1 // loop_footer_branch
      %18 = sbr.rel target = $region3
    $region8: #{cnn_forward.1} parent=1 // loop_exit
      _
    %3945 = vsyncpa [#allocation5], 1
    %s3946 = scalar_lea.sflag [#allocation5], 1
    %3947 = vsyncpa %s3946, 1
    %3948 = vsyncpa [#allocation8], 1
    %3949 = vsyncpa [#allocation12], 1
    %3950 = vsyncpa [#allocation6], 1
    %s3951 = scalar_lea.sflag [#allocation6], 1
    %3952 = vsyncpa %s3951, 1

</llo_original>
